<compile_context>
chip_gen: v5e
topology: v5e:2x2
jax: 0.10.0
libtpu: 0.0.40
codegen_flags: <defaults>
</compile_context>

<pallas_src>
import functools

import jax
import jax.numpy as jnp
from jax.experimental import pallas as pl
from jax.experimental.pallas import tpu as pltpu


def _round_up(x, m):
    return (x + m - 1) // m * m


# ----------------------------------------------------------------------------
# Pallas kernel: Tb timesteps of one LSTM direction per grid step.
#   inputs : mask (Tb, Bp, 1), gates_x (Tb, Bp, 4*Hp), W_hh^T (Hp, 4*Hp)
#   output : (Tb, Bp, Hp) written into this direction's lane-half
#   scratch: h, c state (Bp, Hp) persisting across the serial time axis
# ----------------------------------------------------------------------------
def lstm_block_kernel(m_ref, gx_ref, whh_ref, out_ref, h_scr, c_scr, *, hp, tb):
    d = pl.program_id(0)          # 0 = forward, 1 = backward
    t = pl.program_id(1)          # time-block index (serial)

    @pl.when(t == 0)
    def _init():
        h_scr[...] = jnp.zeros_like(h_scr)
        c_scr[...] = jnp.zeros_like(c_scr)

    whh = whh_ref[...]            # (Hp, 4*Hp), grid-invariant within a direction

    def step(idx):                # idx is a static Python int -> static slices
        gx = gx_ref[idx]          # (Bp, 4*Hp)  precomputed x @ W_ih^T + b
        m_t = m_ref[idx]          # (Bp, 1) float {0, 1}
        h = h_scr[...]
        c = c_scr[...]

        gates = gx + jnp.dot(h, whh, preferred_element_type=jnp.float32)

        # PyTorch gate order: i, f, g, o — each gate lane-aligned (hp % 128 == 0)
        i_g = jax.nn.sigmoid(gates[:, 0 * hp:1 * hp])
        f_g = jax.nn.sigmoid(gates[:, 1 * hp:2 * hp])
        g_g = jnp.tanh(gates[:, 2 * hp:3 * hp])
        o_g = jax.nn.sigmoid(gates[:, 3 * hp:4 * hp])

        c_new = f_g * c + i_g * g_g
        h_new = o_g * jnp.tanh(c_new)

        keep = m_t > 0.0          # padded steps keep carried state, output zero
        h_scr[...] = jnp.where(keep, h_new, h)
        c_scr[...] = jnp.where(keep, c_new, c)
        out_ref[idx] = jnp.where(keep, h_new, 0.0)

    @pl.when(d == 0)              # forward: process block timesteps 0 .. Tb-1
    def _fwd():
        for i in range(tb):
            step(i)

    @pl.when(d == 1)              # backward: process block timesteps Tb-1 .. 0
    def _bwd():
        for i in range(tb):
            step(tb - 1 - i)


# ----------------------------------------------------------------------------
# Bidirectional encoder wrapper (= LstmSeq2SeqEncoder.forward)
# ----------------------------------------------------------------------------
def lstm_seq2seq_encoder(x, mask, params, *, time_block=8):
    """x: (B, T, H), mask: (B, T) int/bool. Returns (B, T, H); pad positions zero."""
    B, T, H = x.shape
    Hc = params["fwd"][1].shape[0]           # hidden size per direction
    Hp = _round_up(Hc, 128)                  # lane-aligned gate width
    Bp = _round_up(B, 8)                     # sublane-aligned batch
    Tb = time_block
    nT = pl.cdiv(T, Tb)
    Tpad = nT * Tb

    x_f = x.astype(jnp.float32)
    mask_f = mask.astype(jnp.float32)

    def pad_dir(wih_t, whh_t, b):
        # per-gate padding Hc -> Hp keeps PyTorch's (i,f,g,o) layout lane-aligned;
        # padded rows/cols/bias are zero so padded lanes never enter the state.
        wih_p = jnp.pad(wih_t.reshape(H, 4, Hc),
                        ((0, 0), (0, 0), (0, Hp - Hc))).reshape(H, 4 * Hp)
        whh_p = jnp.pad(whh_t.reshape(Hc, 4, Hc),
                        ((0, Hp - Hc), (0, 0), (0, Hp - Hc))).reshape(Hp, 4 * Hp)
        b_p = jnp.pad(b.reshape(4, Hc), ((0, 0), (0, Hp - Hc))).reshape(4 * Hp)
        return wih_p, whh_p, b_p

    wih_f, whh_f, b_f = pad_dir(*params["fwd"])
    wih_b, whh_b, b_b = pad_dir(*params["bwd"])
    wih_all = jnp.stack([wih_f, wih_b])      # (2, H, 4*Hp)
    whh_all = jnp.stack([whh_f, whh_b])      # (2, Hp, 4*Hp)
    b_all = jnp.stack([b_f, b_b])            # (2, 4*Hp)

    # ---- hoisted input projection: one big MXU matmul, written time-major ----
    x_pad = jnp.pad(x_f, ((0, Bp - B), (0, Tpad - T), (0, 0)))          # (Bp, Tpad, H)
    gates_x = (jnp.einsum('bth,dhg->dtbg', x_pad, wih_all,
                          preferred_element_type=jnp.float32)
               + b_all[:, None, None, :])                               # (2, Tpad, Bp, 4*Hp)

    mask_tm = jnp.pad(mask_f.T, ((0, Tpad - T), (0, Bp - B)))[:, :, None]  # (Tpad, Bp, 1)

    def tmap(d, t):                          # forward: t ; backward: nT-1-t
        return t + d * (nT - 1 - 2 * t)

    # VMEM budget (f32): blocked inputs/outputs double-buffered + weights + state.
    vmem_bytes = 4 * (2 * Tb * Bp * 4 * Hp   # gates_x blocks
                      + 2 * Tb * Bp * 128    # mask blocks (lane-padded)
                      + 2 * Hp * 4 * Hp      # W_hh block
                      + 2 * Tb * Bp * Hp     # output blocks
                      + 2 * Bp * Hp)         # h / c state
    vmem_limit = min(96 * 1024 * 1024, max(32 * 1024 * 1024, int(1.5 * vmem_bytes)))

    out_pad = pl.pallas_call(
        functools.partial(lstm_block_kernel, hp=Hp, tb=Tb),
        out_shape=jax.ShapeDtypeStruct((Tpad, Bp, 2 * Hp), jnp.float32),
        grid_spec=pltpu.PrefetchScalarGridSpec(
            num_scalar_prefetch=0,
            grid=(2, nT),                                    # (direction, time block)
            in_specs=[
                pl.BlockSpec((Tb, Bp, 1),
                             lambda d, t: (tmap(d, t), 0, 0)),                 # mask
                pl.BlockSpec((None, Tb, Bp, 4 * Hp),
                             lambda d, t: (d, tmap(d, t), 0, 0)),              # gates_x
                pl.BlockSpec((None, Hp, 4 * Hp),
                             lambda d, t: (d, 0, 0)),                          # W_hh^T
            ],
            out_specs=pl.BlockSpec((Tb, Bp, Hp),
                                   lambda d, t: (tmap(d, t), 0, d)),           # fwd|bwd halves
            scratch_shapes=[pltpu.VMEM((Bp, Hp), jnp.float32),   # h state
                            pltpu.VMEM((Bp, Hp), jnp.float32)],  # c state
        ),
        compiler_params=pltpu.CompilerParams(
            dimension_semantics=("parallel", "arbitrary"),   # fwd/bwd on separate TCs (v7x)
            vmem_limit_bytes=vmem_limit),
    )(mask_tm, gates_x, whh_all)

    # fwd lives in lanes [:Hp], bwd in lanes [Hp:2*Hp]; trim padding, go batch-first.
    out = jnp.concatenate([out_pad[:T, :B, :Hc], out_pad[:T, :B, Hp:Hp + Hc]], axis=-1)
    return jnp.transpose(out, (1, 0, 2))                     # (B, T, 2*Hc)


# ----------------------------------------------------------------------------
# Pure-JAX reference (numerical verification of the kernel)
# ----------------------------------------------------------------------------
def _lstm_direction_ref(x, mask_f, wih_t, whh_t, b):
    B, T, H = x.shape
    Hc = whh_t.shape[0]

    def step(carry, inp):
        h, c = carry
        x_t, m_t = inp
        gates = x_t @ wih_t + h @ whh_t + b
        i_g = jax.nn.sigmoid(gates[:, :Hc])
        f_g = jax.nn.sigmoid(gates[:, Hc:2 * Hc])
        g_g = jnp.tanh(gates[:, 2 * Hc:3 * Hc])
        o_g = jax.nn.sigmoid(gates[:, 3 * Hc:])
        c_new = f_g * c + i_g * g_g
        h_new = o_g * jnp.tanh(c_new)
        h2 = m_t * h_new + (1.0 - m_t) * h
        c2 = m_t * c_new + (1.0 - m_t) * c
        return (h2, c2), h2 * m_t

    xs = (jnp.transpose(x, (1, 0, 2)),
          jnp.transpose(mask_f, (1, 0))[:, :, None])
    init = (jnp.zeros((B, Hc), jnp.float32), jnp.zeros((B, Hc), jnp.float32))
    _, outs = jax.lax.scan(step, init, xs)
    return jnp.transpose(outs, (1, 0, 2))


def lstm_seq2seq_encoder_ref(x, mask, params):
    B, T, H = x.shape
    mask_f = mask.astype(jnp.float32)
    lengths = jnp.sum(mask, axis=1).astype(jnp.int32)
    out_fwd = _lstm_direction_ref(x, mask_f, *params["fwd"])
    t_idx = jnp.arange(T)[None, :]
    rev_idx = jnp.clip(lengths[:, None] - 1 - t_idx, 0, T - 1)
    x_rev = jnp.take_along_axis(x, rev_idx[:, :, None], axis=1)
    out_rev = _lstm_direction_ref(x_rev, mask_f, *params["bwd"])
    out_bwd = (jnp.take_along_axis(out_rev, rev_idx[:, :, None], axis=1)
               * mask_f[:, :, None])
    return jnp.concatenate([out_fwd, out_bwd], axis=-1)


# ----------------------------------------------------------------------------
# Deterministic parameter init (mimics nn.LSTM's U(-1/sqrt(Hc), 1/sqrt(Hc)))
# ----------------------------------------------------------------------------
def init_params(key, hidden_size):
    Hc = hidden_size // 2
    k = 1.0 / jnp.sqrt(jnp.float32(Hc))
    params = {}
    for name in ("fwd", "bwd"):
        key, k1, k2, k3, k4 = jax.random.split(key, 5)
        w_ih = jax.random.uniform(k1, (4 * Hc, hidden_size), jnp.float32, -k, k)
        w_hh = jax.random.uniform(k2, (4 * Hc, Hc), jnp.float32, -k, k)
        b_ih = jax.random.uniform(k3, (4 * Hc,), jnp.float32, -k, k)
        b_hh = jax.random.uniform(k4, (4 * Hc,), jnp.float32, -k, k)
        params[name] = (w_ih.T,                                   # (H, 4Hc)
                        w_hh.T,                                   # (Hc, 4Hc)
                        (b_ih + b_hh)[None, :])                   # (1, 4Hc)
    return params


if __name__ == "__main__":
    key = jax.random.PRNGKey(0)

    # Test 1: shapes implied by the module (batch=2, seq=8, hidden=32).
    B, T, H = 2, 8, 32
    kx, kp, key = jax.random.split(key, 3)
    x = jax.random.normal(kx, (B, T, H), jnp.float32)
    lengths = jnp.array([8, 5], dtype=jnp.int32)
    mask = (jnp.arange(T)[None, :] < lengths[:, None]).astype(jnp.int32)
    params = init_params(kp, H)

    out = jax.block_until_ready(lstm_seq2seq_encoder(x, mask, params))
    t_eff = int(jnp.max(lengths))            # pad_packed_sequence trims to max length
    out = out[:, :t_eff]
    ref = lstm_seq2seq_encoder_ref(x, mask, params)[:, :t_eff]
    assert out.shape == (B, t_eff, H)
    assert jnp.allclose(out, ref, atol=1e-5, rtol=1e-5), \
        f"max err {jnp.max(jnp.abs(out - ref))}"

    # Test 2: ragged seq length (exercises time-block padding + reversed path).
    B2, T2 = 3, 13
    kx2, kp2, key = jax.random.split(key, 3)
    x2 = jax.random.normal(kx2, (B2, T2, H), jnp.float32)
    lengths2 = jnp.array([13, 9, 4], dtype=jnp.int32)
    mask2 = (jnp.arange(T2)[None, :] < lengths2[:, None]).astype(jnp.int32)
    params2 = init_params(kp2, H)
    out2 = jax.block_until_ready(lstm_seq2seq_encoder(x2, mask2, params2))
    t_eff2 = int(jnp.max(lengths2))
    out2 = out2[:, :t_eff2]
    ref2 = lstm_seq2seq_encoder_ref(x2, mask2, params2)[:, :t_eff2]
    assert jnp.allclose(out2, ref2, atol=1e-5, rtol=1e-5), \
        f"max err {jnp.max(jnp.abs(out2 - ref2))}"

    print("KERNEL_OK")
</pallas_src>

<mosaic_0001>
module attributes {stable_mosaic.version = 11 : i64} {
  func.func @lstm_block_kernel(%arg0: i32, %arg1: i32, %arg2: memref<8x8x1xf32, #tpu.memory_space<vmem>>, %arg3: memref<1x8x8x512xf32, #tpu.memory_space<vmem>>, %arg4: memref<1x128x512xf32, #tpu.memory_space<vmem>>, %arg5: memref<8x8x128xf32, #tpu.memory_space<vmem>>, %arg6: memref<8x128xf32, #tpu.memory_space<vmem>>, %arg7: memref<8x128xf32, #tpu.memory_space<vmem>>) attributes {dimension_semantics = [#tpu.dimension_semantics<parallel>, #tpu.dimension_semantics<arbitrary>], iteration_bounds = array<i64: 2, 1>, scalar_prefetch = 0 : i64, scratch_operands = 2 : i64, tpu.core_type = #tpu.core_type<tc>, window_params = [{transform_indices = @transform_0, window_bounds = array<i64: 8, 8, 1>}, {transform_indices = @transform_1, window_bounds = array<i64: 1, 8, 8, 512>}, {transform_indices = @transform_2, window_bounds = array<i64: 1, 128, 512>}, {transform_indices = @transform_3, window_bounds = array<i64: 8, 8, 128>}]} {
    %c0_i32 = arith.constant 0 : i32
    %0 = arith.cmpi eq, %arg1, %c0_i32 : i32
    %1 = arith.extui %0 : i1 to i32
    %c0_i32_0 = arith.constant 0 : i32
    %2 = arith.cmpi ne, %1, %c0_i32_0 : i32
    scf.if %2 {
      %cst = arith.constant 0.000000e+00 : f32
      %11 = vector.broadcast %cst : f32 to vector<8x128xf32>
      %c0_6 = arith.constant 0 : index
      %c0_7 = arith.constant 0 : index
      %12 = vector.load %arg6[%c0_6, %c0_7] : memref<8x128xf32, #tpu.memory_space<vmem>>, vector<8x128xf32>
      tpu.vector_store %arg6[%c0_6, %c0_7], %11 {strides = array<i32>} : memref<8x128xf32, #tpu.memory_space<vmem>>, vector<8x128xf32>,
      %cst_8 = arith.constant 0.000000e+00 : f32
      %13 = vector.broadcast %cst_8 : f32 to vector<8x128xf32>
      %c0_9 = arith.constant 0 : index
      %c0_10 = arith.constant 0 : index
      %14 = vector.load %arg7[%c0_9, %c0_10] : memref<8x128xf32, #tpu.memory_space<vmem>>, vector<8x128xf32>
      tpu.vector_store %arg7[%c0_9, %c0_10], %13 {strides = array<i32>} : memref<8x128xf32, #tpu.memory_space<vmem>>, vector<8x128xf32>,
    } else {
    }
    %c0 = arith.constant 0 : index
    %c0_1 = arith.constant 0 : index
    %c0_2 = arith.constant 0 : index
    %3 = vector.load %arg4[%c0, %c0_1, %c0_2] : memref<1x128x512xf32, #tpu.memory_space<vmem>>, vector<1x128x512xf32>
    %4 = vector.shape_cast %3 : vector<1x128x512xf32> to vector<128x512xf32>
    %c0_i32_3 = arith.constant 0 : i32
    %5 = arith.cmpi eq, %arg0, %c0_i32_3 : i32
    %6 = arith.extui %5 : i1 to i32
    %c0_i32_4 = arith.constant 0 : i32
    %7 = arith.cmpi ne, %6, %c0_i32_4 : i32
    scf.if %7 {
      %c0_6 = arith.constant 0 : index
      %c0_7 = arith.constant 0 : index
      %c0_8 = arith.constant 0 : index
      %c0_9 = arith.constant 0 : index
      %11 = vector.load %arg3[%c0_6, %c0_7, %c0_8, %c0_9] : memref<1x8x8x512xf32, #tpu.memory_space<vmem>>, vector<1x1x8x512xf32>
      %12 = vector.shape_cast %11 : vector<1x1x8x512xf32> to vector<8x512xf32>
      %c0_10 = arith.constant 0 : index
      %c0_11 = arith.constant 0 : index
      %c0_12 = arith.constant 0 : index
      %13 = vector.load %arg2[%c0_10, %c0_11, %c0_12] : memref<8x8x1xf32, #tpu.memory_space<vmem>>, vector<1x8x1xf32>
      %14 = vector.shape_cast %13 : vector<1x8x1xf32> to vector<8x1xf32>
      %c0_13 = arith.constant 0 : index
      %c0_14 = arith.constant 0 : index
      %15 = vector.load %arg6[%c0_13, %c0_14] : memref<8x128xf32, #tpu.memory_space<vmem>>, vector<8x128xf32>
      %c0_15 = arith.constant 0 : index
      %c0_16 = arith.constant 0 : index
      %16 = vector.load %arg7[%c0_15, %c0_16] : memref<8x128xf32, #tpu.memory_space<vmem>>, vector<8x128xf32>
      %cst = arith.constant dense<0.000000e+00> : vector<8x512xf32>
      %17 = tpu.matmul %15, %4, %cst {dimension_numbers = #tpu.dot_dimension_numbers<[1], [0], [0], [1], [0, 0, 1, 1], [], []>} : vector<8x128xf32>, vector<128x512xf32>, vector<8x512xf32> -> vector<8x512xf32>
      %18 = arith.addf %12, %17 : vector<8x512xf32>
      %19 = vector.extract_strided_slice %18 {offsets = [0, 0], sizes = [8, 128], strides = [1, 1]} : vector<8x512xf32> to vector<8x128xf32>
      %20 = arith.negf %19 : vector<8x128xf32>
      %21 = math.exp %20 : vector<8x128xf32>
      %cst_17 = arith.constant 1.000000e+00 : f32
      %22 = vector.broadcast %cst_17 : f32 to vector<8x128xf32>
      %23 = arith.addf %22, %21 : vector<8x128xf32>
      %24 = arith.divf %22, %23 : vector<8x128xf32>
      %25 = vector.extract_strided_slice %18 {offsets = [0, 128], sizes = [8, 128], strides = [1, 1]} : vector<8x512xf32> to vector<8x128xf32>
      %26 = arith.negf %25 : vector<8x128xf32>
      %27 = math.exp %26 : vector<8x128xf32>
      %cst_18 = arith.constant 1.000000e+00 : f32
      %28 = vector.broadcast %cst_18 : f32 to vector<8x128xf32>
      %29 = arith.addf %28, %27 : vector<8x128xf32>
      %30 = arith.divf %28, %29 : vector<8x128xf32>
      %31 = vector.extract_strided_slice %18 {offsets = [0, 256], sizes = [8, 128], strides = [1, 1]} : vector<8x512xf32> to vector<8x128xf32>
      %32 = math.tanh %31 : vector<8x128xf32>
      %33 = vector.extract_strided_slice %18 {offsets = [0, 384], sizes = [8, 128], strides = [1, 1]} : vector<8x512xf32> to vector<8x128xf32>
      %34 = arith.negf %33 : vector<8x128xf32>
      %35 = math.exp %34 : vector<8x128xf32>
      %cst_19 = arith.constant 1.000000e+00 : f32
      %36 = vector.broadcast %cst_19 : f32 to vector<8x128xf32>
      %37 = arith.addf %36, %35 : vector<8x128xf32>
      %38 = arith.divf %36, %37 : vector<8x128xf32>
      %39 = arith.mulf %30, %16 : vector<8x128xf32>
      %40 = arith.mulf %24, %32 : vector<8x128xf32>
      %41 = arith.addf %39, %40 : vector<8x128xf32>
      %42 = math.tanh %41 : vector<8x128xf32>
      %43 = arith.mulf %38, %42 : vector<8x128xf32>
      %cst_20 = arith.constant 0.000000e+00 : f32
      %44 = vector.broadcast %cst_20 : f32 to vector<8x1xf32>
      %45 = arith.cmpf ogt, %14, %44 : vector<8x1xf32>
      %46 = vector.shape_cast %45 : vector<8x1xi1> to vector<8x1xi1>
      %47 = vector.broadcast %46 : vector<8x1xi1> to vector<8x128xi1>
      %48 = arith.select %47, %43, %15 : vector<8x128xi1>, vector<8x128xf32>
      %c0_21 = arith.constant 0 : index
      %c0_22 = arith.constant 0 : index
      %49 = vector.load %arg6[%c0_21, %c0_22] : memref<8x128xf32, #tpu.memory_space<vmem>>, vector<8x128xf32>
      tpu.vector_store %arg6[%c0_21, %c0_22], %48 {strides = array<i32>} : memref<8x128xf32, #tpu.memory_space<vmem>>, vector<8x128xf32>,
      %50 = vector.shape_cast %45 : vector<8x1xi1> to vector<8x1xi1>
      %51 = vector.broadcast %50 : vector<8x1xi1> to vector<8x128xi1>
      %52 = arith.select %51, %41, %16 : vector<8x128xi1>, vector<8x128xf32>
      %c0_23 = arith.constant 0 : index
      %c0_24 = arith.constant 0 : index
      %53 = vector.load %arg7[%c0_23, %c0_24] : memref<8x128xf32, #tpu.memory_space<vmem>>, vector<8x128xf32>
      tpu.vector_store %arg7[%c0_23, %c0_24], %52 {strides = array<i32>} : memref<8x128xf32, #tpu.memory_space<vmem>>, vector<8x128xf32>,
      %cst_25 = arith.constant 0.000000e+00 : f32
      %54 = vector.shape_cast %45 : vector<8x1xi1> to vector<8x1xi1>
      %55 = vector.broadcast %54 : vector<8x1xi1> to vector<8x128xi1>
      %56 = vector.broadcast %cst_25 : f32 to vector<8x128xf32>
      %57 = arith.select %55, %43, %56 : vector<8x128xi1>, vector<8x128xf32>
      %c0_26 = arith.constant 0 : index
      %c0_27 = arith.constant 0 : index
      %c0_28 = arith.constant 0 : index
      %58 = vector.load %arg5[%c0_26, %c0_27, %c0_28] : memref<8x8x128xf32, #tpu.memory_space<vmem>>, vector<1x8x128xf32>
      %59 = vector.shape_cast %58 : vector<1x8x128xf32> to vector<8x128xf32>
      %60 = vector.shape_cast %57 : vector<8x128xf32> to vector<1x8x128xf32>
      tpu.vector_store %arg5[%c0_26, %c0_27, %c0_28], %60 {strides = array<i32>} : memref<8x8x128xf32, #tpu.memory_space<vmem>>, vector<1x8x128xf32>,
      %c0_29 = arith.constant 0 : index
      %c1 = arith.constant 1 : index
      %c0_30 = arith.constant 0 : index
      %c0_31 = arith.constant 0 : index
      %61 = vector.load %arg3[%c0_29, %c1, %c0_30, %c0_31] : memref<1x8x8x512xf32, #tpu.memory_space<vmem>>, vector<1x1x8x512xf32>
      %62 = vector.shape_cast %61 : vector<1x1x8x512xf32> to vector<8x512xf32>
      %c1_32 = arith.constant 1 : index
      %c0_33 = arith.constant 0 : index
      %c0_34 = arith.constant 0 : index
      %63 = vector.load %arg2[%c1_32, %c0_33, %c0_34] : memref<8x8x1xf32, #tpu.memory_space<vmem>>, vector<1x8x1xf32>
      %64 = vector.shape_cast %63 : vector<1x8x1xf32> to vector<8x1xf32>
      %c0_35 = arith.constant 0 : index
      %c0_36 = arith.constant 0 : index
      %65 = vector.load %arg6[%c0_35, %c0_36] : memref<8x128xf32, #tpu.memory_space<vmem>>, vector<8x128xf32>
      %c0_37 = arith.constant 0 : index
      %c0_38 = arith.constant 0 : index
      %66 = vector.load %arg7[%c0_37, %c0_38] : memref<8x128xf32, #tpu.memory_space<vmem>>, vector<8x128xf32>
      %cst_39 = arith.constant dense<0.000000e+00> : vector<8x512xf32>
      %67 = tpu.matmul %65, %4, %cst_39 {dimension_numbers = #tpu.dot_dimension_numbers<[1], [0], [0], [1], [0, 0, 1, 1], [], []>} : vector<8x128xf32>, vector<128x512xf32>, vector<8x512xf32> -> vector<8x512xf32>
      %68 = arith.addf %62, %67 : vector<8x512xf32>
      %69 = vector.extract_strided_slice %68 {offsets = [0, 0], sizes = [8, 128], strides = [1, 1]} : vector<8x512xf32> to vector<8x128xf32>
      %70 = arith.negf %69 : vector<8x128xf32>
      %71 = math.exp %70 : vector<8x128xf32>
      %cst_40 = arith.constant 1.000000e+00 : f32
      %72 = vector.broadcast %cst_40 : f32 to vector<8x128xf32>
      %73 = arith.addf %72, %71 : vector<8x128xf32>
      %74 = arith.divf %72, %73 : vector<8x128xf32>
      %75 = vector.extract_strided_slice %68 {offsets = [0, 128], sizes = [8, 128], strides = [1, 1]} : vector<8x512xf32> to vector<8x128xf32>
      %76 = arith.negf %75 : vector<8x128xf32>
      %77 = math.exp %76 : vector<8x128xf32>
      %cst_41 = arith.constant 1.000000e+00 : f32
      %78 = vector.broadcast %cst_41 : f32 to vector<8x128xf32>
      %79 = arith.addf %78, %77 : vector<8x128xf32>
      %80 = arith.divf %78, %79 : vector<8x128xf32>
      %81 = vector.extract_strided_slice %68 {offsets = [0, 256], sizes = [8, 128], strides = [1, 1]} : vector<8x512xf32> to vector<8x128xf32>
      %82 = math.tanh %81 : vector<8x128xf32>
      %83 = vector.extract_strided_slice %68 {offsets = [0, 384], sizes = [8, 128], strides = [1, 1]} : vector<8x512xf32> to vector<8x128xf32>
      %84 = arith.negf %83 : vector<8x128xf32>
      %85 = math.exp %84 : vector<8x128xf32>
      %cst_42 = arith.constant 1.000000e+00 : f32
      %86 = vector.broadcast %cst_42 : f32 to vector<8x128xf32>
      %87 = arith.addf %86, %85 : vector<8x128xf32>
      %88 = arith.divf %86, %87 : vector<8x128xf32>
      %89 = arith.mulf %80, %66 : vector<8x128xf32>
      %90 = arith.mulf %74, %82 : vector<8x128xf32>
      %91 = arith.addf %89, %90 : vector<8x128xf32>
      %92 = math.tanh %91 : vector<8x128xf32>
      %93 = arith.mulf %88, %92 : vector<8x128xf32>
      %cst_43 = arith.constant 0.000000e+00 : f32
      %94 = vector.broadcast %cst_43 : f32 to vector<8x1xf32>
      %95 = arith.cmpf ogt, %64, %94 : vector<8x1xf32>
      %96 = vector.shape_cast %95 : vector<8x1xi1> to vector<8x1xi1>
      %97 = vector.broadcast %96 : vector<8x1xi1> to vector<8x128xi1>
      %98 = arith.select %97, %93, %65 : vector<8x128xi1>, vector<8x128xf32>
      %c0_44 = arith.constant 0 : index
      %c0_45 = arith.constant 0 : index
      %99 = vector.load %arg6[%c0_44, %c0_45] : memref<8x128xf32, #tpu.memory_space<vmem>>, vector<8x128xf32>
      tpu.vector_store %arg6[%c0_44, %c0_45], %98 {strides = array<i32>} : memref<8x128xf32, #tpu.memory_space<vmem>>, vector<8x128xf32>,
      %100 = vector.shape_cast %95 : vector<8x1xi1> to vector<8x1xi1>
      %101 = vector.broadcast %100 : vector<8x1xi1> to vector<8x128xi1>
      %102 = arith.select %101, %91, %66 : vector<8x128xi1>, vector<8x128xf32>
      %c0_46 = arith.constant 0 : index
      %c0_47 = arith.constant 0 : index
      %103 = vector.load %arg7[%c0_46, %c0_47] : memref<8x128xf32, #tpu.memory_space<vmem>>, vector<8x128xf32>
      tpu.vector_store %arg7[%c0_46, %c0_47], %102 {strides = array<i32>} : memref<8x128xf32, #tpu.memory_space<vmem>>, vector<8x128xf32>,
      %cst_48 = arith.constant 0.000000e+00 : f32
      %104 = vector.shape_cast %95 : vector<8x1xi1> to vector<8x1xi1>
      %105 = vector.broadcast %104 : vector<8x1xi1> to vector<8x128xi1>
      %106 = vector.broadcast %cst_48 : f32 to vector<8x128xf32>
      %107 = arith.select %105, %93, %106 : vector<8x128xi1>, vector<8x128xf32>
      %c1_49 = arith.constant 1 : index
      %c0_50 = arith.constant 0 : index
      %c0_51 = arith.constant 0 : index
      %108 = vector.load %arg5[%c1_49, %c0_50, %c0_51] : memref<8x8x128xf32, #tpu.memory_space<vmem>>, vector<1x8x128xf32>
      %109 = vector.shape_cast %108 : vector<1x8x128xf32> to vector<8x128xf32>
      %110 = vector.shape_cast %107 : vector<8x128xf32> to vector<1x8x128xf32>
      tpu.vector_store %arg5[%c1_49, %c0_50, %c0_51], %110 {strides = array<i32>} : memref<8x8x128xf32, #tpu.memory_space<vmem>>, vector<1x8x128xf32>,
      %c0_52 = arith.constant 0 : index
      %c2 = arith.constant 2 : index
      %c0_53 = arith.constant 0 : index
      %c0_54 = arith.constant 0 : index
      %111 = vector.load %arg3[%c0_52, %c2, %c0_53, %c0_54] : memref<1x8x8x512xf32, #tpu.memory_space<vmem>>, vector<1x1x8x512xf32>
      %112 = vector.shape_cast %111 : vector<1x1x8x512xf32> to vector<8x512xf32>
      %c2_55 = arith.constant 2 : index
      %c0_56 = arith.constant 0 : index
      %c0_57 = arith.constant 0 : index
      %113 = vector.load %arg2[%c2_55, %c0_56, %c0_57] : memref<8x8x1xf32, #tpu.memory_space<vmem>>, vector<1x8x1xf32>
      %114 = vector.shape_cast %113 : vector<1x8x1xf32> to vector<8x1xf32>
      %c0_58 = arith.constant 0 : index
      %c0_59 = arith.constant 0 : index
      %115 = vector.load %arg6[%c0_58, %c0_59] : memref<8x128xf32, #tpu.memory_space<vmem>>, vector<8x128xf32>
      %c0_60 = arith.constant 0 : index
      %c0_61 = arith.constant 0 : index
      %116 = vector.load %arg7[%c0_60, %c0_61] : memref<8x128xf32, #tpu.memory_space<vmem>>, vector<8x128xf32>
      %cst_62 = arith.constant dense<0.000000e+00> : vector<8x512xf32>
      %117 = tpu.matmul %115, %4, %cst_62 {dimension_numbers = #tpu.dot_dimension_numbers<[1], [0], [0], [1], [0, 0, 1, 1], [], []>} : vector<8x128xf32>, vector<128x512xf32>, vector<8x512xf32> -> vector<8x512xf32>
      %118 = arith.addf %112, %117 : vector<8x512xf32>
      %119 = vector.extract_strided_slice %118 {offsets = [0, 0], sizes = [8, 128], strides = [1, 1]} : vector<8x512xf32> to vector<8x128xf32>
      %120 = arith.negf %119 : vector<8x128xf32>
      %121 = math.exp %120 : vector<8x128xf32>
      %cst_63 = arith.constant 1.000000e+00 : f32
      %122 = vector.broadcast %cst_63 : f32 to vector<8x128xf32>
      %123 = arith.addf %122, %121 : vector<8x128xf32>
      %124 = arith.divf %122, %123 : vector<8x128xf32>
      %125 = vector.extract_strided_slice %118 {offsets = [0, 128], sizes = [8, 128], strides = [1, 1]} : vector<8x512xf32> to vector<8x128xf32>
      %126 = arith.negf %125 : vector<8x128xf32>
      %127 = math.exp %126 : vector<8x128xf32>
      %cst_64 = arith.constant 1.000000e+00 : f32
      %128 = vector.broadcast %cst_64 : f32 to vector<8x128xf32>
      %129 = arith.addf %128, %127 : vector<8x128xf32>
      %130 = arith.divf %128, %129 : vector<8x128xf32>
      %131 = vector.extract_strided_slice %118 {offsets = [0, 256], sizes = [8, 128], strides = [1, 1]} : vector<8x512xf32> to vector<8x128xf32>
      %132 = math.tanh %131 : vector<8x128xf32>
      %133 = vector.extract_strided_slice %118 {offsets = [0, 384], sizes = [8, 128], strides = [1, 1]} : vector<8x512xf32> to vector<8x128xf32>
      %134 = arith.negf %133 : vector<8x128xf32>
      %135 = math.exp %134 : vector<8x128xf32>
      %cst_65 = arith.constant 1.000000e+00 : f32
      %136 = vector.broadcast %cst_65 : f32 to vector<8x128xf32>
      %137 = arith.addf %136, %135 : vector<8x128xf32>
      %138 = arith.divf %136, %137 : vector<8x128xf32>
      %139 = arith.mulf %130, %116 : vector<8x128xf32>
      %140 = arith.mulf %124, %132 : vector<8x128xf32>
      %141 = arith.addf %139, %140 : vector<8x128xf32>
      %142 = math.tanh %141 : vector<8x128xf32>
      %143 = arith.mulf %138, %142 : vector<8x128xf32>
      %cst_66 = arith.constant 0.000000e+00 : f32
      %144 = vector.broadcast %cst_66 : f32 to vector<8x1xf32>
      %145 = arith.cmpf ogt, %114, %144 : vector<8x1xf32>
      %146 = vector.shape_cast %145 : vector<8x1xi1> to vector<8x1xi1>
      %147 = vector.broadcast %146 : vector<8x1xi1> to vector<8x128xi1>
      %148 = arith.select %147, %143, %115 : vector<8x128xi1>, vector<8x128xf32>
      %c0_67 = arith.constant 0 : index
      %c0_68 = arith.constant 0 : index
      %149 = vector.load %arg6[%c0_67, %c0_68] : memref<8x128xf32, #tpu.memory_space<vmem>>, vector<8x128xf32>
      tpu.vector_store %arg6[%c0_67, %c0_68], %148 {strides = array<i32>} : memref<8x128xf32, #tpu.memory_space<vmem>>, vector<8x128xf32>,
      %150 = vector.shape_cast %145 : vector<8x1xi1> to vector<8x1xi1>
      %151 = vector.broadcast %150 : vector<8x1xi1> to vector<8x128xi1>
      %152 = arith.select %151, %141, %116 : vector<8x128xi1>, vector<8x128xf32>
      %c0_69 = arith.constant 0 : index
      %c0_70 = arith.constant 0 : index
      %153 = vector.load %arg7[%c0_69, %c0_70] : memref<8x128xf32, #tpu.memory_space<vmem>>, vector<8x128xf32>
      tpu.vector_store %arg7[%c0_69, %c0_70], %152 {strides = array<i32>} : memref<8x128xf32, #tpu.memory_space<vmem>>, vector<8x128xf32>,
      %cst_71 = arith.constant 0.000000e+00 : f32
      %154 = vector.shape_cast %145 : vector<8x1xi1> to vector<8x1xi1>
      %155 = vector.broadcast %154 : vector<8x1xi1> to vector<8x128xi1>
      %156 = vector.broadcast %cst_71 : f32 to vector<8x128xf32>
      %157 = arith.select %155, %143, %156 : vector<8x128xi1>, vector<8x128xf32>
      %c2_72 = arith.constant 2 : index
      %c0_73 = arith.constant 0 : index
      %c0_74 = arith.constant 0 : index
      %158 = vector.load %arg5[%c2_72, %c0_73, %c0_74] : memref<8x8x128xf32, #tpu.memory_space<vmem>>, vector<1x8x128xf32>
      %159 = vector.shape_cast %158 : vector<1x8x128xf32> to vector<8x128xf32>
      %160 = vector.shape_cast %157 : vector<8x128xf32> to vector<1x8x128xf32>
      tpu.vector_store %arg5[%c2_72, %c0_73, %c0_74], %160 {strides = array<i32>} : memref<8x8x128xf32, #tpu.memory_space<vmem>>, vector<1x8x128xf32>,
      %c0_75 = arith.constant 0 : index
      %c3 = arith.constant 3 : index
      %c0_76 = arith.constant 0 : index
      %c0_77 = arith.constant 0 : index
      %161 = vector.load %arg3[%c0_75, %c3, %c0_76, %c0_77] : memref<1x8x8x512xf32, #tpu.memory_space<vmem>>, vector<1x1x8x512xf32>
      %162 = vector.shape_cast %161 : vector<1x1x8x512xf32> to vector<8x512xf32>
      %c3_78 = arith.constant 3 : index
      %c0_79 = arith.constant 0 : index
      %c0_80 = arith.constant 0 : index
      %163 = vector.load %arg2[%c3_78, %c0_79, %c0_80] : memref<8x8x1xf32, #tpu.memory_space<vmem>>, vector<1x8x1xf32>
      %164 = vector.shape_cast %163 : vector<1x8x1xf32> to vector<8x1xf32>
      %c0_81 = arith.constant 0 : index
      %c0_82 = arith.constant 0 : index
      %165 = vector.load %arg6[%c0_81, %c0_82] : memref<8x128xf32, #tpu.memory_space<vmem>>, vector<8x128xf32>
      %c0_83 = arith.constant 0 : index
      %c0_84 = arith.constant 0 : index
      %166 = vector.load %arg7[%c0_83, %c0_84] : memref<8x128xf32, #tpu.memory_space<vmem>>, vector<8x128xf32>
      %cst_85 = arith.constant dense<0.000000e+00> : vector<8x512xf32>
      %167 = tpu.matmul %165, %4, %cst_85 {dimension_numbers = #tpu.dot_dimension_numbers<[1], [0], [0], [1], [0, 0, 1, 1], [], []>} : vector<8x128xf32>, vector<128x512xf32>, vector<8x512xf32> -> vector<8x512xf32>
      %168 = arith.addf %162, %167 : vector<8x512xf32>
      %169 = vector.extract_strided_slice %168 {offsets = [0, 0], sizes = [8, 128], strides = [1, 1]} : vector<8x512xf32> to vector<8x128xf32>
      %170 = arith.negf %169 : vector<8x128xf32>
      %171 = math.exp %170 : vector<8x128xf32>
      %cst_86 = arith.constant 1.000000e+00 : f32
      %172 = vector.broadcast %cst_86 : f32 to vector<8x128xf32>
      %173 = arith.addf %172, %171 : vector<8x128xf32>
      %174 = arith.divf %172, %173 : vector<8x128xf32>
      %175 = vector.extract_strided_slice %168 {offsets = [0, 128], sizes = [8, 128], strides = [1, 1]} : vector<8x512xf32> to vector<8x128xf32>
      %176 = arith.negf %175 : vector<8x128xf32>
      %177 = math.exp %176 : vector<8x128xf32>
      %cst_87 = arith.constant 1.000000e+00 : f32
      %178 = vector.broadcast %cst_87 : f32 to vector<8x128xf32>
      %179 = arith.addf %178, %177 : vector<8x128xf32>
      %180 = arith.divf %178, %179 : vector<8x128xf32>
      %181 = vector.extract_strided_slice %168 {offsets = [0, 256], sizes = [8, 128], strides = [1, 1]} : vector<8x512xf32> to vector<8x128xf32>
      %182 = math.tanh %181 : vector<8x128xf32>
      %183 = vector.extract_strided_slice %168 {offsets = [0, 384], sizes = [8, 128], strides = [1, 1]} : vector<8x512xf32> to vector<8x128xf32>
      %184 = arith.negf %183 : vector<8x128xf32>
      %185 = math.exp %184 : vector<8x128xf32>
      %cst_88 = arith.constant 1.000000e+00 : f32
      %186 = vector.broadcast %cst_88 : f32 to vector<8x128xf32>
      %187 = arith.addf %186, %185 : vector<8x128xf32>
      %188 = arith.divf %186, %187 : vector<8x128xf32>
      %189 = arith.mulf %180, %166 : vector<8x128xf32>
      %190 = arith.mulf %174, %182 : vector<8x128xf32>
      %191 = arith.addf %189, %190 : vector<8x128xf32>
      %192 = math.tanh %191 : vector<8x128xf32>
      %193 = arith.mulf %188, %192 : vector<8x128xf32>
      %cst_89 = arith.constant 0.000000e+00 : f32
      %194 = vector.broadcast %cst_89 : f32 to vector<8x1xf32>
      %195 = arith.cmpf ogt, %164, %194 : vector<8x1xf32>
      %196 = vector.shape_cast %195 : vector<8x1xi1> to vector<8x1xi1>
      %197 = vector.broadcast %196 : vector<8x1xi1> to vector<8x128xi1>
      %198 = arith.select %197, %193, %165 : vector<8x128xi1>, vector<8x128xf32>
      %c0_90 = arith.constant 0 : index
      %c0_91 = arith.constant 0 : index
      %199 = vector.load %arg6[%c0_90, %c0_91] : memref<8x128xf32, #tpu.memory_space<vmem>>, vector<8x128xf32>
      tpu.vector_store %arg6[%c0_90, %c0_91], %198 {strides = array<i32>} : memref<8x128xf32, #tpu.memory_space<vmem>>, vector<8x128xf32>,
      %200 = vector.shape_cast %195 : vector<8x1xi1> to vector<8x1xi1>
      %201 = vector.broadcast %200 : vector<8x1xi1> to vector<8x128xi1>
      %202 = arith.select %201, %191, %166 : vector<8x128xi1>, vector<8x128xf32>
      %c0_92 = arith.constant 0 : index
      %c0_93 = arith.constant 0 : index
      %203 = vector.load %arg7[%c0_92, %c0_93] : memref<8x128xf32, #tpu.memory_space<vmem>>, vector<8x128xf32>
      tpu.vector_store %arg7[%c0_92, %c0_93], %202 {strides = array<i32>} : memref<8x128xf32, #tpu.memory_space<vmem>>, vector<8x128xf32>,
      %cst_94 = arith.constant 0.000000e+00 : f32
      %204 = vector.shape_cast %195 : vector<8x1xi1> to vector<8x1xi1>
      %205 = vector.broadcast %204 : vector<8x1xi1> to vector<8x128xi1>
      %206 = vector.broadcast %cst_94 : f32 to vector<8x128xf32>
      %207 = arith.select %205, %193, %206 : vector<8x128xi1>, vector<8x128xf32>
      %c3_95 = arith.constant 3 : index
      %c0_96 = arith.constant 0 : index
      %c0_97 = arith.constant 0 : index
      %208 = vector.load %arg5[%c3_95, %c0_96, %c0_97] : memref<8x8x128xf32, #tpu.memory_space<vmem>>, vector<1x8x128xf32>
      %209 = vector.shape_cast %208 : vector<1x8x128xf32> to vector<8x128xf32>
      %210 = vector.shape_cast %207 : vector<8x128xf32> to vector<1x8x128xf32>
      tpu.vector_store %arg5[%c3_95, %c0_96, %c0_97], %210 {strides = array<i32>} : memref<8x8x128xf32, #tpu.memory_space<vmem>>, vector<1x8x128xf32>,
      %c0_98 = arith.constant 0 : index
      %c4 = arith.constant 4 : index
      %c0_99 = arith.constant 0 : index
      %c0_100 = arith.constant 0 : index
      %211 = vector.load %arg3[%c0_98, %c4, %c0_99, %c0_100] : memref<1x8x8x512xf32, #tpu.memory_space<vmem>>, vector<1x1x8x512xf32>
      %212 = vector.shape_cast %211 : vector<1x1x8x512xf32> to vector<8x512xf32>
      %c4_101 = arith.constant 4 : index
      %c0_102 = arith.constant 0 : index
      %c0_103 = arith.constant 0 : index
      %213 = vector.load %arg2[%c4_101, %c0_102, %c0_103] : memref<8x8x1xf32, #tpu.memory_space<vmem>>, vector<1x8x1xf32>
      %214 = vector.shape_cast %213 : vector<1x8x1xf32> to vector<8x1xf32>
      %c0_104 = arith.constant 0 : index
      %c0_105 = arith.constant 0 : index
      %215 = vector.load %arg6[%c0_104, %c0_105] : memref<8x128xf32, #tpu.memory_space<vmem>>, vector<8x128xf32>
      %c0_106 = arith.constant 0 : index
      %c0_107 = arith.constant 0 : index
      %216 = vector.load %arg7[%c0_106, %c0_107] : memref<8x128xf32, #tpu.memory_space<vmem>>, vector<8x128xf32>
      %cst_108 = arith.constant dense<0.000000e+00> : vector<8x512xf32>
      %217 = tpu.matmul %215, %4, %cst_108 {dimension_numbers = #tpu.dot_dimension_numbers<[1], [0], [0], [1], [0, 0, 1, 1], [], []>} : vector<8x128xf32>, vector<128x512xf32>, vector<8x512xf32> -> vector<8x512xf32>
      %218 = arith.addf %212, %217 : vector<8x512xf32>
      %219 = vector.extract_strided_slice %218 {offsets = [0, 0], sizes = [8, 128], strides = [1, 1]} : vector<8x512xf32> to vector<8x128xf32>
      %220 = arith.negf %219 : vector<8x128xf32>
      %221 = math.exp %220 : vector<8x128xf32>
      %cst_109 = arith.constant 1.000000e+00 : f32
      %222 = vector.broadcast %cst_109 : f32 to vector<8x128xf32>
      %223 = arith.addf %222, %221 : vector<8x128xf32>
      %224 = arith.divf %222, %223 : vector<8x128xf32>
      %225 = vector.extract_strided_slice %218 {offsets = [0, 128], sizes = [8, 128], strides = [1, 1]} : vector<8x512xf32> to vector<8x128xf32>
      %226 = arith.negf %225 : vector<8x128xf32>
      %227 = math.exp %226 : vector<8x128xf32>
      %cst_110 = arith.constant 1.000000e+00 : f32
      %228 = vector.broadcast %cst_110 : f32 to vector<8x128xf32>
      %229 = arith.addf %228, %227 : vector<8x128xf32>
      %230 = arith.divf %228, %229 : vector<8x128xf32>
      %231 = vector.extract_strided_slice %218 {offsets = [0, 256], sizes = [8, 128], strides = [1, 1]} : vector<8x512xf32> to vector<8x128xf32>
      %232 = math.tanh %231 : vector<8x128xf32>
      %233 = vector.extract_strided_slice %218 {offsets = [0, 384], sizes = [8, 128], strides = [1, 1]} : vector<8x512xf32> to vector<8x128xf32>
      %234 = arith.negf %233 : vector<8x128xf32>
      %235 = math.exp %234 : vector<8x128xf32>
      %cst_111 = arith.constant 1.000000e+00 : f32
      %236 = vector.broadcast %cst_111 : f32 to vector<8x128xf32>
      %237 = arith.addf %236, %235 : vector<8x128xf32>
      %238 = arith.divf %236, %237 : vector<8x128xf32>
      %239 = arith.mulf %230, %216 : vector<8x128xf32>
      %240 = arith.mulf %224, %232 : vector<8x128xf32>
      %241 = arith.addf %239, %240 : vector<8x128xf32>
      %242 = math.tanh %241 : vector<8x128xf32>
      %243 = arith.mulf %238, %242 : vector<8x128xf32>
      %cst_112 = arith.constant 0.000000e+00 : f32
      %244 = vector.broadcast %cst_112 : f32 to vector<8x1xf32>
      %245 = arith.cmpf ogt, %214, %244 : vector<8x1xf32>
      %246 = vector.shape_cast %245 : vector<8x1xi1> to vector<8x1xi1>
      %247 = vector.broadcast %246 : vector<8x1xi1> to vector<8x128xi1>
      %248 = arith.select %247, %243, %215 : vector<8x128xi1>, vector<8x128xf32>
      %c0_113 = arith.constant 0 : index
      %c0_114 = arith.constant 0 : index
      %249 = vector.load %arg6[%c0_113, %c0_114] : memref<8x128xf32, #tpu.memory_space<vmem>>, vector<8x128xf32>
      tpu.vector_store %arg6[%c0_113, %c0_114], %248 {strides = array<i32>} : memref<8x128xf32, #tpu.memory_space<vmem>>, vector<8x128xf32>,
      %250 = vector.shape_cast %245 : vector<8x1xi1> to vector<8x1xi1>
      %251 = vector.broadcast %250 : vector<8x1xi1> to vector<8x128xi1>
      %252 = arith.select %251, %241, %216 : vector<8x128xi1>, vector<8x128xf32>
      %c0_115 = arith.constant 0 : index
      %c0_116 = arith.constant 0 : index
      %253 = vector.load %arg7[%c0_115, %c0_116] : memref<8x128xf32, #tpu.memory_space<vmem>>, vector<8x128xf32>
      tpu.vector_store %arg7[%c0_115, %c0_116], %252 {strides = array<i32>} : memref<8x128xf32, #tpu.memory_space<vmem>>, vector<8x128xf32>,
      %cst_117 = arith.constant 0.000000e+00 : f32
      %254 = vector.shape_cast %245 : vector<8x1xi1> to vector<8x1xi1>
      %255 = vector.broadcast %254 : vector<8x1xi1> to vector<8x128xi1>
      %256 = vector.broadcast %cst_117 : f32 to vector<8x128xf32>
      %257 = arith.select %255, %243, %256 : vector<8x128xi1>, vector<8x128xf32>
      %c4_118 = arith.constant 4 : index
      %c0_119 = arith.constant 0 : index
      %c0_120 = arith.constant 0 : index
      %258 = vector.load %arg5[%c4_118, %c0_119, %c0_120] : memref<8x8x128xf32, #tpu.memory_space<vmem>>, vector<1x8x128xf32>
      %259 = vector.shape_cast %258 : vector<1x8x128xf32> to vector<8x128xf32>
      %260 = vector.shape_cast %257 : vector<8x128xf32> to vector<1x8x128xf32>
      tpu.vector_store %arg5[%c4_118, %c0_119, %c0_120], %260 {strides = array<i32>} : memref<8x8x128xf32, #tpu.memory_space<vmem>>, vector<1x8x128xf32>,
      %c0_121 = arith.constant 0 : index
      %c5 = arith.constant 5 : index
      %c0_122 = arith.constant 0 : index
      %c0_123 = arith.constant 0 : index
      %261 = vector.load %arg3[%c0_121, %c5, %c0_122, %c0_123] : memref<1x8x8x512xf32, #tpu.memory_space<vmem>>, vector<1x1x8x512xf32>
      %262 = vector.shape_cast %261 : vector<1x1x8x512xf32> to vector<8x512xf32>
      %c5_124 = arith.constant 5 : index
      %c0_125 = arith.constant 0 : index
      %c0_126 = arith.constant 0 : index
      %263 = vector.load %arg2[%c5_124, %c0_125, %c0_126] : memref<8x8x1xf32, #tpu.memory_space<vmem>>, vector<1x8x1xf32>
      %264 = vector.shape_cast %263 : vector<1x8x1xf32> to vector<8x1xf32>
      %c0_127 = arith.constant 0 : index
      %c0_128 = arith.constant 0 : index
      %265 = vector.load %arg6[%c0_127, %c0_128] : memref<8x128xf32, #tpu.memory_space<vmem>>, vector<8x128xf32>
      %c0_129 = arith.constant 0 : index
      %c0_130 = arith.constant 0 : index
      %266 = vector.load %arg7[%c0_129, %c0_130] : memref<8x128xf32, #tpu.memory_space<vmem>>, vector<8x128xf32>
      %cst_131 = arith.constant dense<0.000000e+00> : vector<8x512xf32>
      %267 = tpu.matmul %265, %4, %cst_131 {dimension_numbers = #tpu.dot_dimension_numbers<[1], [0], [0], [1], [0, 0, 1, 1], [], []>} : vector<8x128xf32>, vector<128x512xf32>, vector<8x512xf32> -> vector<8x512xf32>
      %268 = arith.addf %262, %267 : vector<8x512xf32>
      %269 = vector.extract_strided_slice %268 {offsets = [0, 0], sizes = [8, 128], strides = [1, 1]} : vector<8x512xf32> to vector<8x128xf32>
      %270 = arith.negf %269 : vector<8x128xf32>
      %271 = math.exp %270 : vector<8x128xf32>
      %cst_132 = arith.constant 1.000000e+00 : f32
      %272 = vector.broadcast %cst_132 : f32 to vector<8x128xf32>
      %273 = arith.addf %272, %271 : vector<8x128xf32>
      %274 = arith.divf %272, %273 : vector<8x128xf32>
      %275 = vector.extract_strided_slice %268 {offsets = [0, 128], sizes = [8, 128], strides = [1, 1]} : vector<8x512xf32> to vector<8x128xf32>
      %276 = arith.negf %275 : vector<8x128xf32>
      %277 = math.exp %276 : vector<8x128xf32>
      %cst_133 = arith.constant 1.000000e+00 : f32
      %278 = vector.broadcast %cst_133 : f32 to vector<8x128xf32>
      %279 = arith.addf %278, %277 : vector<8x128xf32>
      %280 = arith.divf %278, %279 : vector<8x128xf32>
      %281 = vector.extract_strided_slice %268 {offsets = [0, 256], sizes = [8, 128], strides = [1, 1]} : vector<8x512xf32> to vector<8x128xf32>
      %282 = math.tanh %281 : vector<8x128xf32>
      %283 = vector.extract_strided_slice %268 {offsets = [0, 384], sizes = [8, 128], strides = [1, 1]} : vector<8x512xf32> to vector<8x128xf32>
      %284 = arith.negf %283 : vector<8x128xf32>
      %285 = math.exp %284 : vector<8x128xf32>
      %cst_134 = arith.constant 1.000000e+00 : f32
      %286 = vector.broadcast %cst_134 : f32 to vector<8x128xf32>
      %287 = arith.addf %286, %285 : vector<8x128xf32>
      %288 = arith.divf %286, %287 : vector<8x128xf32>
      %289 = arith.mulf %280, %266 : vector<8x128xf32>
      %290 = arith.mulf %274, %282 : vector<8x128xf32>
      %291 = arith.addf %289, %290 : vector<8x128xf32>
      %292 = math.tanh %291 : vector<8x128xf32>
      %293 = arith.mulf %288, %292 : vector<8x128xf32>
      %cst_135 = arith.constant 0.000000e+00 : f32
      %294 = vector.broadcast %cst_135 : f32 to vector<8x1xf32>
      %295 = arith.cmpf ogt, %264, %294 : vector<8x1xf32>
      %296 = vector.shape_cast %295 : vector<8x1xi1> to vector<8x1xi1>
      %297 = vector.broadcast %296 : vector<8x1xi1> to vector<8x128xi1>
      %298 = arith.select %297, %293, %265 : vector<8x128xi1>, vector<8x128xf32>
      %c0_136 = arith.constant 0 : index
      %c0_137 = arith.constant 0 : index
      %299 = vector.load %arg6[%c0_136, %c0_137] : memref<8x128xf32, #tpu.memory_space<vmem>>, vector<8x128xf32>
      tpu.vector_store %arg6[%c0_136, %c0_137], %298 {strides = array<i32>} : memref<8x128xf32, #tpu.memory_space<vmem>>, vector<8x128xf32>,
      %300 = vector.shape_cast %295 : vector<8x1xi1> to vector<8x1xi1>
      %301 = vector.broadcast %300 : vector<8x1xi1> to vector<8x128xi1>
      %302 = arith.select %301, %291, %266 : vector<8x128xi1>, vector<8x128xf32>
      %c0_138 = arith.constant 0 : index
      %c0_139 = arith.constant 0 : index
      %303 = vector.load %arg7[%c0_138, %c0_139] : memref<8x128xf32, #tpu.memory_space<vmem>>, vector<8x128xf32>
      tpu.vector_store %arg7[%c0_138, %c0_139], %302 {strides = array<i32>} : memref<8x128xf32, #tpu.memory_space<vmem>>, vector<8x128xf32>,
      %cst_140 = arith.constant 0.000000e+00 : f32
      %304 = vector.shape_cast %295 : vector<8x1xi1> to vector<8x1xi1>
      %305 = vector.broadcast %304 : vector<8x1xi1> to vector<8x128xi1>
      %306 = vector.broadcast %cst_140 : f32 to vector<8x128xf32>
      %307 = arith.select %305, %293, %306 : vector<8x128xi1>, vector<8x128xf32>
      %c5_141 = arith.constant 5 : index
      %c0_142 = arith.constant 0 : index
      %c0_143 = arith.constant 0 : index
      %308 = vector.load %arg5[%c5_141, %c0_142, %c0_143] : memref<8x8x128xf32, #tpu.memory_space<vmem>>, vector<1x8x128xf32>
      %309 = vector.shape_cast %308 : vector<1x8x128xf32> to vector<8x128xf32>
      %310 = vector.shape_cast %307 : vector<8x128xf32> to vector<1x8x128xf32>
      tpu.vector_store %arg5[%c5_141, %c0_142, %c0_143], %310 {strides = array<i32>} : memref<8x8x128xf32, #tpu.memory_space<vmem>>, vector<1x8x128xf32>,
      %c0_144 = arith.constant 0 : index
      %c6 = arith.constant 6 : index
      %c0_145 = arith.constant 0 : index
      %c0_146 = arith.constant 0 : index
      %311 = vector.load %arg3[%c0_144, %c6, %c0_145, %c0_146] : memref<1x8x8x512xf32, #tpu.memory_space<vmem>>, vector<1x1x8x512xf32>
      %312 = vector.shape_cast %311 : vector<1x1x8x512xf32> to vector<8x512xf32>
      %c6_147 = arith.constant 6 : index
      %c0_148 = arith.constant 0 : index
      %c0_149 = arith.constant 0 : index
      %313 = vector.load %arg2[%c6_147, %c0_148, %c0_149] : memref<8x8x1xf32, #tpu.memory_space<vmem>>, vector<1x8x1xf32>
      %314 = vector.shape_cast %313 : vector<1x8x1xf32> to vector<8x1xf32>
      %c0_150 = arith.constant 0 : index
      %c0_151 = arith.constant 0 : index
      %315 = vector.load %arg6[%c0_150, %c0_151] : memref<8x128xf32, #tpu.memory_space<vmem>>, vector<8x128xf32>
      %c0_152 = arith.constant 0 : index
      %c0_153 = arith.constant 0 : index
      %316 = vector.load %arg7[%c0_152, %c0_153] : memref<8x128xf32, #tpu.memory_space<vmem>>, vector<8x128xf32>
      %cst_154 = arith.constant dense<0.000000e+00> : vector<8x512xf32>
      %317 = tpu.matmul %315, %4, %cst_154 {dimension_numbers = #tpu.dot_dimension_numbers<[1], [0], [0], [1], [0, 0, 1, 1], [], []>} : vector<8x128xf32>, vector<128x512xf32>, vector<8x512xf32> -> vector<8x512xf32>
      %318 = arith.addf %312, %317 : vector<8x512xf32>
      %319 = vector.extract_strided_slice %318 {offsets = [0, 0], sizes = [8, 128], strides = [1, 1]} : vector<8x512xf32> to vector<8x128xf32>
      %320 = arith.negf %319 : vector<8x128xf32>
      %321 = math.exp %320 : vector<8x128xf32>
      %cst_155 = arith.constant 1.000000e+00 : f32
      %322 = vector.broadcast %cst_155 : f32 to vector<8x128xf32>
      %323 = arith.addf %322, %321 : vector<8x128xf32>
      %324 = arith.divf %322, %323 : vector<8x128xf32>
      %325 = vector.extract_strided_slice %318 {offsets = [0, 128], sizes = [8, 128], strides = [1, 1]} : vector<8x512xf32> to vector<8x128xf32>
      %326 = arith.negf %325 : vector<8x128xf32>
      %327 = math.exp %326 : vector<8x128xf32>
      %cst_156 = arith.constant 1.000000e+00 : f32
      %328 = vector.broadcast %cst_156 : f32 to vector<8x128xf32>
      %329 = arith.addf %328, %327 : vector<8x128xf32>
      %330 = arith.divf %328, %329 : vector<8x128xf32>
      %331 = vector.extract_strided_slice %318 {offsets = [0, 256], sizes = [8, 128], strides = [1, 1]} : vector<8x512xf32> to vector<8x128xf32>
      %332 = math.tanh %331 : vector<8x128xf32>
      %333 = vector.extract_strided_slice %318 {offsets = [0, 384], sizes = [8, 128], strides = [1, 1]} : vector<8x512xf32> to vector<8x128xf32>
      %334 = arith.negf %333 : vector<8x128xf32>
      %335 = math.exp %334 : vector<8x128xf32>
      %cst_157 = arith.constant 1.000000e+00 : f32
      %336 = vector.broadcast %cst_157 : f32 to vector<8x128xf32>
      %337 = arith.addf %336, %335 : vector<8x128xf32>
      %338 = arith.divf %336, %337 : vector<8x128xf32>
      %339 = arith.mulf %330, %316 : vector<8x128xf32>
      %340 = arith.mulf %324, %332 : vector<8x128xf32>
      %341 = arith.addf %339, %340 : vector<8x128xf32>
      %342 = math.tanh %341 : vector<8x128xf32>
      %343 = arith.mulf %338, %342 : vector<8x128xf32>
      %cst_158 = arith.constant 0.000000e+00 : f32
      %344 = vector.broadcast %cst_158 : f32 to vector<8x1xf32>
      %345 = arith.cmpf ogt, %314, %344 : vector<8x1xf32>
      %346 = vector.shape_cast %345 : vector<8x1xi1> to vector<8x1xi1>
      %347 = vector.broadcast %346 : vector<8x1xi1> to vector<8x128xi1>
      %348 = arith.select %347, %343, %315 : vector<8x128xi1>, vector<8x128xf32>
      %c0_159 = arith.constant 0 : index
      %c0_160 = arith.constant 0 : index
      %349 = vector.load %arg6[%c0_159, %c0_160] : memref<8x128xf32, #tpu.memory_space<vmem>>, vector<8x128xf32>
      tpu.vector_store %arg6[%c0_159, %c0_160], %348 {strides = array<i32>} : memref<8x128xf32, #tpu.memory_space<vmem>>, vector<8x128xf32>,
      %350 = vector.shape_cast %345 : vector<8x1xi1> to vector<8x1xi1>
      %351 = vector.broadcast %350 : vector<8x1xi1> to vector<8x128xi1>
      %352 = arith.select %351, %341, %316 : vector<8x128xi1>, vector<8x128xf32>
      %c0_161 = arith.constant 0 : index
      %c0_162 = arith.constant 0 : index
      %353 = vector.load %arg7[%c0_161, %c0_162] : memref<8x128xf32, #tpu.memory_space<vmem>>, vector<8x128xf32>
      tpu.vector_store %arg7[%c0_161, %c0_162], %352 {strides = array<i32>} : memref<8x128xf32, #tpu.memory_space<vmem>>, vector<8x128xf32>,
      %cst_163 = arith.constant 0.000000e+00 : f32
      %354 = vector.shape_cast %345 : vector<8x1xi1> to vector<8x1xi1>
      %355 = vector.broadcast %354 : vector<8x1xi1> to vector<8x128xi1>
      %356 = vector.broadcast %cst_163 : f32 to vector<8x128xf32>
      %357 = arith.select %355, %343, %356 : vector<8x128xi1>, vector<8x128xf32>
      %c6_164 = arith.constant 6 : index
      %c0_165 = arith.constant 0 : index
      %c0_166 = arith.constant 0 : index
      %358 = vector.load %arg5[%c6_164, %c0_165, %c0_166] : memref<8x8x128xf32, #tpu.memory_space<vmem>>, vector<1x8x128xf32>
      %359 = vector.shape_cast %358 : vector<1x8x128xf32> to vector<8x128xf32>
      %360 = vector.shape_cast %357 : vector<8x128xf32> to vector<1x8x128xf32>
      tpu.vector_store %arg5[%c6_164, %c0_165, %c0_166], %360 {strides = array<i32>} : memref<8x8x128xf32, #tpu.memory_space<vmem>>, vector<1x8x128xf32>,
      %c0_167 = arith.constant 0 : index
      %c7 = arith.constant 7 : index
      %c0_168 = arith.constant 0 : index
      %c0_169 = arith.constant 0 : index
      %361 = vector.load %arg3[%c0_167, %c7, %c0_168, %c0_169] : memref<1x8x8x512xf32, #tpu.memory_space<vmem>>, vector<1x1x8x512xf32>
      %362 = vector.shape_cast %361 : vector<1x1x8x512xf32> to vector<8x512xf32>
      %c7_170 = arith.constant 7 : index
      %c0_171 = arith.constant 0 : index
      %c0_172 = arith.constant 0 : index
      %363 = vector.load %arg2[%c7_170, %c0_171, %c0_172] : memref<8x8x1xf32, #tpu.memory_space<vmem>>, vector<1x8x1xf32>
      %364 = vector.shape_cast %363 : vector<1x8x1xf32> to vector<8x1xf32>
      %c0_173 = arith.constant 0 : index
      %c0_174 = arith.constant 0 : index
      %365 = vector.load %arg6[%c0_173, %c0_174] : memref<8x128xf32, #tpu.memory_space<vmem>>, vector<8x128xf32>
      %c0_175 = arith.constant 0 : index
      %c0_176 = arith.constant 0 : index
      %366 = vector.load %arg7[%c0_175, %c0_176] : memref<8x128xf32, #tpu.memory_space<vmem>>, vector<8x128xf32>
      %cst_177 = arith.constant dense<0.000000e+00> : vector<8x512xf32>
      %367 = tpu.matmul %365, %4, %cst_177 {dimension_numbers = #tpu.dot_dimension_numbers<[1], [0], [0], [1], [0, 0, 1, 1], [], []>} : vector<8x128xf32>, vector<128x512xf32>, vector<8x512xf32> -> vector<8x512xf32>
      %368 = arith.addf %362, %367 : vector<8x512xf32>
      %369 = vector.extract_strided_slice %368 {offsets = [0, 0], sizes = [8, 128], strides = [1, 1]} : vector<8x512xf32> to vector<8x128xf32>
      %370 = arith.negf %369 : vector<8x128xf32>
      %371 = math.exp %370 : vector<8x128xf32>
      %cst_178 = arith.constant 1.000000e+00 : f32
      %372 = vector.broadcast %cst_178 : f32 to vector<8x128xf32>
      %373 = arith.addf %372, %371 : vector<8x128xf32>
      %374 = arith.divf %372, %373 : vector<8x128xf32>
      %375 = vector.extract_strided_slice %368 {offsets = [0, 128], sizes = [8, 128], strides = [1, 1]} : vector<8x512xf32> to vector<8x128xf32>
      %376 = arith.negf %375 : vector<8x128xf32>
      %377 = math.exp %376 : vector<8x128xf32>
      %cst_179 = arith.constant 1.000000e+00 : f32
      %378 = vector.broadcast %cst_179 : f32 to vector<8x128xf32>
      %379 = arith.addf %378, %377 : vector<8x128xf32>
      %380 = arith.divf %378, %379 : vector<8x128xf32>
      %381 = vector.extract_strided_slice %368 {offsets = [0, 256], sizes = [8, 128], strides = [1, 1]} : vector<8x512xf32> to vector<8x128xf32>
      %382 = math.tanh %381 : vector<8x128xf32>
      %383 = vector.extract_strided_slice %368 {offsets = [0, 384], sizes = [8, 128], strides = [1, 1]} : vector<8x512xf32> to vector<8x128xf32>
      %384 = arith.negf %383 : vector<8x128xf32>
      %385 = math.exp %384 : vector<8x128xf32>
      %cst_180 = arith.constant 1.000000e+00 : f32
      %386 = vector.broadcast %cst_180 : f32 to vector<8x128xf32>
      %387 = arith.addf %386, %385 : vector<8x128xf32>
      %388 = arith.divf %386, %387 : vector<8x128xf32>
      %389 = arith.mulf %380, %366 : vector<8x128xf32>
      %390 = arith.mulf %374, %382 : vector<8x128xf32>
      %391 = arith.addf %389, %390 : vector<8x128xf32>
      %392 = math.tanh %391 : vector<8x128xf32>
      %393 = arith.mulf %388, %392 : vector<8x128xf32>
      %cst_181 = arith.constant 0.000000e+00 : f32
      %394 = vector.broadcast %cst_181 : f32 to vector<8x1xf32>
      %395 = arith.cmpf ogt, %364, %394 : vector<8x1xf32>
      %396 = vector.shape_cast %395 : vector<8x1xi1> to vector<8x1xi1>
      %397 = vector.broadcast %396 : vector<8x1xi1> to vector<8x128xi1>
      %398 = arith.select %397, %393, %365 : vector<8x128xi1>, vector<8x128xf32>
      %c0_182 = arith.constant 0 : index
      %c0_183 = arith.constant 0 : index
      %399 = vector.load %arg6[%c0_182, %c0_183] : memref<8x128xf32, #tpu.memory_space<vmem>>, vector<8x128xf32>
      tpu.vector_store %arg6[%c0_182, %c0_183], %398 {strides = array<i32>} : memref<8x128xf32, #tpu.memory_space<vmem>>, vector<8x128xf32>,
      %400 = vector.shape_cast %395 : vector<8x1xi1> to vector<8x1xi1>
      %401 = vector.broadcast %400 : vector<8x1xi1> to vector<8x128xi1>
      %402 = arith.select %401, %391, %366 : vector<8x128xi1>, vector<8x128xf32>
      %c0_184 = arith.constant 0 : index
      %c0_185 = arith.constant 0 : index
      %403 = vector.load %arg7[%c0_184, %c0_185] : memref<8x128xf32, #tpu.memory_space<vmem>>, vector<8x128xf32>
      tpu.vector_store %arg7[%c0_184, %c0_185], %402 {strides = array<i32>} : memref<8x128xf32, #tpu.memory_space<vmem>>, vector<8x128xf32>,
      %cst_186 = arith.constant 0.000000e+00 : f32
      %404 = vector.shape_cast %395 : vector<8x1xi1> to vector<8x1xi1>
      %405 = vector.broadcast %404 : vector<8x1xi1> to vector<8x128xi1>
      %406 = vector.broadcast %cst_186 : f32 to vector<8x128xf32>
      %407 = arith.select %405, %393, %406 : vector<8x128xi1>, vector<8x128xf32>
      %c7_187 = arith.constant 7 : index
      %c0_188 = arith.constant 0 : index
      %c0_189 = arith.constant 0 : index
      %408 = vector.load %arg5[%c7_187, %c0_188, %c0_189] : memref<8x8x128xf32, #tpu.memory_space<vmem>>, vector<1x8x128xf32>
      %409 = vector.shape_cast %408 : vector<1x8x128xf32> to vector<8x128xf32>
      %410 = vector.shape_cast %407 : vector<8x128xf32> to vector<1x8x128xf32>
      tpu.vector_store %arg5[%c7_187, %c0_188, %c0_189], %410 {strides = array<i32>} : memref<8x8x128xf32, #tpu.memory_space<vmem>>, vector<1x8x128xf32>,
    } else {
    }
    %c1_i32 = arith.constant 1 : i32
    %8 = arith.cmpi eq, %arg0, %c1_i32 : i32
    %9 = arith.extui %8 : i1 to i32
    %c0_i32_5 = arith.constant 0 : i32
    %10 = arith.cmpi ne, %9, %c0_i32_5 : i32
    scf.if %10 {
      %c0_6 = arith.constant 0 : index
      %c7 = arith.constant 7 : index
      %c0_7 = arith.constant 0 : index
      %c0_8 = arith.constant 0 : index
      %11 = vector.load %arg3[%c0_6, %c7, %c0_7, %c0_8] : memref<1x8x8x512xf32, #tpu.memory_space<vmem>>, vector<1x1x8x512xf32>
      %12 = vector.shape_cast %11 : vector<1x1x8x512xf32> to vector<8x512xf32>
      %c7_9 = arith.constant 7 : index
      %c0_10 = arith.constant 0 : index
      %c0_11 = arith.constant 0 : index
      %13 = vector.load %arg2[%c7_9, %c0_10, %c0_11] : memref<8x8x1xf32, #tpu.memory_space<vmem>>, vector<1x8x1xf32>
      %14 = vector.shape_cast %13 : vector<1x8x1xf32> to vector<8x1xf32>
      %c0_12 = arith.constant 0 : index
      %c0_13 = arith.constant 0 : index
      %15 = vector.load %arg6[%c0_12, %c0_13] : memref<8x128xf32, #tpu.memory_space<vmem>>, vector<8x128xf32>
      %c0_14 = arith.constant 0 : index
      %c0_15 = arith.constant 0 : index
      %16 = vector.load %arg7[%c0_14, %c0_15] : memref<8x128xf32, #tpu.memory_space<vmem>>, vector<8x128xf32>
      %cst = arith.constant dense<0.000000e+00> : vector<8x512xf32>
      %17 = tpu.matmul %15, %4, %cst {dimension_numbers = #tpu.dot_dimension_numbers<[1], [0], [0], [1], [0, 0, 1, 1], [], []>} : vector<8x128xf32>, vector<128x512xf32>, vector<8x512xf32> -> vector<8x512xf32>
      %18 = arith.addf %12, %17 : vector<8x512xf32>
      %19 = vector.extract_strided_slice %18 {offsets = [0, 0], sizes = [8, 128], strides = [1, 1]} : vector<8x512xf32> to vector<8x128xf32>
      %20 = arith.negf %19 : vector<8x128xf32>
      %21 = math.exp %20 : vector<8x128xf32>
      %cst_16 = arith.constant 1.000000e+00 : f32
      %22 = vector.broadcast %cst_16 : f32 to vector<8x128xf32>
      %23 = arith.addf %22, %21 : vector<8x128xf32>
      %24 = arith.divf %22, %23 : vector<8x128xf32>
      %25 = vector.extract_strided_slice %18 {offsets = [0, 128], sizes = [8, 128], strides = [1, 1]} : vector<8x512xf32> to vector<8x128xf32>
      %26 = arith.negf %25 : vector<8x128xf32>
      %27 = math.exp %26 : vector<8x128xf32>
      %cst_17 = arith.constant 1.000000e+00 : f32
      %28 = vector.broadcast %cst_17 : f32 to vector<8x128xf32>
      %29 = arith.addf %28, %27 : vector<8x128xf32>
      %30 = arith.divf %28, %29 : vector<8x128xf32>
      %31 = vector.extract_strided_slice %18 {offsets = [0, 256], sizes = [8, 128], strides = [1, 1]} : vector<8x512xf32> to vector<8x128xf32>
      %32 = math.tanh %31 : vector<8x128xf32>
      %33 = vector.extract_strided_slice %18 {offsets = [0, 384], sizes = [8, 128], strides = [1, 1]} : vector<8x512xf32> to vector<8x128xf32>
      %34 = arith.negf %33 : vector<8x128xf32>
      %35 = math.exp %34 : vector<8x128xf32>
      %cst_18 = arith.constant 1.000000e+00 : f32
      %36 = vector.broadcast %cst_18 : f32 to vector<8x128xf32>
      %37 = arith.addf %36, %35 : vector<8x128xf32>
      %38 = arith.divf %36, %37 : vector<8x128xf32>
      %39 = arith.mulf %30, %16 : vector<8x128xf32>
      %40 = arith.mulf %24, %32 : vector<8x128xf32>
      %41 = arith.addf %39, %40 : vector<8x128xf32>
      %42 = math.tanh %41 : vector<8x128xf32>
      %43 = arith.mulf %38, %42 : vector<8x128xf32>
      %cst_19 = arith.constant 0.000000e+00 : f32
      %44 = vector.broadcast %cst_19 : f32 to vector<8x1xf32>
      %45 = arith.cmpf ogt, %14, %44 : vector<8x1xf32>
      %46 = vector.shape_cast %45 : vector<8x1xi1> to vector<8x1xi1>
      %47 = vector.broadcast %46 : vector<8x1xi1> to vector<8x128xi1>
      %48 = arith.select %47, %43, %15 : vector<8x128xi1>, vector<8x128xf32>
      %c0_20 = arith.constant 0 : index
      %c0_21 = arith.constant 0 : index
      %49 = vector.load %arg6[%c0_20, %c0_21] : memref<8x128xf32, #tpu.memory_space<vmem>>, vector<8x128xf32>
      tpu.vector_store %arg6[%c0_20, %c0_21], %48 {strides = array<i32>} : memref<8x128xf32, #tpu.memory_space<vmem>>, vector<8x128xf32>,
      %50 = vector.shape_cast %45 : vector<8x1xi1> to vector<8x1xi1>
      %51 = vector.broadcast %50 : vector<8x1xi1> to vector<8x128xi1>
      %52 = arith.select %51, %41, %16 : vector<8x128xi1>, vector<8x128xf32>
      %c0_22 = arith.constant 0 : index
      %c0_23 = arith.constant 0 : index
      %53 = vector.load %arg7[%c0_22, %c0_23] : memref<8x128xf32, #tpu.memory_space<vmem>>, vector<8x128xf32>
      tpu.vector_store %arg7[%c0_22, %c0_23], %52 {strides = array<i32>} : memref<8x128xf32, #tpu.memory_space<vmem>>, vector<8x128xf32>,
      %cst_24 = arith.constant 0.000000e+00 : f32
      %54 = vector.shape_cast %45 : vector<8x1xi1> to vector<8x1xi1>
      %55 = vector.broadcast %54 : vector<8x1xi1> to vector<8x128xi1>
      %56 = vector.broadcast %cst_24 : f32 to vector<8x128xf32>
      %57 = arith.select %55, %43, %56 : vector<8x128xi1>, vector<8x128xf32>
      %c7_25 = arith.constant 7 : index
      %c0_26 = arith.constant 0 : index
      %c0_27 = arith.constant 0 : index
      %58 = vector.load %arg5[%c7_25, %c0_26, %c0_27] : memref<8x8x128xf32, #tpu.memory_space<vmem>>, vector<1x8x128xf32>
      %59 = vector.shape_cast %58 : vector<1x8x128xf32> to vector<8x128xf32>
      %60 = vector.shape_cast %57 : vector<8x128xf32> to vector<1x8x128xf32>
      tpu.vector_store %arg5[%c7_25, %c0_26, %c0_27], %60 {strides = array<i32>} : memref<8x8x128xf32, #tpu.memory_space<vmem>>, vector<1x8x128xf32>,
      %c0_28 = arith.constant 0 : index
      %c6 = arith.constant 6 : index
      %c0_29 = arith.constant 0 : index
      %c0_30 = arith.constant 0 : index
      %61 = vector.load %arg3[%c0_28, %c6, %c0_29, %c0_30] : memref<1x8x8x512xf32, #tpu.memory_space<vmem>>, vector<1x1x8x512xf32>
      %62 = vector.shape_cast %61 : vector<1x1x8x512xf32> to vector<8x512xf32>
      %c6_31 = arith.constant 6 : index
      %c0_32 = arith.constant 0 : index
      %c0_33 = arith.constant 0 : index
      %63 = vector.load %arg2[%c6_31, %c0_32, %c0_33] : memref<8x8x1xf32, #tpu.memory_space<vmem>>, vector<1x8x1xf32>
      %64 = vector.shape_cast %63 : vector<1x8x1xf32> to vector<8x1xf32>
      %c0_34 = arith.constant 0 : index
      %c0_35 = arith.constant 0 : index
      %65 = vector.load %arg6[%c0_34, %c0_35] : memref<8x128xf32, #tpu.memory_space<vmem>>, vector<8x128xf32>
      %c0_36 = arith.constant 0 : index
      %c0_37 = arith.constant 0 : index
      %66 = vector.load %arg7[%c0_36, %c0_37] : memref<8x128xf32, #tpu.memory_space<vmem>>, vector<8x128xf32>
      %cst_38 = arith.constant dense<0.000000e+00> : vector<8x512xf32>
      %67 = tpu.matmul %65, %4, %cst_38 {dimension_numbers = #tpu.dot_dimension_numbers<[1], [0], [0], [1], [0, 0, 1, 1], [], []>} : vector<8x128xf32>, vector<128x512xf32>, vector<8x512xf32> -> vector<8x512xf32>
      %68 = arith.addf %62, %67 : vector<8x512xf32>
      %69 = vector.extract_strided_slice %68 {offsets = [0, 0], sizes = [8, 128], strides = [1, 1]} : vector<8x512xf32> to vector<8x128xf32>
      %70 = arith.negf %69 : vector<8x128xf32>
      %71 = math.exp %70 : vector<8x128xf32>
      %cst_39 = arith.constant 1.000000e+00 : f32
      %72 = vector.broadcast %cst_39 : f32 to vector<8x128xf32>
      %73 = arith.addf %72, %71 : vector<8x128xf32>
      %74 = arith.divf %72, %73 : vector<8x128xf32>
      %75 = vector.extract_strided_slice %68 {offsets = [0, 128], sizes = [8, 128], strides = [1, 1]} : vector<8x512xf32> to vector<8x128xf32>
      %76 = arith.negf %75 : vector<8x128xf32>
      %77 = math.exp %76 : vector<8x128xf32>
      %cst_40 = arith.constant 1.000000e+00 : f32
      %78 = vector.broadcast %cst_40 : f32 to vector<8x128xf32>
      %79 = arith.addf %78, %77 : vector<8x128xf32>
      %80 = arith.divf %78, %79 : vector<8x128xf32>
      %81 = vector.extract_strided_slice %68 {offsets = [0, 256], sizes = [8, 128], strides = [1, 1]} : vector<8x512xf32> to vector<8x128xf32>
      %82 = math.tanh %81 : vector<8x128xf32>
      %83 = vector.extract_strided_slice %68 {offsets = [0, 384], sizes = [8, 128], strides = [1, 1]} : vector<8x512xf32> to vector<8x128xf32>
      %84 = arith.negf %83 : vector<8x128xf32>
      %85 = math.exp %84 : vector<8x128xf32>
      %cst_41 = arith.constant 1.000000e+00 : f32
      %86 = vector.broadcast %cst_41 : f32 to vector<8x128xf32>
      %87 = arith.addf %86, %85 : vector<8x128xf32>
      %88 = arith.divf %86, %87 : vector<8x128xf32>
      %89 = arith.mulf %80, %66 : vector<8x128xf32>
      %90 = arith.mulf %74, %82 : vector<8x128xf32>
      %91 = arith.addf %89, %90 : vector<8x128xf32>
      %92 = math.tanh %91 : vector<8x128xf32>
      %93 = arith.mulf %88, %92 : vector<8x128xf32>
      %cst_42 = arith.constant 0.000000e+00 : f32
      %94 = vector.broadcast %cst_42 : f32 to vector<8x1xf32>
      %95 = arith.cmpf ogt, %64, %94 : vector<8x1xf32>
      %96 = vector.shape_cast %95 : vector<8x1xi1> to vector<8x1xi1>
      %97 = vector.broadcast %96 : vector<8x1xi1> to vector<8x128xi1>
      %98 = arith.select %97, %93, %65 : vector<8x128xi1>, vector<8x128xf32>
      %c0_43 = arith.constant 0 : index
      %c0_44 = arith.constant 0 : index
      %99 = vector.load %arg6[%c0_43, %c0_44] : memref<8x128xf32, #tpu.memory_space<vmem>>, vector<8x128xf32>
      tpu.vector_store %arg6[%c0_43, %c0_44], %98 {strides = array<i32>} : memref<8x128xf32, #tpu.memory_space<vmem>>, vector<8x128xf32>,
      %100 = vector.shape_cast %95 : vector<8x1xi1> to vector<8x1xi1>
      %101 = vector.broadcast %100 : vector<8x1xi1> to vector<8x128xi1>
      %102 = arith.select %101, %91, %66 : vector<8x128xi1>, vector<8x128xf32>
      %c0_45 = arith.constant 0 : index
      %c0_46 = arith.constant 0 : index
      %103 = vector.load %arg7[%c0_45, %c0_46] : memref<8x128xf32, #tpu.memory_space<vmem>>, vector<8x128xf32>
      tpu.vector_store %arg7[%c0_45, %c0_46], %102 {strides = array<i32>} : memref<8x128xf32, #tpu.memory_space<vmem>>, vector<8x128xf32>,
      %cst_47 = arith.constant 0.000000e+00 : f32
      %104 = vector.shape_cast %95 : vector<8x1xi1> to vector<8x1xi1>
      %105 = vector.broadcast %104 : vector<8x1xi1> to vector<8x128xi1>
      %106 = vector.broadcast %cst_47 : f32 to vector<8x128xf32>
      %107 = arith.select %105, %93, %106 : vector<8x128xi1>, vector<8x128xf32>
      %c6_48 = arith.constant 6 : index
      %c0_49 = arith.constant 0 : index
      %c0_50 = arith.constant 0 : index
      %108 = vector.load %arg5[%c6_48, %c0_49, %c0_50] : memref<8x8x128xf32, #tpu.memory_space<vmem>>, vector<1x8x128xf32>
      %109 = vector.shape_cast %108 : vector<1x8x128xf32> to vector<8x128xf32>
      %110 = vector.shape_cast %107 : vector<8x128xf32> to vector<1x8x128xf32>
      tpu.vector_store %arg5[%c6_48, %c0_49, %c0_50], %110 {strides = array<i32>} : memref<8x8x128xf32, #tpu.memory_space<vmem>>, vector<1x8x128xf32>,
      %c0_51 = arith.constant 0 : index
      %c5 = arith.constant 5 : index
      %c0_52 = arith.constant 0 : index
      %c0_53 = arith.constant 0 : index
      %111 = vector.load %arg3[%c0_51, %c5, %c0_52, %c0_53] : memref<1x8x8x512xf32, #tpu.memory_space<vmem>>, vector<1x1x8x512xf32>
      %112 = vector.shape_cast %111 : vector<1x1x8x512xf32> to vector<8x512xf32>
      %c5_54 = arith.constant 5 : index
      %c0_55 = arith.constant 0 : index
      %c0_56 = arith.constant 0 : index
      %113 = vector.load %arg2[%c5_54, %c0_55, %c0_56] : memref<8x8x1xf32, #tpu.memory_space<vmem>>, vector<1x8x1xf32>
      %114 = vector.shape_cast %113 : vector<1x8x1xf32> to vector<8x1xf32>
      %c0_57 = arith.constant 0 : index
      %c0_58 = arith.constant 0 : index
      %115 = vector.load %arg6[%c0_57, %c0_58] : memref<8x128xf32, #tpu.memory_space<vmem>>, vector<8x128xf32>
      %c0_59 = arith.constant 0 : index
      %c0_60 = arith.constant 0 : index
      %116 = vector.load %arg7[%c0_59, %c0_60] : memref<8x128xf32, #tpu.memory_space<vmem>>, vector<8x128xf32>
      %cst_61 = arith.constant dense<0.000000e+00> : vector<8x512xf32>
      %117 = tpu.matmul %115, %4, %cst_61 {dimension_numbers = #tpu.dot_dimension_numbers<[1], [0], [0], [1], [0, 0, 1, 1], [], []>} : vector<8x128xf32>, vector<128x512xf32>, vector<8x512xf32> -> vector<8x512xf32>
      %118 = arith.addf %112, %117 : vector<8x512xf32>
      %119 = vector.extract_strided_slice %118 {offsets = [0, 0], sizes = [8, 128], strides = [1, 1]} : vector<8x512xf32> to vector<8x128xf32>
      %120 = arith.negf %119 : vector<8x128xf32>
      %121 = math.exp %120 : vector<8x128xf32>
      %cst_62 = arith.constant 1.000000e+00 : f32
      %122 = vector.broadcast %cst_62 : f32 to vector<8x128xf32>
      %123 = arith.addf %122, %121 : vector<8x128xf32>
      %124 = arith.divf %122, %123 : vector<8x128xf32>
      %125 = vector.extract_strided_slice %118 {offsets = [0, 128], sizes = [8, 128], strides = [1, 1]} : vector<8x512xf32> to vector<8x128xf32>
      %126 = arith.negf %125 : vector<8x128xf32>
      %127 = math.exp %126 : vector<8x128xf32>
      %cst_63 = arith.constant 1.000000e+00 : f32
      %128 = vector.broadcast %cst_63 : f32 to vector<8x128xf32>
      %129 = arith.addf %128, %127 : vector<8x128xf32>
      %130 = arith.divf %128, %129 : vector<8x128xf32>
      %131 = vector.extract_strided_slice %118 {offsets = [0, 256], sizes = [8, 128], strides = [1, 1]} : vector<8x512xf32> to vector<8x128xf32>
      %132 = math.tanh %131 : vector<8x128xf32>
      %133 = vector.extract_strided_slice %118 {offsets = [0, 384], sizes = [8, 128], strides = [1, 1]} : vector<8x512xf32> to vector<8x128xf32>
      %134 = arith.negf %133 : vector<8x128xf32>
      %135 = math.exp %134 : vector<8x128xf32>
      %cst_64 = arith.constant 1.000000e+00 : f32
      %136 = vector.broadcast %cst_64 : f32 to vector<8x128xf32>
      %137 = arith.addf %136, %135 : vector<8x128xf32>
      %138 = arith.divf %136, %137 : vector<8x128xf32>
      %139 = arith.mulf %130, %116 : vector<8x128xf32>
      %140 = arith.mulf %124, %132 : vector<8x128xf32>
      %141 = arith.addf %139, %140 : vector<8x128xf32>
      %142 = math.tanh %141 : vector<8x128xf32>
      %143 = arith.mulf %138, %142 : vector<8x128xf32>
      %cst_65 = arith.constant 0.000000e+00 : f32
      %144 = vector.broadcast %cst_65 : f32 to vector<8x1xf32>
      %145 = arith.cmpf ogt, %114, %144 : vector<8x1xf32>
      %146 = vector.shape_cast %145 : vector<8x1xi1> to vector<8x1xi1>
      %147 = vector.broadcast %146 : vector<8x1xi1> to vector<8x128xi1>
      %148 = arith.select %147, %143, %115 : vector<8x128xi1>, vector<8x128xf32>
      %c0_66 = arith.constant 0 : index
      %c0_67 = arith.constant 0 : index
      %149 = vector.load %arg6[%c0_66, %c0_67] : memref<8x128xf32, #tpu.memory_space<vmem>>, vector<8x128xf32>
      tpu.vector_store %arg6[%c0_66, %c0_67], %148 {strides = array<i32>} : memref<8x128xf32, #tpu.memory_space<vmem>>, vector<8x128xf32>,
      %150 = vector.shape_cast %145 : vector<8x1xi1> to vector<8x1xi1>
      %151 = vector.broadcast %150 : vector<8x1xi1> to vector<8x128xi1>
      %152 = arith.select %151, %141, %116 : vector<8x128xi1>, vector<8x128xf32>
      %c0_68 = arith.constant 0 : index
      %c0_69 = arith.constant 0 : index
      %153 = vector.load %arg7[%c0_68, %c0_69] : memref<8x128xf32, #tpu.memory_space<vmem>>, vector<8x128xf32>
      tpu.vector_store %arg7[%c0_68, %c0_69], %152 {strides = array<i32>} : memref<8x128xf32, #tpu.memory_space<vmem>>, vector<8x128xf32>,
      %cst_70 = arith.constant 0.000000e+00 : f32
      %154 = vector.shape_cast %145 : vector<8x1xi1> to vector<8x1xi1>
      %155 = vector.broadcast %154 : vector<8x1xi1> to vector<8x128xi1>
      %156 = vector.broadcast %cst_70 : f32 to vector<8x128xf32>
      %157 = arith.select %155, %143, %156 : vector<8x128xi1>, vector<8x128xf32>
      %c5_71 = arith.constant 5 : index
      %c0_72 = arith.constant 0 : index
      %c0_73 = arith.constant 0 : index
      %158 = vector.load %arg5[%c5_71, %c0_72, %c0_73] : memref<8x8x128xf32, #tpu.memory_space<vmem>>, vector<1x8x128xf32>
      %159 = vector.shape_cast %158 : vector<1x8x128xf32> to vector<8x128xf32>
      %160 = vector.shape_cast %157 : vector<8x128xf32> to vector<1x8x128xf32>
      tpu.vector_store %arg5[%c5_71, %c0_72, %c0_73], %160 {strides = array<i32>} : memref<8x8x128xf32, #tpu.memory_space<vmem>>, vector<1x8x128xf32>,
      %c0_74 = arith.constant 0 : index
      %c4 = arith.constant 4 : index
      %c0_75 = arith.constant 0 : index
      %c0_76 = arith.constant 0 : index
      %161 = vector.load %arg3[%c0_74, %c4, %c0_75, %c0_76] : memref<1x8x8x512xf32, #tpu.memory_space<vmem>>, vector<1x1x8x512xf32>
      %162 = vector.shape_cast %161 : vector<1x1x8x512xf32> to vector<8x512xf32>
      %c4_77 = arith.constant 4 : index
      %c0_78 = arith.constant 0 : index
      %c0_79 = arith.constant 0 : index
      %163 = vector.load %arg2[%c4_77, %c0_78, %c0_79] : memref<8x8x1xf32, #tpu.memory_space<vmem>>, vector<1x8x1xf32>
      %164 = vector.shape_cast %163 : vector<1x8x1xf32> to vector<8x1xf32>
      %c0_80 = arith.constant 0 : index
      %c0_81 = arith.constant 0 : index
      %165 = vector.load %arg6[%c0_80, %c0_81] : memref<8x128xf32, #tpu.memory_space<vmem>>, vector<8x128xf32>
      %c0_82 = arith.constant 0 : index
      %c0_83 = arith.constant 0 : index
      %166 = vector.load %arg7[%c0_82, %c0_83] : memref<8x128xf32, #tpu.memory_space<vmem>>, vector<8x128xf32>
      %cst_84 = arith.constant dense<0.000000e+00> : vector<8x512xf32>
      %167 = tpu.matmul %165, %4, %cst_84 {dimension_numbers = #tpu.dot_dimension_numbers<[1], [0], [0], [1], [0, 0, 1, 1], [], []>} : vector<8x128xf32>, vector<128x512xf32>, vector<8x512xf32> -> vector<8x512xf32>
      %168 = arith.addf %162, %167 : vector<8x512xf32>
      %169 = vector.extract_strided_slice %168 {offsets = [0, 0], sizes = [8, 128], strides = [1, 1]} : vector<8x512xf32> to vector<8x128xf32>
      %170 = arith.negf %169 : vector<8x128xf32>
      %171 = math.exp %170 : vector<8x128xf32>
      %cst_85 = arith.constant 1.000000e+00 : f32
      %172 = vector.broadcast %cst_85 : f32 to vector<8x128xf32>
      %173 = arith.addf %172, %171 : vector<8x128xf32>
      %174 = arith.divf %172, %173 : vector<8x128xf32>
      %175 = vector.extract_strided_slice %168 {offsets = [0, 128], sizes = [8, 128], strides = [1, 1]} : vector<8x512xf32> to vector<8x128xf32>
      %176 = arith.negf %175 : vector<8x128xf32>
      %177 = math.exp %176 : vector<8x128xf32>
      %cst_86 = arith.constant 1.000000e+00 : f32
      %178 = vector.broadcast %cst_86 : f32 to vector<8x128xf32>
      %179 = arith.addf %178, %177 : vector<8x128xf32>
      %180 = arith.divf %178, %179 : vector<8x128xf32>
      %181 = vector.extract_strided_slice %168 {offsets = [0, 256], sizes = [8, 128], strides = [1, 1]} : vector<8x512xf32> to vector<8x128xf32>
      %182 = math.tanh %181 : vector<8x128xf32>
      %183 = vector.extract_strided_slice %168 {offsets = [0, 384], sizes = [8, 128], strides = [1, 1]} : vector<8x512xf32> to vector<8x128xf32>
      %184 = arith.negf %183 : vector<8x128xf32>
      %185 = math.exp %184 : vector<8x128xf32>
      %cst_87 = arith.constant 1.000000e+00 : f32
      %186 = vector.broadcast %cst_87 : f32 to vector<8x128xf32>
      %187 = arith.addf %186, %185 : vector<8x128xf32>
      %188 = arith.divf %186, %187 : vector<8x128xf32>
      %189 = arith.mulf %180, %166 : vector<8x128xf32>
      %190 = arith.mulf %174, %182 : vector<8x128xf32>
      %191 = arith.addf %189, %190 : vector<8x128xf32>
      %192 = math.tanh %191 : vector<8x128xf32>
      %193 = arith.mulf %188, %192 : vector<8x128xf32>
      %cst_88 = arith.constant 0.000000e+00 : f32
      %194 = vector.broadcast %cst_88 : f32 to vector<8x1xf32>
      %195 = arith.cmpf ogt, %164, %194 : vector<8x1xf32>
      %196 = vector.shape_cast %195 : vector<8x1xi1> to vector<8x1xi1>
      %197 = vector.broadcast %196 : vector<8x1xi1> to vector<8x128xi1>
      %198 = arith.select %197, %193, %165 : vector<8x128xi1>, vector<8x128xf32>
      %c0_89 = arith.constant 0 : index
      %c0_90 = arith.constant 0 : index
      %199 = vector.load %arg6[%c0_89, %c0_90] : memref<8x128xf32, #tpu.memory_space<vmem>>, vector<8x128xf32>
      tpu.vector_store %arg6[%c0_89, %c0_90], %198 {strides = array<i32>} : memref<8x128xf32, #tpu.memory_space<vmem>>, vector<8x128xf32>,
      %200 = vector.shape_cast %195 : vector<8x1xi1> to vector<8x1xi1>
      %201 = vector.broadcast %200 : vector<8x1xi1> to vector<8x128xi1>
      %202 = arith.select %201, %191, %166 : vector<8x128xi1>, vector<8x128xf32>
      %c0_91 = arith.constant 0 : index
      %c0_92 = arith.constant 0 : index
      %203 = vector.load %arg7[%c0_91, %c0_92] : memref<8x128xf32, #tpu.memory_space<vmem>>, vector<8x128xf32>
      tpu.vector_store %arg7[%c0_91, %c0_92], %202 {strides = array<i32>} : memref<8x128xf32, #tpu.memory_space<vmem>>, vector<8x128xf32>,
      %cst_93 = arith.constant 0.000000e+00 : f32
      %204 = vector.shape_cast %195 : vector<8x1xi1> to vector<8x1xi1>
      %205 = vector.broadcast %204 : vector<8x1xi1> to vector<8x128xi1>
      %206 = vector.broadcast %cst_93 : f32 to vector<8x128xf32>
      %207 = arith.select %205, %193, %206 : vector<8x128xi1>, vector<8x128xf32>
      %c4_94 = arith.constant 4 : index
      %c0_95 = arith.constant 0 : index
      %c0_96 = arith.constant 0 : index
      %208 = vector.load %arg5[%c4_94, %c0_95, %c0_96] : memref<8x8x128xf32, #tpu.memory_space<vmem>>, vector<1x8x128xf32>
      %209 = vector.shape_cast %208 : vector<1x8x128xf32> to vector<8x128xf32>
      %210 = vector.shape_cast %207 : vector<8x128xf32> to vector<1x8x128xf32>
      tpu.vector_store %arg5[%c4_94, %c0_95, %c0_96], %210 {strides = array<i32>} : memref<8x8x128xf32, #tpu.memory_space<vmem>>, vector<1x8x128xf32>,
      %c0_97 = arith.constant 0 : index
      %c3 = arith.constant 3 : index
      %c0_98 = arith.constant 0 : index
      %c0_99 = arith.constant 0 : index
      %211 = vector.load %arg3[%c0_97, %c3, %c0_98, %c0_99] : memref<1x8x8x512xf32, #tpu.memory_space<vmem>>, vector<1x1x8x512xf32>
      %212 = vector.shape_cast %211 : vector<1x1x8x512xf32> to vector<8x512xf32>
      %c3_100 = arith.constant 3 : index
      %c0_101 = arith.constant 0 : index
      %c0_102 = arith.constant 0 : index
      %213 = vector.load %arg2[%c3_100, %c0_101, %c0_102] : memref<8x8x1xf32, #tpu.memory_space<vmem>>, vector<1x8x1xf32>
      %214 = vector.shape_cast %213 : vector<1x8x1xf32> to vector<8x1xf32>
      %c0_103 = arith.constant 0 : index
      %c0_104 = arith.constant 0 : index
      %215 = vector.load %arg6[%c0_103, %c0_104] : memref<8x128xf32, #tpu.memory_space<vmem>>, vector<8x128xf32>
      %c0_105 = arith.constant 0 : index
      %c0_106 = arith.constant 0 : index
      %216 = vector.load %arg7[%c0_105, %c0_106] : memref<8x128xf32, #tpu.memory_space<vmem>>, vector<8x128xf32>
      %cst_107 = arith.constant dense<0.000000e+00> : vector<8x512xf32>
      %217 = tpu.matmul %215, %4, %cst_107 {dimension_numbers = #tpu.dot_dimension_numbers<[1], [0], [0], [1], [0, 0, 1, 1], [], []>} : vector<8x128xf32>, vector<128x512xf32>, vector<8x512xf32> -> vector<8x512xf32>
      %218 = arith.addf %212, %217 : vector<8x512xf32>
      %219 = vector.extract_strided_slice %218 {offsets = [0, 0], sizes = [8, 128], strides = [1, 1]} : vector<8x512xf32> to vector<8x128xf32>
      %220 = arith.negf %219 : vector<8x128xf32>
      %221 = math.exp %220 : vector<8x128xf32>
      %cst_108 = arith.constant 1.000000e+00 : f32
      %222 = vector.broadcast %cst_108 : f32 to vector<8x128xf32>
      %223 = arith.addf %222, %221 : vector<8x128xf32>
      %224 = arith.divf %222, %223 : vector<8x128xf32>
      %225 = vector.extract_strided_slice %218 {offsets = [0, 128], sizes = [8, 128], strides = [1, 1]} : vector<8x512xf32> to vector<8x128xf32>
      %226 = arith.negf %225 : vector<8x128xf32>
      %227 = math.exp %226 : vector<8x128xf32>
      %cst_109 = arith.constant 1.000000e+00 : f32
      %228 = vector.broadcast %cst_109 : f32 to vector<8x128xf32>
      %229 = arith.addf %228, %227 : vector<8x128xf32>
      %230 = arith.divf %228, %229 : vector<8x128xf32>
      %231 = vector.extract_strided_slice %218 {offsets = [0, 256], sizes = [8, 128], strides = [1, 1]} : vector<8x512xf32> to vector<8x128xf32>
      %232 = math.tanh %231 : vector<8x128xf32>
      %233 = vector.extract_strided_slice %218 {offsets = [0, 384], sizes = [8, 128], strides = [1, 1]} : vector<8x512xf32> to vector<8x128xf32>
      %234 = arith.negf %233 : vector<8x128xf32>
      %235 = math.exp %234 : vector<8x128xf32>
      %cst_110 = arith.constant 1.000000e+00 : f32
      %236 = vector.broadcast %cst_110 : f32 to vector<8x128xf32>
      %237 = arith.addf %236, %235 : vector<8x128xf32>
      %238 = arith.divf %236, %237 : vector<8x128xf32>
      %239 = arith.mulf %230, %216 : vector<8x128xf32>
      %240 = arith.mulf %224, %232 : vector<8x128xf32>
      %241 = arith.addf %239, %240 : vector<8x128xf32>
      %242 = math.tanh %241 : vector<8x128xf32>
      %243 = arith.mulf %238, %242 : vector<8x128xf32>
      %cst_111 = arith.constant 0.000000e+00 : f32
      %244 = vector.broadcast %cst_111 : f32 to vector<8x1xf32>
      %245 = arith.cmpf ogt, %214, %244 : vector<8x1xf32>
      %246 = vector.shape_cast %245 : vector<8x1xi1> to vector<8x1xi1>
      %247 = vector.broadcast %246 : vector<8x1xi1> to vector<8x128xi1>
      %248 = arith.select %247, %243, %215 : vector<8x128xi1>, vector<8x128xf32>
      %c0_112 = arith.constant 0 : index
      %c0_113 = arith.constant 0 : index
      %249 = vector.load %arg6[%c0_112, %c0_113] : memref<8x128xf32, #tpu.memory_space<vmem>>, vector<8x128xf32>
      tpu.vector_store %arg6[%c0_112, %c0_113], %248 {strides = array<i32>} : memref<8x128xf32, #tpu.memory_space<vmem>>, vector<8x128xf32>,
      %250 = vector.shape_cast %245 : vector<8x1xi1> to vector<8x1xi1>
      %251 = vector.broadcast %250 : vector<8x1xi1> to vector<8x128xi1>
      %252 = arith.select %251, %241, %216 : vector<8x128xi1>, vector<8x128xf32>
      %c0_114 = arith.constant 0 : index
      %c0_115 = arith.constant 0 : index
      %253 = vector.load %arg7[%c0_114, %c0_115] : memref<8x128xf32, #tpu.memory_space<vmem>>, vector<8x128xf32>
      tpu.vector_store %arg7[%c0_114, %c0_115], %252 {strides = array<i32>} : memref<8x128xf32, #tpu.memory_space<vmem>>, vector<8x128xf32>,
      %cst_116 = arith.constant 0.000000e+00 : f32
      %254 = vector.shape_cast %245 : vector<8x1xi1> to vector<8x1xi1>
      %255 = vector.broadcast %254 : vector<8x1xi1> to vector<8x128xi1>
      %256 = vector.broadcast %cst_116 : f32 to vector<8x128xf32>
      %257 = arith.select %255, %243, %256 : vector<8x128xi1>, vector<8x128xf32>
      %c3_117 = arith.constant 3 : index
      %c0_118 = arith.constant 0 : index
      %c0_119 = arith.constant 0 : index
      %258 = vector.load %arg5[%c3_117, %c0_118, %c0_119] : memref<8x8x128xf32, #tpu.memory_space<vmem>>, vector<1x8x128xf32>
      %259 = vector.shape_cast %258 : vector<1x8x128xf32> to vector<8x128xf32>
      %260 = vector.shape_cast %257 : vector<8x128xf32> to vector<1x8x128xf32>
      tpu.vector_store %arg5[%c3_117, %c0_118, %c0_119], %260 {strides = array<i32>} : memref<8x8x128xf32, #tpu.memory_space<vmem>>, vector<1x8x128xf32>,
      %c0_120 = arith.constant 0 : index
      %c2 = arith.constant 2 : index
      %c0_121 = arith.constant 0 : index
      %c0_122 = arith.constant 0 : index
      %261 = vector.load %arg3[%c0_120, %c2, %c0_121, %c0_122] : memref<1x8x8x512xf32, #tpu.memory_space<vmem>>, vector<1x1x8x512xf32>
      %262 = vector.shape_cast %261 : vector<1x1x8x512xf32> to vector<8x512xf32>
      %c2_123 = arith.constant 2 : index
      %c0_124 = arith.constant 0 : index
      %c0_125 = arith.constant 0 : index
      %263 = vector.load %arg2[%c2_123, %c0_124, %c0_125] : memref<8x8x1xf32, #tpu.memory_space<vmem>>, vector<1x8x1xf32>
      %264 = vector.shape_cast %263 : vector<1x8x1xf32> to vector<8x1xf32>
      %c0_126 = arith.constant 0 : index
      %c0_127 = arith.constant 0 : index
      %265 = vector.load %arg6[%c0_126, %c0_127] : memref<8x128xf32, #tpu.memory_space<vmem>>, vector<8x128xf32>
      %c0_128 = arith.constant 0 : index
      %c0_129 = arith.constant 0 : index
      %266 = vector.load %arg7[%c0_128, %c0_129] : memref<8x128xf32, #tpu.memory_space<vmem>>, vector<8x128xf32>
      %cst_130 = arith.constant dense<0.000000e+00> : vector<8x512xf32>
      %267 = tpu.matmul %265, %4, %cst_130 {dimension_numbers = #tpu.dot_dimension_numbers<[1], [0], [0], [1], [0, 0, 1, 1], [], []>} : vector<8x128xf32>, vector<128x512xf32>, vector<8x512xf32> -> vector<8x512xf32>
      %268 = arith.addf %262, %267 : vector<8x512xf32>
      %269 = vector.extract_strided_slice %268 {offsets = [0, 0], sizes = [8, 128], strides = [1, 1]} : vector<8x512xf32> to vector<8x128xf32>
      %270 = arith.negf %269 : vector<8x128xf32>
      %271 = math.exp %270 : vector<8x128xf32>
      %cst_131 = arith.constant 1.000000e+00 : f32
      %272 = vector.broadcast %cst_131 : f32 to vector<8x128xf32>
      %273 = arith.addf %272, %271 : vector<8x128xf32>
      %274 = arith.divf %272, %273 : vector<8x128xf32>
      %275 = vector.extract_strided_slice %268 {offsets = [0, 128], sizes = [8, 128], strides = [1, 1]} : vector<8x512xf32> to vector<8x128xf32>
      %276 = arith.negf %275 : vector<8x128xf32>
      %277 = math.exp %276 : vector<8x128xf32>
      %cst_132 = arith.constant 1.000000e+00 : f32
      %278 = vector.broadcast %cst_132 : f32 to vector<8x128xf32>
      %279 = arith.addf %278, %277 : vector<8x128xf32>
      %280 = arith.divf %278, %279 : vector<8x128xf32>
      %281 = vector.extract_strided_slice %268 {offsets = [0, 256], sizes = [8, 128], strides = [1, 1]} : vector<8x512xf32> to vector<8x128xf32>
      %282 = math.tanh %281 : vector<8x128xf32>
      %283 = vector.extract_strided_slice %268 {offsets = [0, 384], sizes = [8, 128], strides = [1, 1]} : vector<8x512xf32> to vector<8x128xf32>
      %284 = arith.negf %283 : vector<8x128xf32>
      %285 = math.exp %284 : vector<8x128xf32>
      %cst_133 = arith.constant 1.000000e+00 : f32
      %286 = vector.broadcast %cst_133 : f32 to vector<8x128xf32>
      %287 = arith.addf %286, %285 : vector<8x128xf32>
      %288 = arith.divf %286, %287 : vector<8x128xf32>
      %289 = arith.mulf %280, %266 : vector<8x128xf32>
      %290 = arith.mulf %274, %282 : vector<8x128xf32>
      %291 = arith.addf %289, %290 : vector<8x128xf32>
      %292 = math.tanh %291 : vector<8x128xf32>
      %293 = arith.mulf %288, %292 : vector<8x128xf32>
      %cst_134 = arith.constant 0.000000e+00 : f32
      %294 = vector.broadcast %cst_134 : f32 to vector<8x1xf32>
      %295 = arith.cmpf ogt, %264, %294 : vector<8x1xf32>
      %296 = vector.shape_cast %295 : vector<8x1xi1> to vector<8x1xi1>
      %297 = vector.broadcast %296 : vector<8x1xi1> to vector<8x128xi1>
      %298 = arith.select %297, %293, %265 : vector<8x128xi1>, vector<8x128xf32>
      %c0_135 = arith.constant 0 : index
      %c0_136 = arith.constant 0 : index
      %299 = vector.load %arg6[%c0_135, %c0_136] : memref<8x128xf32, #tpu.memory_space<vmem>>, vector<8x128xf32>
      tpu.vector_store %arg6[%c0_135, %c0_136], %298 {strides = array<i32>} : memref<8x128xf32, #tpu.memory_space<vmem>>, vector<8x128xf32>,
      %300 = vector.shape_cast %295 : vector<8x1xi1> to vector<8x1xi1>
      %301 = vector.broadcast %300 : vector<8x1xi1> to vector<8x128xi1>
      %302 = arith.select %301, %291, %266 : vector<8x128xi1>, vector<8x128xf32>
      %c0_137 = arith.constant 0 : index
      %c0_138 = arith.constant 0 : index
      %303 = vector.load %arg7[%c0_137, %c0_138] : memref<8x128xf32, #tpu.memory_space<vmem>>, vector<8x128xf32>
      tpu.vector_store %arg7[%c0_137, %c0_138], %302 {strides = array<i32>} : memref<8x128xf32, #tpu.memory_space<vmem>>, vector<8x128xf32>,
      %cst_139 = arith.constant 0.000000e+00 : f32
      %304 = vector.shape_cast %295 : vector<8x1xi1> to vector<8x1xi1>
      %305 = vector.broadcast %304 : vector<8x1xi1> to vector<8x128xi1>
      %306 = vector.broadcast %cst_139 : f32 to vector<8x128xf32>
      %307 = arith.select %305, %293, %306 : vector<8x128xi1>, vector<8x128xf32>
      %c2_140 = arith.constant 2 : index
      %c0_141 = arith.constant 0 : index
      %c0_142 = arith.constant 0 : index
      %308 = vector.load %arg5[%c2_140, %c0_141, %c0_142] : memref<8x8x128xf32, #tpu.memory_space<vmem>>, vector<1x8x128xf32>
      %309 = vector.shape_cast %308 : vector<1x8x128xf32> to vector<8x128xf32>
      %310 = vector.shape_cast %307 : vector<8x128xf32> to vector<1x8x128xf32>
      tpu.vector_store %arg5[%c2_140, %c0_141, %c0_142], %310 {strides = array<i32>} : memref<8x8x128xf32, #tpu.memory_space<vmem>>, vector<1x8x128xf32>,
      %c0_143 = arith.constant 0 : index
      %c1 = arith.constant 1 : index
      %c0_144 = arith.constant 0 : index
      %c0_145 = arith.constant 0 : index
      %311 = vector.load %arg3[%c0_143, %c1, %c0_144, %c0_145] : memref<1x8x8x512xf32, #tpu.memory_space<vmem>>, vector<1x1x8x512xf32>
      %312 = vector.shape_cast %311 : vector<1x1x8x512xf32> to vector<8x512xf32>
      %c1_146 = arith.constant 1 : index
      %c0_147 = arith.constant 0 : index
      %c0_148 = arith.constant 0 : index
      %313 = vector.load %arg2[%c1_146, %c0_147, %c0_148] : memref<8x8x1xf32, #tpu.memory_space<vmem>>, vector<1x8x1xf32>
      %314 = vector.shape_cast %313 : vector<1x8x1xf32> to vector<8x1xf32>
      %c0_149 = arith.constant 0 : index
      %c0_150 = arith.constant 0 : index
      %315 = vector.load %arg6[%c0_149, %c0_150] : memref<8x128xf32, #tpu.memory_space<vmem>>, vector<8x128xf32>
      %c0_151 = arith.constant 0 : index
      %c0_152 = arith.constant 0 : index
      %316 = vector.load %arg7[%c0_151, %c0_152] : memref<8x128xf32, #tpu.memory_space<vmem>>, vector<8x128xf32>
      %cst_153 = arith.constant dense<0.000000e+00> : vector<8x512xf32>
      %317 = tpu.matmul %315, %4, %cst_153 {dimension_numbers = #tpu.dot_dimension_numbers<[1], [0], [0], [1], [0, 0, 1, 1], [], []>} : vector<8x128xf32>, vector<128x512xf32>, vector<8x512xf32> -> vector<8x512xf32>
      %318 = arith.addf %312, %317 : vector<8x512xf32>
      %319 = vector.extract_strided_slice %318 {offsets = [0, 0], sizes = [8, 128], strides = [1, 1]} : vector<8x512xf32> to vector<8x128xf32>
      %320 = arith.negf %319 : vector<8x128xf32>
      %321 = math.exp %320 : vector<8x128xf32>
      %cst_154 = arith.constant 1.000000e+00 : f32
      %322 = vector.broadcast %cst_154 : f32 to vector<8x128xf32>
      %323 = arith.addf %322, %321 : vector<8x128xf32>
      %324 = arith.divf %322, %323 : vector<8x128xf32>
      %325 = vector.extract_strided_slice %318 {offsets = [0, 128], sizes = [8, 128], strides = [1, 1]} : vector<8x512xf32> to vector<8x128xf32>
      %326 = arith.negf %325 : vector<8x128xf32>
      %327 = math.exp %326 : vector<8x128xf32>
      %cst_155 = arith.constant 1.000000e+00 : f32
      %328 = vector.broadcast %cst_155 : f32 to vector<8x128xf32>
      %329 = arith.addf %328, %327 : vector<8x128xf32>
      %330 = arith.divf %328, %329 : vector<8x128xf32>
      %331 = vector.extract_strided_slice %318 {offsets = [0, 256], sizes = [8, 128], strides = [1, 1]} : vector<8x512xf32> to vector<8x128xf32>
      %332 = math.tanh %331 : vector<8x128xf32>
      %333 = vector.extract_strided_slice %318 {offsets = [0, 384], sizes = [8, 128], strides = [1, 1]} : vector<8x512xf32> to vector<8x128xf32>
      %334 = arith.negf %333 : vector<8x128xf32>
      %335 = math.exp %334 : vector<8x128xf32>
      %cst_156 = arith.constant 1.000000e+00 : f32
      %336 = vector.broadcast %cst_156 : f32 to vector<8x128xf32>
      %337 = arith.addf %336, %335 : vector<8x128xf32>
      %338 = arith.divf %336, %337 : vector<8x128xf32>
      %339 = arith.mulf %330, %316 : vector<8x128xf32>
      %340 = arith.mulf %324, %332 : vector<8x128xf32>
      %341 = arith.addf %339, %340 : vector<8x128xf32>
      %342 = math.tanh %341 : vector<8x128xf32>
      %343 = arith.mulf %338, %342 : vector<8x128xf32>
      %cst_157 = arith.constant 0.000000e+00 : f32
      %344 = vector.broadcast %cst_157 : f32 to vector<8x1xf32>
      %345 = arith.cmpf ogt, %314, %344 : vector<8x1xf32>
      %346 = vector.shape_cast %345 : vector<8x1xi1> to vector<8x1xi1>
      %347 = vector.broadcast %346 : vector<8x1xi1> to vector<8x128xi1>
      %348 = arith.select %347, %343, %315 : vector<8x128xi1>, vector<8x128xf32>
      %c0_158 = arith.constant 0 : index
      %c0_159 = arith.constant 0 : index
      %349 = vector.load %arg6[%c0_158, %c0_159] : memref<8x128xf32, #tpu.memory_space<vmem>>, vector<8x128xf32>
      tpu.vector_store %arg6[%c0_158, %c0_159], %348 {strides = array<i32>} : memref<8x128xf32, #tpu.memory_space<vmem>>, vector<8x128xf32>,
      %350 = vector.shape_cast %345 : vector<8x1xi1> to vector<8x1xi1>
      %351 = vector.broadcast %350 : vector<8x1xi1> to vector<8x128xi1>
      %352 = arith.select %351, %341, %316 : vector<8x128xi1>, vector<8x128xf32>
      %c0_160 = arith.constant 0 : index
      %c0_161 = arith.constant 0 : index
      %353 = vector.load %arg7[%c0_160, %c0_161] : memref<8x128xf32, #tpu.memory_space<vmem>>, vector<8x128xf32>
      tpu.vector_store %arg7[%c0_160, %c0_161], %352 {strides = array<i32>} : memref<8x128xf32, #tpu.memory_space<vmem>>, vector<8x128xf32>,
      %cst_162 = arith.constant 0.000000e+00 : f32
      %354 = vector.shape_cast %345 : vector<8x1xi1> to vector<8x1xi1>
      %355 = vector.broadcast %354 : vector<8x1xi1> to vector<8x128xi1>
      %356 = vector.broadcast %cst_162 : f32 to vector<8x128xf32>
      %357 = arith.select %355, %343, %356 : vector<8x128xi1>, vector<8x128xf32>
      %c1_163 = arith.constant 1 : index
      %c0_164 = arith.constant 0 : index
      %c0_165 = arith.constant 0 : index
      %358 = vector.load %arg5[%c1_163, %c0_164, %c0_165] : memref<8x8x128xf32, #tpu.memory_space<vmem>>, vector<1x8x128xf32>
      %359 = vector.shape_cast %358 : vector<1x8x128xf32> to vector<8x128xf32>
      %360 = vector.shape_cast %357 : vector<8x128xf32> to vector<1x8x128xf32>
      tpu.vector_store %arg5[%c1_163, %c0_164, %c0_165], %360 {strides = array<i32>} : memref<8x8x128xf32, #tpu.memory_space<vmem>>, vector<1x8x128xf32>,
      %c0_166 = arith.constant 0 : index
      %c0_167 = arith.constant 0 : index
      %c0_168 = arith.constant 0 : index
      %c0_169 = arith.constant 0 : index
      %361 = vector.load %arg3[%c0_166, %c0_167, %c0_168, %c0_169] : memref<1x8x8x512xf32, #tpu.memory_space<vmem>>, vector<1x1x8x512xf32>
      %362 = vector.shape_cast %361 : vector<1x1x8x512xf32> to vector<8x512xf32>
      %c0_170 = arith.constant 0 : index
      %c0_171 = arith.constant 0 : index
      %c0_172 = arith.constant 0 : index
      %363 = vector.load %arg2[%c0_170, %c0_171, %c0_172] : memref<8x8x1xf32, #tpu.memory_space<vmem>>, vector<1x8x1xf32>
      %364 = vector.shape_cast %363 : vector<1x8x1xf32> to vector<8x1xf32>
      %c0_173 = arith.constant 0 : index
      %c0_174 = arith.constant 0 : index
      %365 = vector.load %arg6[%c0_173, %c0_174] : memref<8x128xf32, #tpu.memory_space<vmem>>, vector<8x128xf32>
      %c0_175 = arith.constant 0 : index
      %c0_176 = arith.constant 0 : index
      %366 = vector.load %arg7[%c0_175, %c0_176] : memref<8x128xf32, #tpu.memory_space<vmem>>, vector<8x128xf32>
      %cst_177 = arith.constant dense<0.000000e+00> : vector<8x512xf32>
      %367 = tpu.matmul %365, %4, %cst_177 {dimension_numbers = #tpu.dot_dimension_numbers<[1], [0], [0], [1], [0, 0, 1, 1], [], []>} : vector<8x128xf32>, vector<128x512xf32>, vector<8x512xf32> -> vector<8x512xf32>
      %368 = arith.addf %362, %367 : vector<8x512xf32>
      %369 = vector.extract_strided_slice %368 {offsets = [0, 0], sizes = [8, 128], strides = [1, 1]} : vector<8x512xf32> to vector<8x128xf32>
      %370 = arith.negf %369 : vector<8x128xf32>
      %371 = math.exp %370 : vector<8x128xf32>
      %cst_178 = arith.constant 1.000000e+00 : f32
      %372 = vector.broadcast %cst_178 : f32 to vector<8x128xf32>
      %373 = arith.addf %372, %371 : vector<8x128xf32>
      %374 = arith.divf %372, %373 : vector<8x128xf32>
      %375 = vector.extract_strided_slice %368 {offsets = [0, 128], sizes = [8, 128], strides = [1, 1]} : vector<8x512xf32> to vector<8x128xf32>
      %376 = arith.negf %375 : vector<8x128xf32>
      %377 = math.exp %376 : vector<8x128xf32>
      %cst_179 = arith.constant 1.000000e+00 : f32
      %378 = vector.broadcast %cst_179 : f32 to vector<8x128xf32>
      %379 = arith.addf %378, %377 : vector<8x128xf32>
      %380 = arith.divf %378, %379 : vector<8x128xf32>
      %381 = vector.extract_strided_slice %368 {offsets = [0, 256], sizes = [8, 128], strides = [1, 1]} : vector<8x512xf32> to vector<8x128xf32>
      %382 = math.tanh %381 : vector<8x128xf32>
      %383 = vector.extract_strided_slice %368 {offsets = [0, 384], sizes = [8, 128], strides = [1, 1]} : vector<8x512xf32> to vector<8x128xf32>
      %384 = arith.negf %383 : vector<8x128xf32>
      %385 = math.exp %384 : vector<8x128xf32>
      %cst_180 = arith.constant 1.000000e+00 : f32
      %386 = vector.broadcast %cst_180 : f32 to vector<8x128xf32>
      %387 = arith.addf %386, %385 : vector<8x128xf32>
      %388 = arith.divf %386, %387 : vector<8x128xf32>
      %389 = arith.mulf %380, %366 : vector<8x128xf32>
      %390 = arith.mulf %374, %382 : vector<8x128xf32>
      %391 = arith.addf %389, %390 : vector<8x128xf32>
      %392 = math.tanh %391 : vector<8x128xf32>
      %393 = arith.mulf %388, %392 : vector<8x128xf32>
      %cst_181 = arith.constant 0.000000e+00 : f32
      %394 = vector.broadcast %cst_181 : f32 to vector<8x1xf32>
      %395 = arith.cmpf ogt, %364, %394 : vector<8x1xf32>
      %396 = vector.shape_cast %395 : vector<8x1xi1> to vector<8x1xi1>
      %397 = vector.broadcast %396 : vector<8x1xi1> to vector<8x128xi1>
      %398 = arith.select %397, %393, %365 : vector<8x128xi1>, vector<8x128xf32>
      %c0_182 = arith.constant 0 : index
      %c0_183 = arith.constant 0 : index
      %399 = vector.load %arg6[%c0_182, %c0_183] : memref<8x128xf32, #tpu.memory_space<vmem>>, vector<8x128xf32>
      tpu.vector_store %arg6[%c0_182, %c0_183], %398 {strides = array<i32>} : memref<8x128xf32, #tpu.memory_space<vmem>>, vector<8x128xf32>,
      %400 = vector.shape_cast %395 : vector<8x1xi1> to vector<8x1xi1>
      %401 = vector.broadcast %400 : vector<8x1xi1> to vector<8x128xi1>
      %402 = arith.select %401, %391, %366 : vector<8x128xi1>, vector<8x128xf32>
      %c0_184 = arith.constant 0 : index
      %c0_185 = arith.constant 0 : index
      %403 = vector.load %arg7[%c0_184, %c0_185] : memref<8x128xf32, #tpu.memory_space<vmem>>, vector<8x128xf32>
      tpu.vector_store %arg7[%c0_184, %c0_185], %402 {strides = array<i32>} : memref<8x128xf32, #tpu.memory_space<vmem>>, vector<8x128xf32>,
      %cst_186 = arith.constant 0.000000e+00 : f32
      %404 = vector.shape_cast %395 : vector<8x1xi1> to vector<8x1xi1>
      %405 = vector.broadcast %404 : vector<8x1xi1> to vector<8x128xi1>
      %406 = vector.broadcast %cst_186 : f32 to vector<8x128xf32>
      %407 = arith.select %405, %393, %406 : vector<8x128xi1>, vector<8x128xf32>
      %c0_187 = arith.constant 0 : index
      %c0_188 = arith.constant 0 : index
      %c0_189 = arith.constant 0 : index
      %408 = vector.load %arg5[%c0_187, %c0_188, %c0_189] : memref<8x8x128xf32, #tpu.memory_space<vmem>>, vector<1x8x128xf32>
      %409 = vector.shape_cast %408 : vector<1x8x128xf32> to vector<8x128xf32>
      %410 = vector.shape_cast %407 : vector<8x128xf32> to vector<1x8x128xf32>
      tpu.vector_store %arg5[%c0_187, %c0_188, %c0_189], %410 {strides = array<i32>} : memref<8x8x128xf32, #tpu.memory_space<vmem>>, vector<1x8x128xf32>,
    } else {
    }
    return
  }
  func.func @transform_0(%arg0: i32, %arg1: i32) -> (i32, i32, i32) {
    %c2_i32 = arith.constant 2 : i32
    %0 = arith.muli %c2_i32, %arg1 : i32
    %c0_i32 = arith.constant 0 : i32
    %1 = arith.subi %c0_i32, %0 : i32
    %2 = arith.muli %arg0, %1 : i32
    %3 = arith.addi %arg1, %2 : i32
    %c0_i32_0 = arith.constant 0 : i32
    %c0_i32_1 = arith.constant 0 : i32
    %c0_i32_2 = arith.constant 0 : i32
    return %3, %c0_i32_0, %c0_i32_1 : i32, i32, i32
  }
  func.func @transform_1(%arg0: i32, %arg1: i32) -> (i32, i32, i32, i32) {
    %c2_i32 = arith.constant 2 : i32
    %0 = arith.muli %c2_i32, %arg1 : i32
    %c0_i32 = arith.constant 0 : i32
    %1 = arith.subi %c0_i32, %0 : i32
    %2 = arith.muli %arg0, %1 : i32
    %3 = arith.addi %arg1, %2 : i32
    %c0_i32_0 = arith.constant 0 : i32
    %c0_i32_1 = arith.constant 0 : i32
    %c0_i32_2 = arith.constant 0 : i32
    return %arg0, %3, %c0_i32_0, %c0_i32_1 : i32, i32, i32, i32
  }
  func.func @transform_2(%arg0: i32, %arg1: i32) -> (i32, i32, i32) {
    %c0_i32 = arith.constant 0 : i32
    %c0_i32_0 = arith.constant 0 : i32
    %c0_i32_1 = arith.constant 0 : i32
    return %arg0, %c0_i32, %c0_i32_0 : i32, i32, i32
  }
  func.func @transform_3(%arg0: i32, %arg1: i32) -> (i32, i32, i32) {
    %c2_i32 = arith.constant 2 : i32
    %0 = arith.muli %c2_i32, %arg1 : i32
    %c0_i32 = arith.constant 0 : i32
    %1 = arith.subi %c0_i32, %0 : i32
    %2 = arith.muli %arg0, %1 : i32
    %3 = arith.addi %arg1, %2 : i32
    %c0_i32_0 = arith.constant 0 : i32
    %c0_i32_1 = arith.constant 0 : i32
    return %3, %c0_i32_0, %arg0 : i32, i32, i32
  }
}

</mosaic_0001>

<llo_original>
// kernel: tpu_custom_call.1
$region0: #{tpu_custom_call.1}
  #allocation0 [shape = 'u32[]', space=smem, size = 0x4, offset = 0x4, fixed_abs, tag = 'smem constant byte address 0x4 - core index']
  #allocation1 [shape = 'u32[72,128]{1,0:T(1,128)}', space=vmem, size = 0x9000, scoped, tag = 'internal scratch']
  #allocation2 [shape = 'f32[8,128]{1,0:T(8,128)}', space=vmem, size = 0x1000, scoped, tag = 'scratch operand']
  #allocation3 [shape = 'f32[8,128]{1,0:T(8,128)}', space=vmem, size = 0x1000, scoped, tag = 'scratch operand']
  %s0 = inlined_call_operand.vmem [shape: f32[8,8,1], index: 0, kind: input, shape index: {}]
  %s1 = inlined_call_operand.hbm [shape: f32[2,8,8,512], index: 1, kind: input, shape index: {}]
  %s2 = inlined_call_operand.hbm [shape: f32[2,128,512], index: 2, kind: input, shape index: {}]
  %s3 = inlined_call_operand.hbm [shape: f32[8,8,256], index: 3, kind: output, shape index: {}]
  %s4 = sld [smem:[#allocation0]]
  $region65: #{tpu_custom_call.1} parent=0
    _
  %s6 = ssub.s32 1, %s4
  %s7 = scalar_select 0, %s6, %s4
  $region1: #{tpu_custom_call.1} parent=0
    #allocation4 [shape = 'u8[262144]{0}', space=vmem, size = 0x40000, scoped, tag = 'input window, operand 1']
    #allocation5 [shape = 's32[2]{0}', space=sflag, size = 0x8, scoped, tag = 'scoped memory for tpu_custom_call.1']
    #allocation6 [shape = 's32[2]{0}', space=sflag, size = 0x8, scoped, tag = 'scoped memory for tpu_custom_call.1']
    #allocation7 [shape = 'u8[524288]{0}', space=vmem, size = 0x80000, scoped, tag = 'input window, operand 2']
    #allocation8 [shape = 's32[2]{0}', space=sflag, size = 0x8, scoped, tag = 'scoped memory for tpu_custom_call.1']
    #allocation9 [shape = 'u8[65536]{0}', space=vmem, size = 0x10000, scoped, tag = 'output window, operand 0']
    %8 = vsyncpa [#allocation5], 0
    %s9 = scalar_lea.sflag [#allocation5], 1
    %10 = vsyncpa %s9, 0
    %11 = vsyncpa [#allocation8], 0
    %s12 = scalar_lea.sflag [#allocation8], 1
    %13 = vsyncpa %s12, 0
    %14 = vsyncpa [#allocation6], 0
    %s15 = scalar_lea.sflag [#allocation6], 1
    %16 = vsyncpa %s15, 0
    loop: start=0, step=1, limit=4
    $region2: #{tpu_custom_call.1} parent=1 // loop_pre_header
      _
    $region3: #{tpu_custom_call.1} parent=1 // loop_header
      %s18 = sphi 0, %s22
      %p19 = scmp.ge.s32.totalorder %s18, 4
      %s25 = sphi 0, %s37
      %s26 = sphi 0, %s33
      %s27 = sphi 0, %s25
      %s28 = sphi 0, %s26
      %s29 = sphi 0, %s27
      %s30 = sphi 0, %s28
      %s48 = sphi 0, %s50
      %s51 = sphi 0, %s48
      %s52 = sphi 0, %s51
      %s68 = sphi 0, %s52
      %s84 = sphi 0, %s86
      %s87 = sphi 0, %s84
      %s88 = sphi 0, %s87
      %s104 = sphi 0, %s88
      %s110 = sphi 0, %s112
      %s113 = sphi 0, %s110
      %s114 = sphi 0, %s113
      %s130 = sphi 0, %s114
      %s146 = sphi 0, %s148
      %s149 = sphi 0, %s146
      %s150 = sphi 0, %s149
      %s166 = sphi 0, %s150
    $region4: #{tpu_custom_call.1} parent=1 // loop_header_branch
      %21 = sbr.rel (%p19) target = $region8
    $region5: #{tpu_custom_call.1} parent=1 // loop_body
      %s23 = ssub.s32 %s18, 1
      %s24 = ssub.s32 %s18, 2
      %s31 = sadd.s32 1, %s26
      %p32 = scmp.ge.s32.totalorder %s31, 1
      %s33 = scalar_select %p32, 0, %s31
      %s34 = sadd.s32 1, %s25
      %s35 = scalar_select %p32, %s34, %s25
      %p36 = scmp.ge.s32.totalorder %s35, 2
      %s37 = scalar_select %p36, 0, %s35
      %s38 = smul.u32 %s26, 2
      %s39 = ssub.s32 0, %s38
      %s40 = smul.u32 %s25, %s39
      %s41 = sadd.s32 %s26, %s40
      %s42 = smul.u32 %s33, 2
      %s43 = ssub.s32 0, %s42
      %s44 = smul.u32 %s37, %s43
      %s45 = sadd.s32 %s33, %s44
      %s46 = ssub.s32 %s41, %s45
      %p47 = scmp.eq.s32.totalorder %s46, 0
      %s49 = sadd.s32 %s48, 1
      %s50 = scalar_select %p47, %s48, %s49
      %p53 = pneg %p47
      %p54 = scmp.eq.s32.totalorder %s18, 1
      %p55 = por %p53, %p54
      %p56 = scmp.ne.s32.totalorder %s48, %s51
      %p57 = scmp.eq.s32.totalorder %s18, 0
      %p58 = por %p56, %p57
      %p59 = scmp.ne.s32.totalorder %s48, %s51
      %p60 = scmp.eq.s32.totalorder %s23, 1
      %p61 = por %p59, %p60
      %p62 = scmp.ne.s32.totalorder %s51, %s52
      %p63 = scmp.eq.s32.totalorder %s23, 0
      %p64 = por %p62, %p63
      %p65 = scmp.ne.s32.totalorder %s51, %s52
      %p66 = scmp.eq.s32.totalorder %s24, 1
      %p67 = por %p65, %p66
      %p69 = scmp.ne.s32.totalorder %s52, %s68
      %p70 = scmp.eq.s32.totalorder %s24, 0
      %p71 = por %p69, %p70
      %s72 = smul.u32 %s26, 2
      %s73 = ssub.s32 0, %s72
      %s74 = smul.u32 %s25, %s73
      %s75 = sadd.s32 %s26, %s74
      %s76 = smul.u32 %s33, 2
      %s77 = ssub.s32 0, %s76
      %s78 = smul.u32 %s37, %s77
      %s79 = sadd.s32 %s33, %s78
      %s80 = ssub.s32 %s25, %s37
      %s81 = ssub.s32 %s75, %s79
      %s82 = sor.u32 %s80, %s81
      %p83 = scmp.eq.s32.totalorder %s82, 0
      %s85 = sadd.s32 %s84, 1
      %s86 = scalar_select %p83, %s84, %s85
      %p89 = pneg %p83
      %p90 = scmp.eq.s32.totalorder %s18, 1
      %p91 = por %p89, %p90
      %p92 = scmp.ne.s32.totalorder %s84, %s87
      %p93 = scmp.eq.s32.totalorder %s18, 0
      %p94 = por %p92, %p93
      %p95 = scmp.ne.s32.totalorder %s84, %s87
      %p96 = scmp.eq.s32.totalorder %s23, 1
      %p97 = por %p95, %p96
      %p98 = scmp.ne.s32.totalorder %s87, %s88
      %p99 = scmp.eq.s32.totalorder %s23, 0
      %p100 = por %p98, %p99
      %p101 = scmp.ne.s32.totalorder %s87, %s88
      %p102 = scmp.eq.s32.totalorder %s24, 1
      %p103 = por %p101, %p102
      %p105 = scmp.ne.s32.totalorder %s88, %s104
      %p106 = scmp.eq.s32.totalorder %s24, 0
      %p107 = por %p105, %p106
      %s108 = ssub.s32 %s25, %s37
      %p109 = scmp.eq.s32.totalorder %s108, 0
      %s111 = sadd.s32 %s110, 1
      %s112 = scalar_select %p109, %s110, %s111
      %p115 = pneg %p109
      %p116 = scmp.eq.s32.totalorder %s18, 1
      %p117 = por %p115, %p116
      %p118 = scmp.ne.s32.totalorder %s110, %s113
      %p119 = scmp.eq.s32.totalorder %s18, 0
      %p120 = por %p118, %p119
      %p121 = scmp.ne.s32.totalorder %s110, %s113
      %p122 = scmp.eq.s32.totalorder %s23, 1
      %p123 = por %p121, %p122
      %p124 = scmp.ne.s32.totalorder %s113, %s114
      %p125 = scmp.eq.s32.totalorder %s23, 0
      %p126 = por %p124, %p125
      %p127 = scmp.ne.s32.totalorder %s113, %s114
      %p128 = scmp.eq.s32.totalorder %s24, 1
      %p129 = por %p127, %p128
      %p131 = scmp.ne.s32.totalorder %s114, %s130
      %p132 = scmp.eq.s32.totalorder %s24, 0
      %p133 = por %p131, %p132
      %s134 = smul.u32 %s26, 2
      %s135 = ssub.s32 0, %s134
      %s136 = smul.u32 %s25, %s135
      %s137 = sadd.s32 %s26, %s136
      %s138 = smul.u32 %s33, 2
      %s139 = ssub.s32 0, %s138
      %s140 = smul.u32 %s37, %s139
      %s141 = sadd.s32 %s33, %s140
      %s142 = ssub.s32 %s137, %s141
      %s143 = ssub.s32 %s25, %s37
      %s144 = sor.u32 %s142, %s143
      %p145 = scmp.eq.s32.totalorder %s144, 0
      %s147 = sadd.s32 %s146, 1
      %s148 = scalar_select %p145, %s146, %s147
      %p151 = pneg %p145
      %p152 = scmp.eq.s32.totalorder %s18, 1
      %p153 = por %p151, %p152
      %p154 = scmp.ne.s32.totalorder %s146, %s149
      %p155 = scmp.eq.s32.totalorder %s18, 0
      %p156 = por %p154, %p155
      %p157 = scmp.ne.s32.totalorder %s146, %s149
      %p158 = scmp.eq.s32.totalorder %s23, 1
      %p159 = por %p157, %p158
      %p160 = scmp.ne.s32.totalorder %s149, %s150
      %p161 = scmp.eq.s32.totalorder %s23, 0
      %p162 = por %p160, %p161
      %p163 = scmp.ne.s32.totalorder %s149, %s150
      %p164 = scmp.eq.s32.totalorder %s24, 1
      %p165 = por %p163, %p164
      %p167 = scmp.ne.s32.totalorder %s150, %s166
      %p168 = scmp.eq.s32.totalorder %s24, 0
      %p169 = por %p167, %p168
      %p170 = scmp.le.s32.totalorder 1, %s18
      %p171 = scmp.lt.s32.totalorder %s18, 3
      %p172 = pnand %p170, %p171
      %p173 = pneg %p172
      // Predicated region
      $region9: #{tpu_custom_call.1} parent=5 // pred_check
        _
      $region10: #{tpu_custom_call.1} parent=5 // pred_check_branch
        %175 = sbr.rel (%p172) target = $region12
      $region11: #{tpu_custom_call.1} parent=5 // pred_region
        %s176 = ssub.s32 %s18, 1
      $region12: #{tpu_custom_call.1} parent=5 // pred_fallthru
        _
      %p177 = scmp.lt.s32.totalorder %s18, 2
      // Predicated region
      $region13: #{tpu_custom_call.1} parent=5 // pred_check
        %p178 = pneg %p177
      $region14: #{tpu_custom_call.1} parent=5 // pred_check_branch
        %180 = sbr.rel (%p178) target = $region16
      $region15: #{tpu_custom_call.1} parent=5 // pred_region
        // Predicated region
        $region17: #{tpu_custom_call.1} parent=15 // pred_check
          %p181 = pneg %p58
        $region18: #{tpu_custom_call.1} parent=15 // pred_check_branch
          %183 = sbr.rel (%p181) target = $region20
        $region19: #{tpu_custom_call.1} parent=15 // pred_region
          %s184 = smul.u32 %s26, 2
          %s185 = ssub.s32 0, %s184
          %s186 = smul.u32 %s25, %s185
          %s187 = sadd.s32 %s26, %s186
          %s188 = smul.u32 8, %s187
          %p189 = scmp.lt.s32.totalorder %s188, 7
          %s190 = scalar_select %p189, %s188, 7
          %s191 = smul.addr %s190, 8
          %s192 = scalar_lea.vmem %s0, %s191
          %s193 = smul.u32 %s26, 2
          %s194 = ssub.s32 0, %s193
          %s195 = smul.u32 %s25, %s194
          %s196 = sadd.s32 %s26, %s195
          %s197 = smul.u32 8, %s196
        $region20: #{tpu_custom_call.1} parent=15 // pred_fallthru
          _
        // Predicated region
        $region21: #{tpu_custom_call.1} parent=15 // pred_check
          %p198 = pneg %p94
        $region22: #{tpu_custom_call.1} parent=15 // pred_check_branch
          %200 = sbr.rel (%p198) target = $region24
        $region23: #{tpu_custom_call.1} parent=15 // pred_region
          %s201 = sand.u32 %s84, 1
          %s202 = scalar_lea.sflag [#allocation5], %s201
          %s203 = sand.u32 %s84, 1
          %s204 = smul.addr %s203, 256
          %s205 = scalar_lea.vmem [#allocation4], %s204
          %s206 = smul.u32 %s26, 2
          %s207 = ssub.s32 0, %s206
          %s208 = smul.u32 %s25, %s207
          %s209 = sadd.s32 %s26, %s208
          %s210 = smul.u32 8, %s209
          %212 = vsyncadd %s202, 0
          %s213 = smul.addr %s210, 4
          %s214 = smul.addr %s25, 32
          %s215 = sadd.s32 %s213, %s214
          %s216 = smul.addr %s215, 8
          %s217 = scalar_lea.hbm %s1, %s216
          %s218 = sshll.u32 %s217, 4
          %s219 = int_to_ptr.hbm [resolvable:$true] %s218
          %s220 = sshll.u32 %s205, 4
          %s221 = int_to_ptr.vmem [resolvable:$true] %s220
          %226 = dma.hbm_to_vmem [thread:$0]  %s219, 4096, %s221, %s202, 512, 512, 32
        $region24: #{tpu_custom_call.1} parent=15 // pred_fallthru
          _
        // Predicated region
        $region25: #{tpu_custom_call.1} parent=15 // pred_check
          %p227 = pneg %p120
        $region26: #{tpu_custom_call.1} parent=15 // pred_check_branch
          %229 = sbr.rel (%p227) target = $region28
        $region27: #{tpu_custom_call.1} parent=15 // pred_region
          %s230 = sand.u32 %s110, 1
          %s231 = scalar_lea.sflag [#allocation8], %s230
          %s232 = sand.u32 %s110, 1
          %s233 = smul.addr %s232, 512
          %s234 = scalar_lea.vmem [#allocation7], %s233
          %236 = vsyncadd %s231, 0
          %s237 = smul.addr %s25, 64
          %s238 = smul.addr %s237, 8
          %s239 = scalar_lea.hbm %s2, %s238
          %s240 = sshll.u32 %s239, 4
          %s241 = int_to_ptr.hbm [resolvable:$true] %s240
          %s242 = sshll.u32 %s234, 4
          %s243 = int_to_ptr.vmem [resolvable:$true] %s242
          %248 = dma.hbm_to_vmem [thread:$0]  %s241, 8192, %s243, %s231, 512, 512, 32
        $region28: #{tpu_custom_call.1} parent=15 // pred_fallthru
          _
      $region16: #{tpu_custom_call.1} parent=5 // pred_fallthru
        _
      %p249 = scmp.le.s32.totalorder 1, %s18
      %p250 = scmp.lt.s32.totalorder %s18, 3
      %p251 = pnand %p249, %p250
      %p252 = pneg %p251
      // Predicated region
      $region29: #{tpu_custom_call.1} parent=5 // pred_check
        _
      $region30: #{tpu_custom_call.1} parent=5 // pred_check_branch
        %254 = sbr.rel (%p251) target = $region32
      $region31: #{tpu_custom_call.1} parent=5 // pred_region
        %s255 = ssub.s32 %s18, 1
        %s256 = sand.u32 %s87, 1
        %s257 = scalar_lea.sflag [#allocation5], %s256
        %s258 = sand.u32 %s87, 1
        %s259 = smul.addr %s258, 256
        %s260 = scalar_lea.vmem [#allocation4], %s259
        // Predicated region
        $region33: #{tpu_custom_call.1} parent=31 // pred_check
          %p261 = pneg %p100
        $region34: #{tpu_custom_call.1} parent=31 // pred_check_branch
          %263 = sbr.rel (%p261) target = $region36
        $region35: #{tpu_custom_call.1} parent=31 // pred_region
          %265 = dma.done %s257, 4096
        $region36: #{tpu_custom_call.1} parent=31 // pred_fallthru
          _
        %s266 = sand.u32 %s113, 1
        %s267 = scalar_lea.sflag [#allocation8], %s266
        %s268 = sand.u32 %s113, 1
        %s269 = smul.addr %s268, 512
        %s270 = scalar_lea.vmem [#allocation7], %s269
        // Predicated region
        $region37: #{tpu_custom_call.1} parent=31 // pred_check
          %p271 = pneg %p126
        $region38: #{tpu_custom_call.1} parent=31 // pred_check_branch
          %273 = sbr.rel (%p271) target = $region40
        $region39: #{tpu_custom_call.1} parent=31 // pred_region
          %275 = dma.done %s267, 8192
        $region40: #{tpu_custom_call.1} parent=31 // pred_fallthru
          _
        %s276 = smul.u32 %s28, 2
        %s277 = ssub.s32 0, %s276
        %s278 = smul.u32 %s27, %s277
        %s279 = sadd.s32 %s28, %s278
        %s280 = smul.u32 8, %s279
        %p281 = scmp.lt.s32.totalorder %s280, 7
        %s282 = scalar_select %p281, %s280, 7
        %s283 = smul.addr %s282, 8
        %s284 = scalar_lea.vmem %s0, %s283
        %p285 = pneg %p64
        %p286 = pneg %p61
        %s287 = sand.u32 %s87, 1
        %s288 = scalar_lea.sflag [#allocation5], %s287
        %s289 = sand.u32 %s87, 1
        %s290 = smul.addr %s289, 256
        %s291 = scalar_lea.vmem [#allocation4], %s290
        %p292 = pneg %p100
        %p293 = pneg %p97
        %s294 = sand.u32 %s113, 1
        %s295 = scalar_lea.sflag [#allocation8], %s294
        %s296 = sand.u32 %s113, 1
        %s297 = smul.addr %s296, 512
        %s298 = scalar_lea.vmem [#allocation7], %s297
        %p299 = pneg %p126
        %p300 = pneg %p123
        %p301 = pneg %p162
        %p302 = pneg %p159
        %s303 = sand.u32 %s149, 1
        %s304 = scalar_lea.sflag [#allocation6], %s303
        %s305 = sand.u32 %s149, 1
        %s306 = smul.addr %s305, 64
        %s307 = scalar_lea.vmem [#allocation9], %s306
        %s308 = smul.u32 %s28, 2
        %s309 = ssub.s32 0, %s308
        %s310 = smul.u32 %s27, %s309
        %s311 = sadd.s32 %s28, %s310
        %s312 = smul.u32 8, %s311
        %p313 = scmp.lt.s32.totalorder %s312, 7
        %s314 = scalar_select %p313, %s312, 7
        %s315 = smul.addr %s314, 8
        %s316 = scalar_lea.vmem %s0, %s315
        %s317 = smul.u32 %s28, 2
        %s318 = ssub.s32 0, %s317
        %s319 = smul.u32 %s27, %s318
        %s320 = sadd.s32 %s28, %s319
        %s321 = smul.u32 8, %s320
        %s322 = smul.u32 %s28, 2
        %s323 = ssub.s32 0, %s322
        %s324 = smul.u32 %s27, %s323
        %s325 = sadd.s32 %s28, %s324
        %s326 = smul.u32 8, %s325
        %s327 = smul.u32 %s28, 2
        %s328 = ssub.s32 0, %s327
        %s329 = smul.u32 %s27, %s328
        %s330 = sadd.s32 %s28, %s329
        %s331 = smul.u32 8, %s330
        %p332 = scmp.eq.s32.totalorder %s28, 0
        // Predicated region
        $region41: #{tpu_custom_call.1} parent=31 // pred_check
          %p333 = pneg %p332
        $region42: #{tpu_custom_call.1} parent=31 // pred_check_branch
          %335 = sbr.rel (%p333) target = $region44
        $region43: #{tpu_custom_call.1} parent=31 // pred_region
          %336 = vst [vmem:[#allocation2] sm:$0xff] 0.0
          %337 = vst [vmem:[#allocation3] sm:$0xff] 0.0
        $region44: #{tpu_custom_call.1} parent=31 // pred_fallthru
          _
        %v338 = vld [vmem:[%s270] sm:$0xff]
        %v339 = vld [vmem:[%s270 + $0x8] sm:$0xff]
        %v340 = vld [vmem:[%s270 + $0x10] sm:$0xff]
        %v341 = vld [vmem:[%s270 + $0x18] sm:$0xff]
        %v342 = vld [vmem:[%s270 + $0x20] sm:$0xff]
        %v343 = vld [vmem:[%s270 + $0x28] sm:$0xff]
        %v344 = vld [vmem:[%s270 + $0x30] sm:$0xff]
        %v345 = vld [vmem:[%s270 + $0x38] sm:$0xff]
        %v346 = vld [vmem:[%s270 + $0x40] sm:$0xff]
        %v347 = vld [vmem:[%s270 + $0x48] sm:$0xff]
        %v348 = vld [vmem:[%s270 + $0x50] sm:$0xff]
        %v349 = vld [vmem:[%s270 + $0x58] sm:$0xff]
        %v350 = vld [vmem:[%s270 + $0x60] sm:$0xff]
        %v351 = vld [vmem:[%s270 + $0x68] sm:$0xff]
        %v352 = vld [vmem:[%s270 + $0x70] sm:$0xff]
        %v353 = vld [vmem:[%s270 + $0x78] sm:$0xff]
        %v354 = vld [vmem:[%s270 + $0x80] sm:$0xff]
        %v355 = vld [vmem:[%s270 + $0x88] sm:$0xff]
        %v356 = vld [vmem:[%s270 + $0x90] sm:$0xff]
        %v357 = vld [vmem:[%s270 + $0x98] sm:$0xff]
        %v358 = vld [vmem:[%s270 + $0xa0] sm:$0xff]
        %v359 = vld [vmem:[%s270 + $0xa8] sm:$0xff]
        %v360 = vld [vmem:[%s270 + $0xb0] sm:$0xff]
        %v361 = vld [vmem:[%s270 + $0xb8] sm:$0xff]
        %v362 = vld [vmem:[%s270 + $0xc0] sm:$0xff]
        %v363 = vld [vmem:[%s270 + $0xc8] sm:$0xff]
        %v364 = vld [vmem:[%s270 + $0xd0] sm:$0xff]
        %v365 = vld [vmem:[%s270 + $0xd8] sm:$0xff]
        %v366 = vld [vmem:[%s270 + $0xe0] sm:$0xff]
        %v367 = vld [vmem:[%s270 + $0xe8] sm:$0xff]
        %v368 = vld [vmem:[%s270 + $0xf0] sm:$0xff]
        %v369 = vld [vmem:[%s270 + $0xf8] sm:$0xff]
        %v370 = vld [vmem:[%s270 + $0x100] sm:$0xff]
        %v371 = vld [vmem:[%s270 + $0x108] sm:$0xff]
        %v372 = vld [vmem:[%s270 + $0x110] sm:$0xff]
        %v373 = vld [vmem:[%s270 + $0x118] sm:$0xff]
        %v374 = vld [vmem:[%s270 + $0x120] sm:$0xff]
        %v375 = vld [vmem:[%s270 + $0x128] sm:$0xff]
        %v376 = vld [vmem:[%s270 + $0x130] sm:$0xff]
        %v377 = vld [vmem:[%s270 + $0x138] sm:$0xff]
        %v378 = vld [vmem:[%s270 + $0x140] sm:$0xff]
        %v379 = vld [vmem:[%s270 + $0x148] sm:$0xff]
        %v380 = vld [vmem:[%s270 + $0x150] sm:$0xff]
        %v381 = vld [vmem:[%s270 + $0x158] sm:$0xff]
        %v382 = vld [vmem:[%s270 + $0x160] sm:$0xff]
        %v383 = vld [vmem:[%s270 + $0x168] sm:$0xff]
        %v384 = vld [vmem:[%s270 + $0x170] sm:$0xff]
        %v385 = vld [vmem:[%s270 + $0x178] sm:$0xff]
        %v386 = vld [vmem:[%s270 + $0x180] sm:$0xff]
        %v387 = vld [vmem:[%s270 + $0x188] sm:$0xff]
        %v388 = vld [vmem:[%s270 + $0x190] sm:$0xff]
        %v389 = vld [vmem:[%s270 + $0x198] sm:$0xff]
        %v390 = vld [vmem:[%s270 + $0x1a0] sm:$0xff]
        %v391 = vld [vmem:[%s270 + $0x1a8] sm:$0xff]
        %v392 = vld [vmem:[%s270 + $0x1b0] sm:$0xff]
        %v393 = vld [vmem:[%s270 + $0x1b8] sm:$0xff]
        %v394 = vld [vmem:[%s270 + $0x1c0] sm:$0xff]
        %v395 = vld [vmem:[%s270 + $0x1c8] sm:$0xff]
        %v396 = vld [vmem:[%s270 + $0x1d0] sm:$0xff]
        %v397 = vld [vmem:[%s270 + $0x1d8] sm:$0xff]
        %v398 = vld [vmem:[%s270 + $0x1e0] sm:$0xff]
        %v399 = vld [vmem:[%s270 + $0x1e8] sm:$0xff]
        %v400 = vld [vmem:[%s270 + $0x1f0] sm:$0xff]
        %v401 = vld [vmem:[%s270 + $0x1f8] sm:$0xff]
        %p402 = scmp.eq.s32.totalorder %s27, 0
        // Predicated region
        $region45: #{tpu_custom_call.1} parent=31 // pred_check
          %p403 = pneg %p402
        $region46: #{tpu_custom_call.1} parent=31 // pred_check_branch
          %405 = sbr.rel (%p403) target = $region48
        $region47: #{tpu_custom_call.1} parent=31 // pred_region
          %v406 = vld [vmem:[%s260] sm:$0xff]
          %v407 = vld [vmem:[%s260 + $0x8] sm:$0xff]
          %v408 = vld [vmem:[%s260 + $0x10] sm:$0xff]
          %v409 = vld [vmem:[%s260 + $0x18] sm:$0xff]
          %v410 = vld [vmem:[%s316] sm:$0xff]
          %v411 = vld [vmem:[#allocation2] sm:$0xff]
          %v412 = vld [vmem:[#allocation3] sm:$0xff]
          %413 = vmatpush.msra.mxu0 %v398
          %414 = vmatpush.msra.mxu0 %v394
          %415 = vmatpush.msra.mxu0 %v390
          %416 = vmatpush.msra.mxu0 %v386
          %417 = vmatpush.msra.mxu0 %v382
          %418 = vmatpush.msra.mxu0 %v378
          %419 = vmatpush.msra.mxu0 %v374
          %420 = vmatpush.msra.mxu0 %v370
          %421 = vmatpush.msra.mxu0 %v366
          %422 = vmatpush.msra.mxu0 %v362
          %423 = vmatpush.msra.mxu0 %v358
          %424 = vmatpush.msra.mxu0 %v354
          %425 = vmatpush.msra.mxu0 %v350
          %426 = vmatpush.msra.mxu0 %v346
          %427 = vmatpush.msra.mxu0 %v342
          %428 = vmatpush.msra.mxu0 %v338
          %429 = vmatmul.f32.gmra.mxu0 %v411
          %v430 = vpop.f32.mrf.mxu0
          %v431 = vadd.f32 0.0, %v430
          %432 = vdwg.mxu0
          %433 = vmatpush.msra.mxu0 %v399
          %434 = vmatpush.msra.mxu0 %v395
          %435 = vmatpush.msra.mxu0 %v391
          %436 = vmatpush.msra.mxu0 %v387
          %437 = vmatpush.msra.mxu0 %v383
          %438 = vmatpush.msra.mxu0 %v379
          %439 = vmatpush.msra.mxu0 %v375
          %440 = vmatpush.msra.mxu0 %v371
          %441 = vmatpush.msra.mxu0 %v367
          %442 = vmatpush.msra.mxu0 %v363
          %443 = vmatpush.msra.mxu0 %v359
          %444 = vmatpush.msra.mxu0 %v355
          %445 = vmatpush.msra.mxu0 %v351
          %446 = vmatpush.msra.mxu0 %v347
          %447 = vmatpush.msra.mxu0 %v343
          %448 = vmatpush.msra.mxu0 %v339
          %449 = vmatmul.f32.gmra.mxu0 %v411
          %v450 = vpop.f32.mrf.mxu0
          %v451 = vadd.f32 0.0, %v450
          %452 = vdwg.mxu0
          %453 = vmatpush.msra.mxu0 %v400
          %454 = vmatpush.msra.mxu0 %v396
          %455 = vmatpush.msra.mxu0 %v392
          %456 = vmatpush.msra.mxu0 %v388
          %457 = vmatpush.msra.mxu0 %v384
          %458 = vmatpush.msra.mxu0 %v380
          %459 = vmatpush.msra.mxu0 %v376
          %460 = vmatpush.msra.mxu0 %v372
          %461 = vmatpush.msra.mxu0 %v368
          %462 = vmatpush.msra.mxu0 %v364
          %463 = vmatpush.msra.mxu0 %v360
          %464 = vmatpush.msra.mxu0 %v356
          %465 = vmatpush.msra.mxu0 %v352
          %466 = vmatpush.msra.mxu0 %v348
          %467 = vmatpush.msra.mxu0 %v344
          %468 = vmatpush.msra.mxu0 %v340
          %469 = vmatmul.f32.gmra.mxu0 %v411
          %v470 = vpop.f32.mrf.mxu0
          %v471 = vadd.f32 0.0, %v470
          %472 = vdwg.mxu0
          %473 = vmatpush.msra.mxu0 %v401
          %474 = vmatpush.msra.mxu0 %v397
          %475 = vmatpush.msra.mxu0 %v393
          %476 = vmatpush.msra.mxu0 %v389
          %477 = vmatpush.msra.mxu0 %v385
          %478 = vmatpush.msra.mxu0 %v381
          %479 = vmatpush.msra.mxu0 %v377
          %480 = vmatpush.msra.mxu0 %v373
          %481 = vmatpush.msra.mxu0 %v369
          %482 = vmatpush.msra.mxu0 %v365
          %483 = vmatpush.msra.mxu0 %v361
          %484 = vmatpush.msra.mxu0 %v357
          %485 = vmatpush.msra.mxu0 %v353
          %486 = vmatpush.msra.mxu0 %v349
          %487 = vmatpush.msra.mxu0 %v345
          %488 = vmatpush.msra.mxu0 %v341
          %489 = vmatmul.f32.gmra.mxu0 %v411
          %v490 = vpop.f32.mrf.mxu0
          %v491 = vadd.f32 0.0, %v490
          %492 = vdwg.mxu0
          %v493 = vadd.f32 %v406, %v431
          %v494 = vadd.f32 %v407, %v451
          %v495 = vadd.f32 %v408, %v471
          %v496 = vadd.f32 %v409, %v491
          %v497 = vxor.u32 %v493, 2147483648
          %v498 = vmul.f32 %v497, 1.442695
          %v499 = vpow.pop %v498
          %v500 = vadd.f32 %v499, 1.0
          %v501 = vrcp.pop %v500
          %v502 = vmul.f32 %v500, %v501
          %v503 = vsub.f32 1.0, %v502
          %v504 = vmul.f32 %v501, %v503
          %v505 = vadd.f32 %v501, %v504
          %vm506 = vweird.f32 %v500
          %vm507 = vweird.f32 %v501
          %vm508 = vmor %vm506, %vm507
          %v509 = vsel %vm508, %v501, %v505
          %v510 = vand.u32 2147483647, %v500
          %vm511 = vcmp.eq.f32.partialorder %v510, 8.507059e+37
          %v512 = vand.u32 %v500, 2147483648
          %v513 = vor.u32 1.1754944e-38, %v512
          %v514 = vsel %vm511, %v513, %v509
          %v515 = vmul.f32 1.0, %v514
          %v516 = vxor.u32 %v494, 2147483648
          %v517 = vmul.f32 %v516, 1.442695
          %v518 = vpow.pop %v517
          %v519 = vadd.f32 %v518, 1.0
          %v520 = vrcp.pop %v519
          %v521 = vmul.f32 %v519, %v520
          %v522 = vsub.f32 1.0, %v521
          %v523 = vmul.f32 %v520, %v522
          %v524 = vadd.f32 %v520, %v523
          %vm525 = vweird.f32 %v519
          %vm526 = vweird.f32 %v520
          %vm527 = vmor %vm525, %vm526
          %v528 = vsel %vm527, %v520, %v524
          %v529 = vand.u32 2147483647, %v519
          %vm530 = vcmp.eq.f32.partialorder %v529, 8.507059e+37
          %v531 = vand.u32 %v519, 2147483648
          %v532 = vor.u32 1.1754944e-38, %v531
          %v533 = vsel %vm530, %v532, %v528
          %v534 = vmul.f32 1.0, %v533
          %v535 = vtanh.pop %v495
          %v536 = vxor.u32 %v496, 2147483648
          %v537 = vmul.f32 %v536, 1.442695
          %v538 = vpow.pop %v537
          %v539 = vadd.f32 %v538, 1.0
          %v540 = vrcp.pop %v539
          %v541 = vmul.f32 %v539, %v540
          %v542 = vsub.f32 1.0, %v541
          %v543 = vmul.f32 %v540, %v542
          %v544 = vadd.f32 %v540, %v543
          %vm545 = vweird.f32 %v539
          %vm546 = vweird.f32 %v540
          %vm547 = vmor %vm545, %vm546
          %v548 = vsel %vm547, %v540, %v544
          %v549 = vand.u32 2147483647, %v539
          %vm550 = vcmp.eq.f32.partialorder %v549, 8.507059e+37
          %v551 = vand.u32 %v539, 2147483648
          %v552 = vor.u32 1.1754944e-38, %v551
          %v553 = vsel %vm550, %v552, %v548
          %v554 = vmul.f32 1.0, %v553
          %v555 = vmul.f32 %v534, %v412
          %v556 = vmul.f32 %v515, %v535
          %v557 = vadd.f32 %v555, %v556
          %v558 = vtanh.pop %v557
          %v559 = vmul.f32 %v554, %v558
          %vm560 = vcmp.gt.f32.partialorder %v410, 0.0
          %v561 = vsel %vm560, 1, 0
          %562 = vset.pattern.permute.xlu0 0
          %563 = vperm.xlu0 %562, %v561
          %v564 = vpop.permute.xlu0 %563
          %vm565 = vcmp.eq.s32.totalorder %v564, 1
          %v566 = vsel %vm565, %v559, %v411
          %567 = vst [vmem:[#allocation2] sm:$0xff] %v566
          %v568 = vsel %vm565, %v557, %v412
          %569 = vst [vmem:[#allocation3] sm:$0xff] %v568
          %v570 = vsel %vm565, %v559, 0.0
          %571 = vst [vmem:[%s307] sm:$0xff] %v570
          %s572 = scalar_lea.vmem %s260, 32 [#allocation4]
          %v573 = vld [vmem:[%s572] sm:$0xff]
          %v574 = vld [vmem:[%s572 + $0x8] sm:$0xff]
          %v575 = vld [vmem:[%s572 + $0x10] sm:$0xff]
          %v576 = vld [vmem:[%s572 + $0x18] sm:$0xff]
          %s577 = scalar_lea.vmem %s316, 8
          %v578 = vld [vmem:[%s577] sm:$0xff]
          %v579 = vld [vmem:[#allocation2] sm:$0xff]
          %v580 = vld [vmem:[#allocation3] sm:$0xff]
          %581 = vmatpush.msra.mxu0 %v398
          %582 = vmatpush.msra.mxu0 %v394
          %583 = vmatpush.msra.mxu0 %v390
          %584 = vmatpush.msra.mxu0 %v386
          %585 = vmatpush.msra.mxu0 %v382
          %586 = vmatpush.msra.mxu0 %v378
          %587 = vmatpush.msra.mxu0 %v374
          %588 = vmatpush.msra.mxu0 %v370
          %589 = vmatpush.msra.mxu0 %v366
          %590 = vmatpush.msra.mxu0 %v362
          %591 = vmatpush.msra.mxu0 %v358
          %592 = vmatpush.msra.mxu0 %v354
          %593 = vmatpush.msra.mxu0 %v350
          %594 = vmatpush.msra.mxu0 %v346
          %595 = vmatpush.msra.mxu0 %v342
          %596 = vmatpush.msra.mxu0 %v338
          %597 = vmatmul.f32.gmra.mxu0 %v579
          %v598 = vpop.f32.mrf.mxu0
          %v599 = vadd.f32 0.0, %v598
          %600 = vdwg.mxu0
          %601 = vmatpush.msra.mxu0 %v399
          %602 = vmatpush.msra.mxu0 %v395
          %603 = vmatpush.msra.mxu0 %v391
          %604 = vmatpush.msra.mxu0 %v387
          %605 = vmatpush.msra.mxu0 %v383
          %606 = vmatpush.msra.mxu0 %v379
          %607 = vmatpush.msra.mxu0 %v375
          %608 = vmatpush.msra.mxu0 %v371
          %609 = vmatpush.msra.mxu0 %v367
          %610 = vmatpush.msra.mxu0 %v363
          %611 = vmatpush.msra.mxu0 %v359
          %612 = vmatpush.msra.mxu0 %v355
          %613 = vmatpush.msra.mxu0 %v351
          %614 = vmatpush.msra.mxu0 %v347
          %615 = vmatpush.msra.mxu0 %v343
          %616 = vmatpush.msra.mxu0 %v339
          %617 = vmatmul.f32.gmra.mxu0 %v579
          %v618 = vpop.f32.mrf.mxu0
          %v619 = vadd.f32 0.0, %v618
          %620 = vdwg.mxu0
          %621 = vmatpush.msra.mxu0 %v400
          %622 = vmatpush.msra.mxu0 %v396
          %623 = vmatpush.msra.mxu0 %v392
          %624 = vmatpush.msra.mxu0 %v388
          %625 = vmatpush.msra.mxu0 %v384
          %626 = vmatpush.msra.mxu0 %v380
          %627 = vmatpush.msra.mxu0 %v376
          %628 = vmatpush.msra.mxu0 %v372
          %629 = vmatpush.msra.mxu0 %v368
          %630 = vmatpush.msra.mxu0 %v364
          %631 = vmatpush.msra.mxu0 %v360
          %632 = vmatpush.msra.mxu0 %v356
          %633 = vmatpush.msra.mxu0 %v352
          %634 = vmatpush.msra.mxu0 %v348
          %635 = vmatpush.msra.mxu0 %v344
          %636 = vmatpush.msra.mxu0 %v340
          %637 = vmatmul.f32.gmra.mxu0 %v579
          %v638 = vpop.f32.mrf.mxu0
          %v639 = vadd.f32 0.0, %v638
          %640 = vdwg.mxu0
          %641 = vmatpush.msra.mxu0 %v401
          %642 = vmatpush.msra.mxu0 %v397
          %643 = vmatpush.msra.mxu0 %v393
          %644 = vmatpush.msra.mxu0 %v389
          %645 = vmatpush.msra.mxu0 %v385
          %646 = vmatpush.msra.mxu0 %v381
          %647 = vmatpush.msra.mxu0 %v377
          %648 = vmatpush.msra.mxu0 %v373
          %649 = vmatpush.msra.mxu0 %v369
          %650 = vmatpush.msra.mxu0 %v365
          %651 = vmatpush.msra.mxu0 %v361
          %652 = vmatpush.msra.mxu0 %v357
          %653 = vmatpush.msra.mxu0 %v353
          %654 = vmatpush.msra.mxu0 %v349
          %655 = vmatpush.msra.mxu0 %v345
          %656 = vmatpush.msra.mxu0 %v341
          %657 = vmatmul.f32.gmra.mxu0 %v579
          %v658 = vpop.f32.mrf.mxu0
          %v659 = vadd.f32 0.0, %v658
          %660 = vdwg.mxu0
          %v661 = vadd.f32 %v573, %v599
          %v662 = vadd.f32 %v574, %v619
          %v663 = vadd.f32 %v575, %v639
          %v664 = vadd.f32 %v576, %v659
          %v665 = vxor.u32 %v661, 2147483648
          %v666 = vmul.f32 %v665, 1.442695
          %v667 = vpow.pop %v666
          %v668 = vadd.f32 %v667, 1.0
          %v669 = vrcp.pop %v668
          %v670 = vmul.f32 %v668, %v669
          %v671 = vsub.f32 1.0, %v670
          %v672 = vmul.f32 %v669, %v671
          %v673 = vadd.f32 %v669, %v672
          %vm674 = vweird.f32 %v668
          %vm675 = vweird.f32 %v669
          %vm676 = vmor %vm674, %vm675
          %v677 = vsel %vm676, %v669, %v673
          %v678 = vand.u32 2147483647, %v668
          %vm679 = vcmp.eq.f32.partialorder %v678, 8.507059e+37
          %v680 = vand.u32 %v668, 2147483648
          %v681 = vor.u32 1.1754944e-38, %v680
          %v682 = vsel %vm679, %v681, %v677
          %v683 = vmul.f32 1.0, %v682
          %v684 = vxor.u32 %v662, 2147483648
          %v685 = vmul.f32 %v684, 1.442695
          %v686 = vpow.pop %v685
          %v687 = vadd.f32 %v686, 1.0
          %v688 = vrcp.pop %v687
          %v689 = vmul.f32 %v687, %v688
          %v690 = vsub.f32 1.0, %v689
          %v691 = vmul.f32 %v688, %v690
          %v692 = vadd.f32 %v688, %v691
          %vm693 = vweird.f32 %v687
          %vm694 = vweird.f32 %v688
          %vm695 = vmor %vm693, %vm694
          %v696 = vsel %vm695, %v688, %v692
          %v697 = vand.u32 2147483647, %v687
          %vm698 = vcmp.eq.f32.partialorder %v697, 8.507059e+37
          %v699 = vand.u32 %v687, 2147483648
          %v700 = vor.u32 1.1754944e-38, %v699
          %v701 = vsel %vm698, %v700, %v696
          %v702 = vmul.f32 1.0, %v701
          %v703 = vtanh.pop %v663
          %v704 = vxor.u32 %v664, 2147483648
          %v705 = vmul.f32 %v704, 1.442695
          %v706 = vpow.pop %v705
          %v707 = vadd.f32 %v706, 1.0
          %v708 = vrcp.pop %v707
          %v709 = vmul.f32 %v707, %v708
          %v710 = vsub.f32 1.0, %v709
          %v711 = vmul.f32 %v708, %v710
          %v712 = vadd.f32 %v708, %v711
          %vm713 = vweird.f32 %v707
          %vm714 = vweird.f32 %v708
          %vm715 = vmor %vm713, %vm714
          %v716 = vsel %vm715, %v708, %v712
          %v717 = vand.u32 2147483647, %v707
          %vm718 = vcmp.eq.f32.partialorder %v717, 8.507059e+37
          %v719 = vand.u32 %v707, 2147483648
          %v720 = vor.u32 1.1754944e-38, %v719
          %v721 = vsel %vm718, %v720, %v716
          %v722 = vmul.f32 1.0, %v721
          %v723 = vmul.f32 %v702, %v580
          %v724 = vmul.f32 %v683, %v703
          %v725 = vadd.f32 %v723, %v724
          %v726 = vtanh.pop %v725
          %v727 = vmul.f32 %v722, %v726
          %vm728 = vcmp.gt.f32.partialorder %v578, 0.0
          %v729 = vsel %vm728, 1, 0
          %730 = vset.pattern.permute.xlu0 0
          %731 = vperm.xlu0 %730, %v729
          %v732 = vpop.permute.xlu0 %731
          %vm733 = vcmp.eq.s32.totalorder %v732, 1
          %v734 = vsel %vm733, %v727, %v579
          %735 = vst [vmem:[#allocation2] sm:$0xff] %v734
          %v736 = vsel %vm733, %v725, %v580
          %737 = vst [vmem:[#allocation3] sm:$0xff] %v736
          %v738 = vsel %vm733, %v727, 0.0
          %s739 = scalar_lea.vmem %s307, 8 [#allocation9]
          %740 = vst [vmem:[%s739] sm:$0xff] %v738
          %s741 = scalar_lea.vmem %s260, 64 [#allocation4]
          %v742 = vld [vmem:[%s741] sm:$0xff]
          %v743 = vld [vmem:[%s741 + $0x8] sm:$0xff]
          %v744 = vld [vmem:[%s741 + $0x10] sm:$0xff]
          %v745 = vld [vmem:[%s741 + $0x18] sm:$0xff]
          %s746 = scalar_lea.vmem %s316, 16
          %v747 = vld [vmem:[%s746] sm:$0xff]
          %v748 = vld [vmem:[#allocation2] sm:$0xff]
          %v749 = vld [vmem:[#allocation3] sm:$0xff]
          %750 = vmatpush.msra.mxu0 %v398
          %751 = vmatpush.msra.mxu0 %v394
          %752 = vmatpush.msra.mxu0 %v390
          %753 = vmatpush.msra.mxu0 %v386
          %754 = vmatpush.msra.mxu0 %v382
          %755 = vmatpush.msra.mxu0 %v378
          %756 = vmatpush.msra.mxu0 %v374
          %757 = vmatpush.msra.mxu0 %v370
          %758 = vmatpush.msra.mxu0 %v366
          %759 = vmatpush.msra.mxu0 %v362
          %760 = vmatpush.msra.mxu0 %v358
          %761 = vmatpush.msra.mxu0 %v354
          %762 = vmatpush.msra.mxu0 %v350
          %763 = vmatpush.msra.mxu0 %v346
          %764 = vmatpush.msra.mxu0 %v342
          %765 = vmatpush.msra.mxu0 %v338
          %766 = vmatmul.f32.gmra.mxu0 %v748
          %v767 = vpop.f32.mrf.mxu0
          %v768 = vadd.f32 0.0, %v767
          %769 = vdwg.mxu0
          %770 = vmatpush.msra.mxu0 %v399
          %771 = vmatpush.msra.mxu0 %v395
          %772 = vmatpush.msra.mxu0 %v391
          %773 = vmatpush.msra.mxu0 %v387
          %774 = vmatpush.msra.mxu0 %v383
          %775 = vmatpush.msra.mxu0 %v379
          %776 = vmatpush.msra.mxu0 %v375
          %777 = vmatpush.msra.mxu0 %v371
          %778 = vmatpush.msra.mxu0 %v367
          %779 = vmatpush.msra.mxu0 %v363
          %780 = vmatpush.msra.mxu0 %v359
          %781 = vmatpush.msra.mxu0 %v355
          %782 = vmatpush.msra.mxu0 %v351
          %783 = vmatpush.msra.mxu0 %v347
          %784 = vmatpush.msra.mxu0 %v343
          %785 = vmatpush.msra.mxu0 %v339
          %786 = vmatmul.f32.gmra.mxu0 %v748
          %v787 = vpop.f32.mrf.mxu0
          %v788 = vadd.f32 0.0, %v787
          %789 = vdwg.mxu0
          %790 = vmatpush.msra.mxu0 %v400
          %791 = vmatpush.msra.mxu0 %v396
          %792 = vmatpush.msra.mxu0 %v392
          %793 = vmatpush.msra.mxu0 %v388
          %794 = vmatpush.msra.mxu0 %v384
          %795 = vmatpush.msra.mxu0 %v380
          %796 = vmatpush.msra.mxu0 %v376
          %797 = vmatpush.msra.mxu0 %v372
          %798 = vmatpush.msra.mxu0 %v368
          %799 = vmatpush.msra.mxu0 %v364
          %800 = vmatpush.msra.mxu0 %v360
          %801 = vmatpush.msra.mxu0 %v356
          %802 = vmatpush.msra.mxu0 %v352
          %803 = vmatpush.msra.mxu0 %v348
          %804 = vmatpush.msra.mxu0 %v344
          %805 = vmatpush.msra.mxu0 %v340
          %806 = vmatmul.f32.gmra.mxu0 %v748
          %v807 = vpop.f32.mrf.mxu0
          %v808 = vadd.f32 0.0, %v807
          %809 = vdwg.mxu0
          %810 = vmatpush.msra.mxu0 %v401
          %811 = vmatpush.msra.mxu0 %v397
          %812 = vmatpush.msra.mxu0 %v393
          %813 = vmatpush.msra.mxu0 %v389
          %814 = vmatpush.msra.mxu0 %v385
          %815 = vmatpush.msra.mxu0 %v381
          %816 = vmatpush.msra.mxu0 %v377
          %817 = vmatpush.msra.mxu0 %v373
          %818 = vmatpush.msra.mxu0 %v369
          %819 = vmatpush.msra.mxu0 %v365
          %820 = vmatpush.msra.mxu0 %v361
          %821 = vmatpush.msra.mxu0 %v357
          %822 = vmatpush.msra.mxu0 %v353
          %823 = vmatpush.msra.mxu0 %v349
          %824 = vmatpush.msra.mxu0 %v345
          %825 = vmatpush.msra.mxu0 %v341
          %826 = vmatmul.f32.gmra.mxu0 %v748
          %v827 = vpop.f32.mrf.mxu0
          %v828 = vadd.f32 0.0, %v827
          %829 = vdwg.mxu0
          %v830 = vadd.f32 %v742, %v768
          %v831 = vadd.f32 %v743, %v788
          %v832 = vadd.f32 %v744, %v808
          %v833 = vadd.f32 %v745, %v828
          %v834 = vxor.u32 %v830, 2147483648
          %v835 = vmul.f32 %v834, 1.442695
          %v836 = vpow.pop %v835
          %v837 = vadd.f32 %v836, 1.0
          %v838 = vrcp.pop %v837
          %v839 = vmul.f32 %v837, %v838
          %v840 = vsub.f32 1.0, %v839
          %v841 = vmul.f32 %v838, %v840
          %v842 = vadd.f32 %v838, %v841
          %vm843 = vweird.f32 %v837
          %vm844 = vweird.f32 %v838
          %vm845 = vmor %vm843, %vm844
          %v846 = vsel %vm845, %v838, %v842
          %v847 = vand.u32 2147483647, %v837
          %vm848 = vcmp.eq.f32.partialorder %v847, 8.507059e+37
          %v849 = vand.u32 %v837, 2147483648
          %v850 = vor.u32 1.1754944e-38, %v849
          %v851 = vsel %vm848, %v850, %v846
          %v852 = vmul.f32 1.0, %v851
          %v853 = vxor.u32 %v831, 2147483648
          %v854 = vmul.f32 %v853, 1.442695
          %v855 = vpow.pop %v854
          %v856 = vadd.f32 %v855, 1.0
          %v857 = vrcp.pop %v856
          %v858 = vmul.f32 %v856, %v857
          %v859 = vsub.f32 1.0, %v858
          %v860 = vmul.f32 %v857, %v859
          %v861 = vadd.f32 %v857, %v860
          %vm862 = vweird.f32 %v856
          %vm863 = vweird.f32 %v857
          %vm864 = vmor %vm862, %vm863
          %v865 = vsel %vm864, %v857, %v861
          %v866 = vand.u32 2147483647, %v856
          %vm867 = vcmp.eq.f32.partialorder %v866, 8.507059e+37
          %v868 = vand.u32 %v856, 2147483648
          %v869 = vor.u32 1.1754944e-38, %v868
          %v870 = vsel %vm867, %v869, %v865
          %v871 = vmul.f32 1.0, %v870
          %v872 = vtanh.pop %v832
          %v873 = vxor.u32 %v833, 2147483648
          %v874 = vmul.f32 %v873, 1.442695
          %v875 = vpow.pop %v874
          %v876 = vadd.f32 %v875, 1.0
          %v877 = vrcp.pop %v876
          %v878 = vmul.f32 %v876, %v877
          %v879 = vsub.f32 1.0, %v878
          %v880 = vmul.f32 %v877, %v879
          %v881 = vadd.f32 %v877, %v880
          %vm882 = vweird.f32 %v876
          %vm883 = vweird.f32 %v877
          %vm884 = vmor %vm882, %vm883
          %v885 = vsel %vm884, %v877, %v881
          %v886 = vand.u32 2147483647, %v876
          %vm887 = vcmp.eq.f32.partialorder %v886, 8.507059e+37
          %v888 = vand.u32 %v876, 2147483648
          %v889 = vor.u32 1.1754944e-38, %v888
          %v890 = vsel %vm887, %v889, %v885
          %v891 = vmul.f32 1.0, %v890
          %v892 = vmul.f32 %v871, %v749
          %v893 = vmul.f32 %v852, %v872
          %v894 = vadd.f32 %v892, %v893
          %v895 = vtanh.pop %v894
          %v896 = vmul.f32 %v891, %v895
          %vm897 = vcmp.gt.f32.partialorder %v747, 0.0
          %v898 = vsel %vm897, 1, 0
          %899 = vset.pattern.permute.xlu0 0
          %900 = vperm.xlu0 %899, %v898
          %v901 = vpop.permute.xlu0 %900
          %vm902 = vcmp.eq.s32.totalorder %v901, 1
          %v903 = vsel %vm902, %v896, %v748
          %904 = vst [vmem:[#allocation2] sm:$0xff] %v903
          %v905 = vsel %vm902, %v894, %v749
          %906 = vst [vmem:[#allocation3] sm:$0xff] %v905
          %v907 = vsel %vm902, %v896, 0.0
          %s908 = scalar_lea.vmem %s307, 16 [#allocation9]
          %909 = vst [vmem:[%s908] sm:$0xff] %v907
          %s910 = scalar_lea.vmem %s260, 96 [#allocation4]
          %v911 = vld [vmem:[%s910] sm:$0xff]
          %v912 = vld [vmem:[%s910 + $0x8] sm:$0xff]
          %v913 = vld [vmem:[%s910 + $0x10] sm:$0xff]
          %v914 = vld [vmem:[%s910 + $0x18] sm:$0xff]
          %s915 = scalar_lea.vmem %s316, 24
          %v916 = vld [vmem:[%s915] sm:$0xff]
          %v917 = vld [vmem:[#allocation2] sm:$0xff]
          %v918 = vld [vmem:[#allocation3] sm:$0xff]
          %919 = vmatpush.msra.mxu0 %v398
          %920 = vmatpush.msra.mxu0 %v394
          %921 = vmatpush.msra.mxu0 %v390
          %922 = vmatpush.msra.mxu0 %v386
          %923 = vmatpush.msra.mxu0 %v382
          %924 = vmatpush.msra.mxu0 %v378
          %925 = vmatpush.msra.mxu0 %v374
          %926 = vmatpush.msra.mxu0 %v370
          %927 = vmatpush.msra.mxu0 %v366
          %928 = vmatpush.msra.mxu0 %v362
          %929 = vmatpush.msra.mxu0 %v358
          %930 = vmatpush.msra.mxu0 %v354
          %931 = vmatpush.msra.mxu0 %v350
          %932 = vmatpush.msra.mxu0 %v346
          %933 = vmatpush.msra.mxu0 %v342
          %934 = vmatpush.msra.mxu0 %v338
          %935 = vmatmul.f32.gmra.mxu0 %v917
          %v936 = vpop.f32.mrf.mxu0
          %v937 = vadd.f32 0.0, %v936
          %938 = vdwg.mxu0
          %939 = vmatpush.msra.mxu0 %v399
          %940 = vmatpush.msra.mxu0 %v395
          %941 = vmatpush.msra.mxu0 %v391
          %942 = vmatpush.msra.mxu0 %v387
          %943 = vmatpush.msra.mxu0 %v383
          %944 = vmatpush.msra.mxu0 %v379
          %945 = vmatpush.msra.mxu0 %v375
          %946 = vmatpush.msra.mxu0 %v371
          %947 = vmatpush.msra.mxu0 %v367
          %948 = vmatpush.msra.mxu0 %v363
          %949 = vmatpush.msra.mxu0 %v359
          %950 = vmatpush.msra.mxu0 %v355
          %951 = vmatpush.msra.mxu0 %v351
          %952 = vmatpush.msra.mxu0 %v347
          %953 = vmatpush.msra.mxu0 %v343
          %954 = vmatpush.msra.mxu0 %v339
          %955 = vmatmul.f32.gmra.mxu0 %v917
          %v956 = vpop.f32.mrf.mxu0
          %v957 = vadd.f32 0.0, %v956
          %958 = vdwg.mxu0
          %959 = vmatpush.msra.mxu0 %v400
          %960 = vmatpush.msra.mxu0 %v396
          %961 = vmatpush.msra.mxu0 %v392
          %962 = vmatpush.msra.mxu0 %v388
          %963 = vmatpush.msra.mxu0 %v384
          %964 = vmatpush.msra.mxu0 %v380
          %965 = vmatpush.msra.mxu0 %v376
          %966 = vmatpush.msra.mxu0 %v372
          %967 = vmatpush.msra.mxu0 %v368
          %968 = vmatpush.msra.mxu0 %v364
          %969 = vmatpush.msra.mxu0 %v360
          %970 = vmatpush.msra.mxu0 %v356
          %971 = vmatpush.msra.mxu0 %v352
          %972 = vmatpush.msra.mxu0 %v348
          %973 = vmatpush.msra.mxu0 %v344
          %974 = vmatpush.msra.mxu0 %v340
          %975 = vmatmul.f32.gmra.mxu0 %v917
          %v976 = vpop.f32.mrf.mxu0
          %v977 = vadd.f32 0.0, %v976
          %978 = vdwg.mxu0
          %979 = vmatpush.msra.mxu0 %v401
          %980 = vmatpush.msra.mxu0 %v397
          %981 = vmatpush.msra.mxu0 %v393
          %982 = vmatpush.msra.mxu0 %v389
          %983 = vmatpush.msra.mxu0 %v385
          %984 = vmatpush.msra.mxu0 %v381
          %985 = vmatpush.msra.mxu0 %v377
          %986 = vmatpush.msra.mxu0 %v373
          %987 = vmatpush.msra.mxu0 %v369
          %988 = vmatpush.msra.mxu0 %v365
          %989 = vmatpush.msra.mxu0 %v361
          %990 = vmatpush.msra.mxu0 %v357
          %991 = vmatpush.msra.mxu0 %v353
          %992 = vmatpush.msra.mxu0 %v349
          %993 = vmatpush.msra.mxu0 %v345
          %994 = vmatpush.msra.mxu0 %v341
          %995 = vmatmul.f32.gmra.mxu0 %v917
          %v996 = vpop.f32.mrf.mxu0
          %v997 = vadd.f32 0.0, %v996
          %998 = vdwg.mxu0
          %v999 = vadd.f32 %v911, %v937
          %v1000 = vadd.f32 %v912, %v957
          %v1001 = vadd.f32 %v913, %v977
          %v1002 = vadd.f32 %v914, %v997
          %v1003 = vxor.u32 %v999, 2147483648
          %v1004 = vmul.f32 %v1003, 1.442695
          %v1005 = vpow.pop %v1004
          %v1006 = vadd.f32 %v1005, 1.0
          %v1007 = vrcp.pop %v1006
          %v1008 = vmul.f32 %v1006, %v1007
          %v1009 = vsub.f32 1.0, %v1008
          %v1010 = vmul.f32 %v1007, %v1009
          %v1011 = vadd.f32 %v1007, %v1010
          %vm1012 = vweird.f32 %v1006
          %vm1013 = vweird.f32 %v1007
          %vm1014 = vmor %vm1012, %vm1013
          %v1015 = vsel %vm1014, %v1007, %v1011
          %v1016 = vand.u32 2147483647, %v1006
          %vm1017 = vcmp.eq.f32.partialorder %v1016, 8.507059e+37
          %v1018 = vand.u32 %v1006, 2147483648
          %v1019 = vor.u32 1.1754944e-38, %v1018
          %v1020 = vsel %vm1017, %v1019, %v1015
          %v1021 = vmul.f32 1.0, %v1020
          %v1022 = vxor.u32 %v1000, 2147483648
          %v1023 = vmul.f32 %v1022, 1.442695
          %v1024 = vpow.pop %v1023
          %v1025 = vadd.f32 %v1024, 1.0
          %v1026 = vrcp.pop %v1025
          %v1027 = vmul.f32 %v1025, %v1026
          %v1028 = vsub.f32 1.0, %v1027
          %v1029 = vmul.f32 %v1026, %v1028
          %v1030 = vadd.f32 %v1026, %v1029
          %vm1031 = vweird.f32 %v1025
          %vm1032 = vweird.f32 %v1026
          %vm1033 = vmor %vm1031, %vm1032
          %v1034 = vsel %vm1033, %v1026, %v1030
          %v1035 = vand.u32 2147483647, %v1025
          %vm1036 = vcmp.eq.f32.partialorder %v1035, 8.507059e+37
          %v1037 = vand.u32 %v1025, 2147483648
          %v1038 = vor.u32 1.1754944e-38, %v1037
          %v1039 = vsel %vm1036, %v1038, %v1034
          %v1040 = vmul.f32 1.0, %v1039
          %v1041 = vtanh.pop %v1001
          %v1042 = vxor.u32 %v1002, 2147483648
          %v1043 = vmul.f32 %v1042, 1.442695
          %v1044 = vpow.pop %v1043
          %v1045 = vadd.f32 %v1044, 1.0
          %v1046 = vrcp.pop %v1045
          %v1047 = vmul.f32 %v1045, %v1046
          %v1048 = vsub.f32 1.0, %v1047
          %v1049 = vmul.f32 %v1046, %v1048
          %v1050 = vadd.f32 %v1046, %v1049
          %vm1051 = vweird.f32 %v1045
          %vm1052 = vweird.f32 %v1046
          %vm1053 = vmor %vm1051, %vm1052
          %v1054 = vsel %vm1053, %v1046, %v1050
          %v1055 = vand.u32 2147483647, %v1045
          %vm1056 = vcmp.eq.f32.partialorder %v1055, 8.507059e+37
          %v1057 = vand.u32 %v1045, 2147483648
          %v1058 = vor.u32 1.1754944e-38, %v1057
          %v1059 = vsel %vm1056, %v1058, %v1054
          %v1060 = vmul.f32 1.0, %v1059
          %v1061 = vmul.f32 %v1040, %v918
          %v1062 = vmul.f32 %v1021, %v1041
          %v1063 = vadd.f32 %v1061, %v1062
          %v1064 = vtanh.pop %v1063
          %v1065 = vmul.f32 %v1060, %v1064
          %vm1066 = vcmp.gt.f32.partialorder %v916, 0.0
          %v1067 = vsel %vm1066, 1, 0
          %1068 = vset.pattern.permute.xlu0 0
          %1069 = vperm.xlu0 %1068, %v1067
          %v1070 = vpop.permute.xlu0 %1069
          %vm1071 = vcmp.eq.s32.totalorder %v1070, 1
          %v1072 = vsel %vm1071, %v1065, %v917
          %1073 = vst [vmem:[#allocation2] sm:$0xff] %v1072
          %v1074 = vsel %vm1071, %v1063, %v918
          %1075 = vst [vmem:[#allocation3] sm:$0xff] %v1074
          %v1076 = vsel %vm1071, %v1065, 0.0
          %s1077 = scalar_lea.vmem %s307, 24 [#allocation9]
          %1078 = vst [vmem:[%s1077] sm:$0xff] %v1076
          %s1079 = scalar_lea.vmem %s260, 128 [#allocation4]
          %v1080 = vld [vmem:[%s1079] sm:$0xff]
          %v1081 = vld [vmem:[%s1079 + $0x8] sm:$0xff]
          %v1082 = vld [vmem:[%s1079 + $0x10] sm:$0xff]
          %v1083 = vld [vmem:[%s1079 + $0x18] sm:$0xff]
          %s1084 = scalar_lea.vmem %s316, 32
          %v1085 = vld [vmem:[%s1084] sm:$0xff]
          %v1086 = vld [vmem:[#allocation2] sm:$0xff]
          %v1087 = vld [vmem:[#allocation3] sm:$0xff]
          %1088 = vmatpush.msra.mxu0 %v398
          %1089 = vmatpush.msra.mxu0 %v394
          %1090 = vmatpush.msra.mxu0 %v390
          %1091 = vmatpush.msra.mxu0 %v386
          %1092 = vmatpush.msra.mxu0 %v382
          %1093 = vmatpush.msra.mxu0 %v378
          %1094 = vmatpush.msra.mxu0 %v374
          %1095 = vmatpush.msra.mxu0 %v370
          %1096 = vmatpush.msra.mxu0 %v366
          %1097 = vmatpush.msra.mxu0 %v362
          %1098 = vmatpush.msra.mxu0 %v358
          %1099 = vmatpush.msra.mxu0 %v354
          %1100 = vmatpush.msra.mxu0 %v350
          %1101 = vmatpush.msra.mxu0 %v346
          %1102 = vmatpush.msra.mxu0 %v342
          %1103 = vmatpush.msra.mxu0 %v338
          %1104 = vmatmul.f32.gmra.mxu0 %v1086
          %v1105 = vpop.f32.mrf.mxu0
          %v1106 = vadd.f32 0.0, %v1105
          %1107 = vdwg.mxu0
          %1108 = vmatpush.msra.mxu0 %v399
          %1109 = vmatpush.msra.mxu0 %v395
          %1110 = vmatpush.msra.mxu0 %v391
          %1111 = vmatpush.msra.mxu0 %v387
          %1112 = vmatpush.msra.mxu0 %v383
          %1113 = vmatpush.msra.mxu0 %v379
          %1114 = vmatpush.msra.mxu0 %v375
          %1115 = vmatpush.msra.mxu0 %v371
          %1116 = vmatpush.msra.mxu0 %v367
          %1117 = vmatpush.msra.mxu0 %v363
          %1118 = vmatpush.msra.mxu0 %v359
          %1119 = vmatpush.msra.mxu0 %v355
          %1120 = vmatpush.msra.mxu0 %v351
          %1121 = vmatpush.msra.mxu0 %v347
          %1122 = vmatpush.msra.mxu0 %v343
          %1123 = vmatpush.msra.mxu0 %v339
          %1124 = vmatmul.f32.gmra.mxu0 %v1086
          %v1125 = vpop.f32.mrf.mxu0
          %v1126 = vadd.f32 0.0, %v1125
          %1127 = vdwg.mxu0
          %1128 = vmatpush.msra.mxu0 %v400
          %1129 = vmatpush.msra.mxu0 %v396
          %1130 = vmatpush.msra.mxu0 %v392
          %1131 = vmatpush.msra.mxu0 %v388
          %1132 = vmatpush.msra.mxu0 %v384
          %1133 = vmatpush.msra.mxu0 %v380
          %1134 = vmatpush.msra.mxu0 %v376
          %1135 = vmatpush.msra.mxu0 %v372
          %1136 = vmatpush.msra.mxu0 %v368
          %1137 = vmatpush.msra.mxu0 %v364
          %1138 = vmatpush.msra.mxu0 %v360
          %1139 = vmatpush.msra.mxu0 %v356
          %1140 = vmatpush.msra.mxu0 %v352
          %1141 = vmatpush.msra.mxu0 %v348
          %1142 = vmatpush.msra.mxu0 %v344
          %1143 = vmatpush.msra.mxu0 %v340
          %1144 = vmatmul.f32.gmra.mxu0 %v1086
          %v1145 = vpop.f32.mrf.mxu0
          %v1146 = vadd.f32 0.0, %v1145
          %1147 = vdwg.mxu0
          %1148 = vmatpush.msra.mxu0 %v401
          %1149 = vmatpush.msra.mxu0 %v397
          %1150 = vmatpush.msra.mxu0 %v393
          %1151 = vmatpush.msra.mxu0 %v389
          %1152 = vmatpush.msra.mxu0 %v385
          %1153 = vmatpush.msra.mxu0 %v381
          %1154 = vmatpush.msra.mxu0 %v377
          %1155 = vmatpush.msra.mxu0 %v373
          %1156 = vmatpush.msra.mxu0 %v369
          %1157 = vmatpush.msra.mxu0 %v365
          %1158 = vmatpush.msra.mxu0 %v361
          %1159 = vmatpush.msra.mxu0 %v357
          %1160 = vmatpush.msra.mxu0 %v353
          %1161 = vmatpush.msra.mxu0 %v349
          %1162 = vmatpush.msra.mxu0 %v345
          %1163 = vmatpush.msra.mxu0 %v341
          %1164 = vmatmul.f32.gmra.mxu0 %v1086
          %v1165 = vpop.f32.mrf.mxu0
          %v1166 = vadd.f32 0.0, %v1165
          %1167 = vdwg.mxu0
          %v1168 = vadd.f32 %v1080, %v1106
          %v1169 = vadd.f32 %v1081, %v1126
          %v1170 = vadd.f32 %v1082, %v1146
          %v1171 = vadd.f32 %v1083, %v1166
          %v1172 = vxor.u32 %v1168, 2147483648
          %v1173 = vmul.f32 %v1172, 1.442695
          %v1174 = vpow.pop %v1173
          %v1175 = vadd.f32 %v1174, 1.0
          %v1176 = vrcp.pop %v1175
          %v1177 = vmul.f32 %v1175, %v1176
          %v1178 = vsub.f32 1.0, %v1177
          %v1179 = vmul.f32 %v1176, %v1178
          %v1180 = vadd.f32 %v1176, %v1179
          %vm1181 = vweird.f32 %v1175
          %vm1182 = vweird.f32 %v1176
          %vm1183 = vmor %vm1181, %vm1182
          %v1184 = vsel %vm1183, %v1176, %v1180
          %v1185 = vand.u32 2147483647, %v1175
          %vm1186 = vcmp.eq.f32.partialorder %v1185, 8.507059e+37
          %v1187 = vand.u32 %v1175, 2147483648
          %v1188 = vor.u32 1.1754944e-38, %v1187
          %v1189 = vsel %vm1186, %v1188, %v1184
          %v1190 = vmul.f32 1.0, %v1189
          %v1191 = vxor.u32 %v1169, 2147483648
          %v1192 = vmul.f32 %v1191, 1.442695
          %v1193 = vpow.pop %v1192
          %v1194 = vadd.f32 %v1193, 1.0
          %v1195 = vrcp.pop %v1194
          %v1196 = vmul.f32 %v1194, %v1195
          %v1197 = vsub.f32 1.0, %v1196
          %v1198 = vmul.f32 %v1195, %v1197
          %v1199 = vadd.f32 %v1195, %v1198
          %vm1200 = vweird.f32 %v1194
          %vm1201 = vweird.f32 %v1195
          %vm1202 = vmor %vm1200, %vm1201
          %v1203 = vsel %vm1202, %v1195, %v1199
          %v1204 = vand.u32 2147483647, %v1194
          %vm1205 = vcmp.eq.f32.partialorder %v1204, 8.507059e+37
          %v1206 = vand.u32 %v1194, 2147483648
          %v1207 = vor.u32 1.1754944e-38, %v1206
          %v1208 = vsel %vm1205, %v1207, %v1203
          %v1209 = vmul.f32 1.0, %v1208
          %v1210 = vtanh.pop %v1170
          %v1211 = vxor.u32 %v1171, 2147483648
          %v1212 = vmul.f32 %v1211, 1.442695
          %v1213 = vpow.pop %v1212
          %v1214 = vadd.f32 %v1213, 1.0
          %v1215 = vrcp.pop %v1214
          %v1216 = vmul.f32 %v1214, %v1215
          %v1217 = vsub.f32 1.0, %v1216
          %v1218 = vmul.f32 %v1215, %v1217
          %v1219 = vadd.f32 %v1215, %v1218
          %vm1220 = vweird.f32 %v1214
          %vm1221 = vweird.f32 %v1215
          %vm1222 = vmor %vm1220, %vm1221
          %v1223 = vsel %vm1222, %v1215, %v1219
          %v1224 = vand.u32 2147483647, %v1214
          %vm1225 = vcmp.eq.f32.partialorder %v1224, 8.507059e+37
          %v1226 = vand.u32 %v1214, 2147483648
          %v1227 = vor.u32 1.1754944e-38, %v1226
          %v1228 = vsel %vm1225, %v1227, %v1223
          %v1229 = vmul.f32 1.0, %v1228
          %v1230 = vmul.f32 %v1209, %v1087
          %v1231 = vmul.f32 %v1190, %v1210
          %v1232 = vadd.f32 %v1230, %v1231
          %v1233 = vtanh.pop %v1232
          %v1234 = vmul.f32 %v1229, %v1233
          %vm1235 = vcmp.gt.f32.partialorder %v1085, 0.0
          %v1236 = vsel %vm1235, 1, 0
          %1237 = vset.pattern.permute.xlu0 0
          %1238 = vperm.xlu0 %1237, %v1236
          %v1239 = vpop.permute.xlu0 %1238
          %vm1240 = vcmp.eq.s32.totalorder %v1239, 1
          %v1241 = vsel %vm1240, %v1234, %v1086
          %1242 = vst [vmem:[#allocation2] sm:$0xff] %v1241
          %v1243 = vsel %vm1240, %v1232, %v1087
          %1244 = vst [vmem:[#allocation3] sm:$0xff] %v1243
          %v1245 = vsel %vm1240, %v1234, 0.0
          %s1246 = scalar_lea.vmem %s307, 32 [#allocation9]
          %1247 = vst [vmem:[%s1246] sm:$0xff] %v1245
          %s1248 = scalar_lea.vmem %s260, 160 [#allocation4]
          %v1249 = vld [vmem:[%s1248] sm:$0xff]
          %v1250 = vld [vmem:[%s1248 + $0x8] sm:$0xff]
          %v1251 = vld [vmem:[%s1248 + $0x10] sm:$0xff]
          %v1252 = vld [vmem:[%s1248 + $0x18] sm:$0xff]
          %s1253 = scalar_lea.vmem %s316, 40
          %v1254 = vld [vmem:[%s1253] sm:$0xff]
          %v1255 = vld [vmem:[#allocation2] sm:$0xff]
          %v1256 = vld [vmem:[#allocation3] sm:$0xff]
          %1257 = vmatpush.msra.mxu0 %v398
          %1258 = vmatpush.msra.mxu0 %v394
          %1259 = vmatpush.msra.mxu0 %v390
          %1260 = vmatpush.msra.mxu0 %v386
          %1261 = vmatpush.msra.mxu0 %v382
          %1262 = vmatpush.msra.mxu0 %v378
          %1263 = vmatpush.msra.mxu0 %v374
          %1264 = vmatpush.msra.mxu0 %v370
          %1265 = vmatpush.msra.mxu0 %v366
          %1266 = vmatpush.msra.mxu0 %v362
          %1267 = vmatpush.msra.mxu0 %v358
          %1268 = vmatpush.msra.mxu0 %v354
          %1269 = vmatpush.msra.mxu0 %v350
          %1270 = vmatpush.msra.mxu0 %v346
          %1271 = vmatpush.msra.mxu0 %v342
          %1272 = vmatpush.msra.mxu0 %v338
          %1273 = vmatmul.f32.gmra.mxu0 %v1255
          %v1274 = vpop.f32.mrf.mxu0
          %v1275 = vadd.f32 0.0, %v1274
          %1276 = vdwg.mxu0
          %1277 = vmatpush.msra.mxu0 %v399
          %1278 = vmatpush.msra.mxu0 %v395
          %1279 = vmatpush.msra.mxu0 %v391
          %1280 = vmatpush.msra.mxu0 %v387
          %1281 = vmatpush.msra.mxu0 %v383
          %1282 = vmatpush.msra.mxu0 %v379
          %1283 = vmatpush.msra.mxu0 %v375
          %1284 = vmatpush.msra.mxu0 %v371
          %1285 = vmatpush.msra.mxu0 %v367
          %1286 = vmatpush.msra.mxu0 %v363
          %1287 = vmatpush.msra.mxu0 %v359
          %1288 = vmatpush.msra.mxu0 %v355
          %1289 = vmatpush.msra.mxu0 %v351
          %1290 = vmatpush.msra.mxu0 %v347
          %1291 = vmatpush.msra.mxu0 %v343
          %1292 = vmatpush.msra.mxu0 %v339
          %1293 = vmatmul.f32.gmra.mxu0 %v1255
          %v1294 = vpop.f32.mrf.mxu0
          %v1295 = vadd.f32 0.0, %v1294
          %1296 = vdwg.mxu0
          %1297 = vmatpush.msra.mxu0 %v400
          %1298 = vmatpush.msra.mxu0 %v396
          %1299 = vmatpush.msra.mxu0 %v392
          %1300 = vmatpush.msra.mxu0 %v388
          %1301 = vmatpush.msra.mxu0 %v384
          %1302 = vmatpush.msra.mxu0 %v380
          %1303 = vmatpush.msra.mxu0 %v376
          %1304 = vmatpush.msra.mxu0 %v372
          %1305 = vmatpush.msra.mxu0 %v368
          %1306 = vmatpush.msra.mxu0 %v364
          %1307 = vmatpush.msra.mxu0 %v360
          %1308 = vmatpush.msra.mxu0 %v356
          %1309 = vmatpush.msra.mxu0 %v352
          %1310 = vmatpush.msra.mxu0 %v348
          %1311 = vmatpush.msra.mxu0 %v344
          %1312 = vmatpush.msra.mxu0 %v340
          %1313 = vmatmul.f32.gmra.mxu0 %v1255
          %v1314 = vpop.f32.mrf.mxu0
          %v1315 = vadd.f32 0.0, %v1314
          %1316 = vdwg.mxu0
          %1317 = vmatpush.msra.mxu0 %v401
          %1318 = vmatpush.msra.mxu0 %v397
          %1319 = vmatpush.msra.mxu0 %v393
          %1320 = vmatpush.msra.mxu0 %v389
          %1321 = vmatpush.msra.mxu0 %v385
          %1322 = vmatpush.msra.mxu0 %v381
          %1323 = vmatpush.msra.mxu0 %v377
          %1324 = vmatpush.msra.mxu0 %v373
          %1325 = vmatpush.msra.mxu0 %v369
          %1326 = vmatpush.msra.mxu0 %v365
          %1327 = vmatpush.msra.mxu0 %v361
          %1328 = vmatpush.msra.mxu0 %v357
          %1329 = vmatpush.msra.mxu0 %v353
          %1330 = vmatpush.msra.mxu0 %v349
          %1331 = vmatpush.msra.mxu0 %v345
          %1332 = vmatpush.msra.mxu0 %v341
          %1333 = vmatmul.f32.gmra.mxu0 %v1255
          %v1334 = vpop.f32.mrf.mxu0
          %v1335 = vadd.f32 0.0, %v1334
          %1336 = vdwg.mxu0
          %v1337 = vadd.f32 %v1249, %v1275
          %v1338 = vadd.f32 %v1250, %v1295
          %v1339 = vadd.f32 %v1251, %v1315
          %v1340 = vadd.f32 %v1252, %v1335
          %v1341 = vxor.u32 %v1337, 2147483648
          %v1342 = vmul.f32 %v1341, 1.442695
          %v1343 = vpow.pop %v1342
          %v1344 = vadd.f32 %v1343, 1.0
          %v1345 = vrcp.pop %v1344
          %v1346 = vmul.f32 %v1344, %v1345
          %v1347 = vsub.f32 1.0, %v1346
          %v1348 = vmul.f32 %v1345, %v1347
          %v1349 = vadd.f32 %v1345, %v1348
          %vm1350 = vweird.f32 %v1344
          %vm1351 = vweird.f32 %v1345
          %vm1352 = vmor %vm1350, %vm1351
          %v1353 = vsel %vm1352, %v1345, %v1349
          %v1354 = vand.u32 2147483647, %v1344
          %vm1355 = vcmp.eq.f32.partialorder %v1354, 8.507059e+37
          %v1356 = vand.u32 %v1344, 2147483648
          %v1357 = vor.u32 1.1754944e-38, %v1356
          %v1358 = vsel %vm1355, %v1357, %v1353
          %v1359 = vmul.f32 1.0, %v1358
          %v1360 = vxor.u32 %v1338, 2147483648
          %v1361 = vmul.f32 %v1360, 1.442695
          %v1362 = vpow.pop %v1361
          %v1363 = vadd.f32 %v1362, 1.0
          %v1364 = vrcp.pop %v1363
          %v1365 = vmul.f32 %v1363, %v1364
          %v1366 = vsub.f32 1.0, %v1365
          %v1367 = vmul.f32 %v1364, %v1366
          %v1368 = vadd.f32 %v1364, %v1367
          %vm1369 = vweird.f32 %v1363
          %vm1370 = vweird.f32 %v1364
          %vm1371 = vmor %vm1369, %vm1370
          %v1372 = vsel %vm1371, %v1364, %v1368
          %v1373 = vand.u32 2147483647, %v1363
          %vm1374 = vcmp.eq.f32.partialorder %v1373, 8.507059e+37
          %v1375 = vand.u32 %v1363, 2147483648
          %v1376 = vor.u32 1.1754944e-38, %v1375
          %v1377 = vsel %vm1374, %v1376, %v1372
          %v1378 = vmul.f32 1.0, %v1377
          %v1379 = vtanh.pop %v1339
          %v1380 = vxor.u32 %v1340, 2147483648
          %v1381 = vmul.f32 %v1380, 1.442695
          %v1382 = vpow.pop %v1381
          %v1383 = vadd.f32 %v1382, 1.0
          %v1384 = vrcp.pop %v1383
          %v1385 = vmul.f32 %v1383, %v1384
          %v1386 = vsub.f32 1.0, %v1385
          %v1387 = vmul.f32 %v1384, %v1386
          %v1388 = vadd.f32 %v1384, %v1387
          %vm1389 = vweird.f32 %v1383
          %vm1390 = vweird.f32 %v1384
          %vm1391 = vmor %vm1389, %vm1390
          %v1392 = vsel %vm1391, %v1384, %v1388
          %v1393 = vand.u32 2147483647, %v1383
          %vm1394 = vcmp.eq.f32.partialorder %v1393, 8.507059e+37
          %v1395 = vand.u32 %v1383, 2147483648
          %v1396 = vor.u32 1.1754944e-38, %v1395
          %v1397 = vsel %vm1394, %v1396, %v1392
          %v1398 = vmul.f32 1.0, %v1397
          %v1399 = vmul.f32 %v1378, %v1256
          %v1400 = vmul.f32 %v1359, %v1379
          %v1401 = vadd.f32 %v1399, %v1400
          %v1402 = vtanh.pop %v1401
          %v1403 = vmul.f32 %v1398, %v1402
          %vm1404 = vcmp.gt.f32.partialorder %v1254, 0.0
          %v1405 = vsel %vm1404, 1, 0
          %1406 = vset.pattern.permute.xlu0 0
          %1407 = vperm.xlu0 %1406, %v1405
          %v1408 = vpop.permute.xlu0 %1407
          %vm1409 = vcmp.eq.s32.totalorder %v1408, 1
          %v1410 = vsel %vm1409, %v1403, %v1255
          %1411 = vst [vmem:[#allocation2] sm:$0xff] %v1410
          %v1412 = vsel %vm1409, %v1401, %v1256
          %1413 = vst [vmem:[#allocation3] sm:$0xff] %v1412
          %v1414 = vsel %vm1409, %v1403, 0.0
          %s1415 = scalar_lea.vmem %s307, 40 [#allocation9]
          %1416 = vst [vmem:[%s1415] sm:$0xff] %v1414
          %s1417 = scalar_lea.vmem %s260, 192 [#allocation4]
          %v1418 = vld [vmem:[%s1417] sm:$0xff]
          %v1419 = vld [vmem:[%s1417 + $0x8] sm:$0xff]
          %v1420 = vld [vmem:[%s1417 + $0x10] sm:$0xff]
          %v1421 = vld [vmem:[%s1417 + $0x18] sm:$0xff]
          %s1422 = scalar_lea.vmem %s316, 48
          %v1423 = vld [vmem:[%s1422] sm:$0xff]
          %v1424 = vld [vmem:[#allocation2] sm:$0xff]
          %v1425 = vld [vmem:[#allocation3] sm:$0xff]
          %1426 = vmatpush.msra.mxu0 %v398
          %1427 = vmatpush.msra.mxu0 %v394
          %1428 = vmatpush.msra.mxu0 %v390
          %1429 = vmatpush.msra.mxu0 %v386
          %1430 = vmatpush.msra.mxu0 %v382
          %1431 = vmatpush.msra.mxu0 %v378
          %1432 = vmatpush.msra.mxu0 %v374
          %1433 = vmatpush.msra.mxu0 %v370
          %1434 = vmatpush.msra.mxu0 %v366
          %1435 = vmatpush.msra.mxu0 %v362
          %1436 = vmatpush.msra.mxu0 %v358
          %1437 = vmatpush.msra.mxu0 %v354
          %1438 = vmatpush.msra.mxu0 %v350
          %1439 = vmatpush.msra.mxu0 %v346
          %1440 = vmatpush.msra.mxu0 %v342
          %1441 = vmatpush.msra.mxu0 %v338
          %1442 = vmatmul.f32.gmra.mxu0 %v1424
          %v1443 = vpop.f32.mrf.mxu0
          %v1444 = vadd.f32 0.0, %v1443
          %1445 = vdwg.mxu0
          %1446 = vmatpush.msra.mxu0 %v399
          %1447 = vmatpush.msra.mxu0 %v395
          %1448 = vmatpush.msra.mxu0 %v391
          %1449 = vmatpush.msra.mxu0 %v387
          %1450 = vmatpush.msra.mxu0 %v383
          %1451 = vmatpush.msra.mxu0 %v379
          %1452 = vmatpush.msra.mxu0 %v375
          %1453 = vmatpush.msra.mxu0 %v371
          %1454 = vmatpush.msra.mxu0 %v367
          %1455 = vmatpush.msra.mxu0 %v363
          %1456 = vmatpush.msra.mxu0 %v359
          %1457 = vmatpush.msra.mxu0 %v355
          %1458 = vmatpush.msra.mxu0 %v351
          %1459 = vmatpush.msra.mxu0 %v347
          %1460 = vmatpush.msra.mxu0 %v343
          %1461 = vmatpush.msra.mxu0 %v339
          %1462 = vmatmul.f32.gmra.mxu0 %v1424
          %v1463 = vpop.f32.mrf.mxu0
          %v1464 = vadd.f32 0.0, %v1463
          %1465 = vdwg.mxu0
          %1466 = vmatpush.msra.mxu0 %v400
          %1467 = vmatpush.msra.mxu0 %v396
          %1468 = vmatpush.msra.mxu0 %v392
          %1469 = vmatpush.msra.mxu0 %v388
          %1470 = vmatpush.msra.mxu0 %v384
          %1471 = vmatpush.msra.mxu0 %v380
          %1472 = vmatpush.msra.mxu0 %v376
          %1473 = vmatpush.msra.mxu0 %v372
          %1474 = vmatpush.msra.mxu0 %v368
          %1475 = vmatpush.msra.mxu0 %v364
          %1476 = vmatpush.msra.mxu0 %v360
          %1477 = vmatpush.msra.mxu0 %v356
          %1478 = vmatpush.msra.mxu0 %v352
          %1479 = vmatpush.msra.mxu0 %v348
          %1480 = vmatpush.msra.mxu0 %v344
          %1481 = vmatpush.msra.mxu0 %v340
          %1482 = vmatmul.f32.gmra.mxu0 %v1424
          %v1483 = vpop.f32.mrf.mxu0
          %v1484 = vadd.f32 0.0, %v1483
          %1485 = vdwg.mxu0
          %1486 = vmatpush.msra.mxu0 %v401
          %1487 = vmatpush.msra.mxu0 %v397
          %1488 = vmatpush.msra.mxu0 %v393
          %1489 = vmatpush.msra.mxu0 %v389
          %1490 = vmatpush.msra.mxu0 %v385
          %1491 = vmatpush.msra.mxu0 %v381
          %1492 = vmatpush.msra.mxu0 %v377
          %1493 = vmatpush.msra.mxu0 %v373
          %1494 = vmatpush.msra.mxu0 %v369
          %1495 = vmatpush.msra.mxu0 %v365
          %1496 = vmatpush.msra.mxu0 %v361
          %1497 = vmatpush.msra.mxu0 %v357
          %1498 = vmatpush.msra.mxu0 %v353
          %1499 = vmatpush.msra.mxu0 %v349
          %1500 = vmatpush.msra.mxu0 %v345
          %1501 = vmatpush.msra.mxu0 %v341
          %1502 = vmatmul.f32.gmra.mxu0 %v1424
          %v1503 = vpop.f32.mrf.mxu0
          %v1504 = vadd.f32 0.0, %v1503
          %1505 = vdwg.mxu0
          %v1506 = vadd.f32 %v1418, %v1444
          %v1507 = vadd.f32 %v1419, %v1464
          %v1508 = vadd.f32 %v1420, %v1484
          %v1509 = vadd.f32 %v1421, %v1504
          %v1510 = vxor.u32 %v1506, 2147483648
          %v1511 = vmul.f32 %v1510, 1.442695
          %v1512 = vpow.pop %v1511
          %v1513 = vadd.f32 %v1512, 1.0
          %v1514 = vrcp.pop %v1513
          %v1515 = vmul.f32 %v1513, %v1514
          %v1516 = vsub.f32 1.0, %v1515
          %v1517 = vmul.f32 %v1514, %v1516
          %v1518 = vadd.f32 %v1514, %v1517
          %vm1519 = vweird.f32 %v1513
          %vm1520 = vweird.f32 %v1514
          %vm1521 = vmor %vm1519, %vm1520
          %v1522 = vsel %vm1521, %v1514, %v1518
          %v1523 = vand.u32 2147483647, %v1513
          %vm1524 = vcmp.eq.f32.partialorder %v1523, 8.507059e+37
          %v1525 = vand.u32 %v1513, 2147483648
          %v1526 = vor.u32 1.1754944e-38, %v1525
          %v1527 = vsel %vm1524, %v1526, %v1522
          %v1528 = vmul.f32 1.0, %v1527
          %v1529 = vxor.u32 %v1507, 2147483648
          %v1530 = vmul.f32 %v1529, 1.442695
          %v1531 = vpow.pop %v1530
          %v1532 = vadd.f32 %v1531, 1.0
          %v1533 = vrcp.pop %v1532
          %v1534 = vmul.f32 %v1532, %v1533
          %v1535 = vsub.f32 1.0, %v1534
          %v1536 = vmul.f32 %v1533, %v1535
          %v1537 = vadd.f32 %v1533, %v1536
          %vm1538 = vweird.f32 %v1532
          %vm1539 = vweird.f32 %v1533
          %vm1540 = vmor %vm1538, %vm1539
          %v1541 = vsel %vm1540, %v1533, %v1537
          %v1542 = vand.u32 2147483647, %v1532
          %vm1543 = vcmp.eq.f32.partialorder %v1542, 8.507059e+37
          %v1544 = vand.u32 %v1532, 2147483648
          %v1545 = vor.u32 1.1754944e-38, %v1544
          %v1546 = vsel %vm1543, %v1545, %v1541
          %v1547 = vmul.f32 1.0, %v1546
          %v1548 = vtanh.pop %v1508
          %v1549 = vxor.u32 %v1509, 2147483648
          %v1550 = vmul.f32 %v1549, 1.442695
          %v1551 = vpow.pop %v1550
          %v1552 = vadd.f32 %v1551, 1.0
          %v1553 = vrcp.pop %v1552
          %v1554 = vmul.f32 %v1552, %v1553
          %v1555 = vsub.f32 1.0, %v1554
          %v1556 = vmul.f32 %v1553, %v1555
          %v1557 = vadd.f32 %v1553, %v1556
          %vm1558 = vweird.f32 %v1552
          %vm1559 = vweird.f32 %v1553
          %vm1560 = vmor %vm1558, %vm1559
          %v1561 = vsel %vm1560, %v1553, %v1557
          %v1562 = vand.u32 2147483647, %v1552
          %vm1563 = vcmp.eq.f32.partialorder %v1562, 8.507059e+37
          %v1564 = vand.u32 %v1552, 2147483648
          %v1565 = vor.u32 1.1754944e-38, %v1564
          %v1566 = vsel %vm1563, %v1565, %v1561
          %v1567 = vmul.f32 1.0, %v1566
          %v1568 = vmul.f32 %v1547, %v1425
          %v1569 = vmul.f32 %v1528, %v1548
          %v1570 = vadd.f32 %v1568, %v1569
          %v1571 = vtanh.pop %v1570
          %v1572 = vmul.f32 %v1567, %v1571
          %vm1573 = vcmp.gt.f32.partialorder %v1423, 0.0
          %v1574 = vsel %vm1573, 1, 0
          %1575 = vset.pattern.permute.xlu0 0
          %1576 = vperm.xlu0 %1575, %v1574
          %v1577 = vpop.permute.xlu0 %1576
          %vm1578 = vcmp.eq.s32.totalorder %v1577, 1
          %v1579 = vsel %vm1578, %v1572, %v1424
          %1580 = vst [vmem:[#allocation2] sm:$0xff] %v1579
          %v1581 = vsel %vm1578, %v1570, %v1425
          %1582 = vst [vmem:[#allocation3] sm:$0xff] %v1581
          %v1583 = vsel %vm1578, %v1572, 0.0
          %s1584 = scalar_lea.vmem %s307, 48 [#allocation9]
          %1585 = vst [vmem:[%s1584] sm:$0xff] %v1583
          %s1586 = scalar_lea.vmem %s260, 224 [#allocation4]
          %v1587 = vld [vmem:[%s1586] sm:$0xff]
          %v1588 = vld [vmem:[%s1586 + $0x8] sm:$0xff]
          %v1589 = vld [vmem:[%s1586 + $0x10] sm:$0xff]
          %v1590 = vld [vmem:[%s1586 + $0x18] sm:$0xff]
          %s1591 = scalar_lea.vmem %s316, 56
          %v1592 = vld [vmem:[%s1591] sm:$0xff]
          %v1593 = vld [vmem:[#allocation2] sm:$0xff]
          %v1594 = vld [vmem:[#allocation3] sm:$0xff]
          %1595 = vmatpush.msra.mxu0 %v398
          %1596 = vmatpush.msra.mxu0 %v394
          %1597 = vmatpush.msra.mxu0 %v390
          %1598 = vmatpush.msra.mxu0 %v386
          %1599 = vmatpush.msra.mxu0 %v382
          %1600 = vmatpush.msra.mxu0 %v378
          %1601 = vmatpush.msra.mxu0 %v374
          %1602 = vmatpush.msra.mxu0 %v370
          %1603 = vmatpush.msra.mxu0 %v366
          %1604 = vmatpush.msra.mxu0 %v362
          %1605 = vmatpush.msra.mxu0 %v358
          %1606 = vmatpush.msra.mxu0 %v354
          %1607 = vmatpush.msra.mxu0 %v350
          %1608 = vmatpush.msra.mxu0 %v346
          %1609 = vmatpush.msra.mxu0 %v342
          %1610 = vmatpush.msra.mxu0 %v338
          %1611 = vmatmul.f32.gmra.mxu0 %v1593
          %v1612 = vpop.f32.mrf.mxu0
          %v1613 = vadd.f32 0.0, %v1612
          %1614 = vdwg.mxu0
          %1615 = vmatpush.msra.mxu0 %v399
          %1616 = vmatpush.msra.mxu0 %v395
          %1617 = vmatpush.msra.mxu0 %v391
          %1618 = vmatpush.msra.mxu0 %v387
          %1619 = vmatpush.msra.mxu0 %v383
          %1620 = vmatpush.msra.mxu0 %v379
          %1621 = vmatpush.msra.mxu0 %v375
          %1622 = vmatpush.msra.mxu0 %v371
          %1623 = vmatpush.msra.mxu0 %v367
          %1624 = vmatpush.msra.mxu0 %v363
          %1625 = vmatpush.msra.mxu0 %v359
          %1626 = vmatpush.msra.mxu0 %v355
          %1627 = vmatpush.msra.mxu0 %v351
          %1628 = vmatpush.msra.mxu0 %v347
          %1629 = vmatpush.msra.mxu0 %v343
          %1630 = vmatpush.msra.mxu0 %v339
          %1631 = vmatmul.f32.gmra.mxu0 %v1593
          %v1632 = vpop.f32.mrf.mxu0
          %v1633 = vadd.f32 0.0, %v1632
          %1634 = vdwg.mxu0
          %1635 = vmatpush.msra.mxu0 %v400
          %1636 = vmatpush.msra.mxu0 %v396
          %1637 = vmatpush.msra.mxu0 %v392
          %1638 = vmatpush.msra.mxu0 %v388
          %1639 = vmatpush.msra.mxu0 %v384
          %1640 = vmatpush.msra.mxu0 %v380
          %1641 = vmatpush.msra.mxu0 %v376
          %1642 = vmatpush.msra.mxu0 %v372
          %1643 = vmatpush.msra.mxu0 %v368
          %1644 = vmatpush.msra.mxu0 %v364
          %1645 = vmatpush.msra.mxu0 %v360
          %1646 = vmatpush.msra.mxu0 %v356
          %1647 = vmatpush.msra.mxu0 %v352
          %1648 = vmatpush.msra.mxu0 %v348
          %1649 = vmatpush.msra.mxu0 %v344
          %1650 = vmatpush.msra.mxu0 %v340
          %1651 = vmatmul.f32.gmra.mxu0 %v1593
          %v1652 = vpop.f32.mrf.mxu0
          %v1653 = vadd.f32 0.0, %v1652
          %1654 = vdwg.mxu0
          %1655 = vmatpush.msra.mxu0 %v401
          %1656 = vmatpush.msra.mxu0 %v397
          %1657 = vmatpush.msra.mxu0 %v393
          %1658 = vmatpush.msra.mxu0 %v389
          %1659 = vmatpush.msra.mxu0 %v385
          %1660 = vmatpush.msra.mxu0 %v381
          %1661 = vmatpush.msra.mxu0 %v377
          %1662 = vmatpush.msra.mxu0 %v373
          %1663 = vmatpush.msra.mxu0 %v369
          %1664 = vmatpush.msra.mxu0 %v365
          %1665 = vmatpush.msra.mxu0 %v361
          %1666 = vmatpush.msra.mxu0 %v357
          %1667 = vmatpush.msra.mxu0 %v353
          %1668 = vmatpush.msra.mxu0 %v349
          %1669 = vmatpush.msra.mxu0 %v345
          %1670 = vmatpush.msra.mxu0 %v341
          %1671 = vmatmul.f32.gmra.mxu0 %v1593
          %v1672 = vpop.f32.mrf.mxu0
          %v1673 = vadd.f32 0.0, %v1672
          %1674 = vdwg.mxu0
          %v1675 = vadd.f32 %v1587, %v1613
          %v1676 = vadd.f32 %v1588, %v1633
          %v1677 = vadd.f32 %v1589, %v1653
          %v1678 = vadd.f32 %v1590, %v1673
          %v1679 = vxor.u32 %v1675, 2147483648
          %v1680 = vmul.f32 %v1679, 1.442695
          %v1681 = vpow.pop %v1680
          %v1682 = vadd.f32 %v1681, 1.0
          %v1683 = vrcp.pop %v1682
          %v1684 = vmul.f32 %v1682, %v1683
          %v1685 = vsub.f32 1.0, %v1684
          %v1686 = vmul.f32 %v1683, %v1685
          %v1687 = vadd.f32 %v1683, %v1686
          %vm1688 = vweird.f32 %v1682
          %vm1689 = vweird.f32 %v1683
          %vm1690 = vmor %vm1688, %vm1689
          %v1691 = vsel %vm1690, %v1683, %v1687
          %v1692 = vand.u32 2147483647, %v1682
          %vm1693 = vcmp.eq.f32.partialorder %v1692, 8.507059e+37
          %v1694 = vand.u32 %v1682, 2147483648
          %v1695 = vor.u32 1.1754944e-38, %v1694
          %v1696 = vsel %vm1693, %v1695, %v1691
          %v1697 = vmul.f32 1.0, %v1696
          %v1698 = vxor.u32 %v1676, 2147483648
          %v1699 = vmul.f32 %v1698, 1.442695
          %v1700 = vpow.pop %v1699
          %v1701 = vadd.f32 %v1700, 1.0
          %v1702 = vrcp.pop %v1701
          %v1703 = vmul.f32 %v1701, %v1702
          %v1704 = vsub.f32 1.0, %v1703
          %v1705 = vmul.f32 %v1702, %v1704
          %v1706 = vadd.f32 %v1702, %v1705
          %vm1707 = vweird.f32 %v1701
          %vm1708 = vweird.f32 %v1702
          %vm1709 = vmor %vm1707, %vm1708
          %v1710 = vsel %vm1709, %v1702, %v1706
          %v1711 = vand.u32 2147483647, %v1701
          %vm1712 = vcmp.eq.f32.partialorder %v1711, 8.507059e+37
          %v1713 = vand.u32 %v1701, 2147483648
          %v1714 = vor.u32 1.1754944e-38, %v1713
          %v1715 = vsel %vm1712, %v1714, %v1710
          %v1716 = vmul.f32 1.0, %v1715
          %v1717 = vtanh.pop %v1677
          %v1718 = vxor.u32 %v1678, 2147483648
          %v1719 = vmul.f32 %v1718, 1.442695
          %v1720 = vpow.pop %v1719
          %v1721 = vadd.f32 %v1720, 1.0
          %v1722 = vrcp.pop %v1721
          %v1723 = vmul.f32 %v1721, %v1722
          %v1724 = vsub.f32 1.0, %v1723
          %v1725 = vmul.f32 %v1722, %v1724
          %v1726 = vadd.f32 %v1722, %v1725
          %vm1727 = vweird.f32 %v1721
          %vm1728 = vweird.f32 %v1722
          %vm1729 = vmor %vm1727, %vm1728
          %v1730 = vsel %vm1729, %v1722, %v1726
          %v1731 = vand.u32 2147483647, %v1721
          %vm1732 = vcmp.eq.f32.partialorder %v1731, 8.507059e+37
          %v1733 = vand.u32 %v1721, 2147483648
          %v1734 = vor.u32 1.1754944e-38, %v1733
          %v1735 = vsel %vm1732, %v1734, %v1730
          %v1736 = vmul.f32 1.0, %v1735
          %v1737 = vmul.f32 %v1716, %v1594
          %v1738 = vmul.f32 %v1697, %v1717
          %v1739 = vadd.f32 %v1737, %v1738
          %v1740 = vtanh.pop %v1739
          %v1741 = vmul.f32 %v1736, %v1740
          %vm1742 = vcmp.gt.f32.partialorder %v1592, 0.0
          %v1743 = vsel %vm1742, 1, 0
          %1744 = vset.pattern.permute.xlu0 0
          %1745 = vperm.xlu0 %1744, %v1743
          %v1746 = vpop.permute.xlu0 %1745
          %vm1747 = vcmp.eq.s32.totalorder %v1746, 1
          %v1748 = vsel %vm1747, %v1741, %v1593
          %1749 = vst [vmem:[#allocation2] sm:$0xff] %v1748
          %v1750 = vsel %vm1747, %v1739, %v1594
          %1751 = vst [vmem:[#allocation3] sm:$0xff] %v1750
          %v1752 = vsel %vm1747, %v1741, 0.0
          %s1753 = scalar_lea.vmem %s307, 56 [#allocation9]
          %1754 = vst [vmem:[%s1753] sm:$0xff] %v1752
        $region48: #{tpu_custom_call.1} parent=31 // pred_fallthru
          _
        %p1755 = scmp.eq.s32.totalorder %s27, 1
        // Predicated region
        $region49: #{tpu_custom_call.1} parent=31 // pred_check
          %p1756 = pneg %p1755
        $region50: #{tpu_custom_call.1} parent=31 // pred_check_branch
          %1758 = sbr.rel (%p1756) target = $region52
        $region51: #{tpu_custom_call.1} parent=31 // pred_region
          %s1759 = scalar_lea.vmem %s260, 224 [#allocation4]
          %v1760 = vld [vmem:[%s1759] sm:$0xff]
          %v1761 = vld [vmem:[%s1759 + $0x8] sm:$0xff]
          %v1762 = vld [vmem:[%s1759 + $0x10] sm:$0xff]
          %v1763 = vld [vmem:[%s1759 + $0x18] sm:$0xff]
          %s1764 = scalar_lea.vmem %s316, 56
          %v1765 = vld [vmem:[%s1764] sm:$0xff]
          %v1766 = vld [vmem:[#allocation2] sm:$0xff]
          %v1767 = vld [vmem:[#allocation3] sm:$0xff]
          %1768 = vmatpush.msra.mxu0 %v398
          %1769 = vmatpush.msra.mxu0 %v394
          %1770 = vmatpush.msra.mxu0 %v390
          %1771 = vmatpush.msra.mxu0 %v386
          %1772 = vmatpush.msra.mxu0 %v382
          %1773 = vmatpush.msra.mxu0 %v378
          %1774 = vmatpush.msra.mxu0 %v374
          %1775 = vmatpush.msra.mxu0 %v370
          %1776 = vmatpush.msra.mxu0 %v366
          %1777 = vmatpush.msra.mxu0 %v362
          %1778 = vmatpush.msra.mxu0 %v358
          %1779 = vmatpush.msra.mxu0 %v354
          %1780 = vmatpush.msra.mxu0 %v350
          %1781 = vmatpush.msra.mxu0 %v346
          %1782 = vmatpush.msra.mxu0 %v342
          %1783 = vmatpush.msra.mxu0 %v338
          %1784 = vmatmul.f32.gmra.mxu0 %v1766
          %v1785 = vpop.f32.mrf.mxu0
          %v1786 = vadd.f32 0.0, %v1785
          %1787 = vdwg.mxu0
          %1788 = vmatpush.msra.mxu0 %v399
          %1789 = vmatpush.msra.mxu0 %v395
          %1790 = vmatpush.msra.mxu0 %v391
          %1791 = vmatpush.msra.mxu0 %v387
          %1792 = vmatpush.msra.mxu0 %v383
          %1793 = vmatpush.msra.mxu0 %v379
          %1794 = vmatpush.msra.mxu0 %v375
          %1795 = vmatpush.msra.mxu0 %v371
          %1796 = vmatpush.msra.mxu0 %v367
          %1797 = vmatpush.msra.mxu0 %v363
          %1798 = vmatpush.msra.mxu0 %v359
          %1799 = vmatpush.msra.mxu0 %v355
          %1800 = vmatpush.msra.mxu0 %v351
          %1801 = vmatpush.msra.mxu0 %v347
          %1802 = vmatpush.msra.mxu0 %v343
          %1803 = vmatpush.msra.mxu0 %v339
          %1804 = vmatmul.f32.gmra.mxu0 %v1766
          %v1805 = vpop.f32.mrf.mxu0
          %v1806 = vadd.f32 0.0, %v1805
          %1807 = vdwg.mxu0
          %1808 = vmatpush.msra.mxu0 %v400
          %1809 = vmatpush.msra.mxu0 %v396
          %1810 = vmatpush.msra.mxu0 %v392
          %1811 = vmatpush.msra.mxu0 %v388
          %1812 = vmatpush.msra.mxu0 %v384
          %1813 = vmatpush.msra.mxu0 %v380
          %1814 = vmatpush.msra.mxu0 %v376
          %1815 = vmatpush.msra.mxu0 %v372
          %1816 = vmatpush.msra.mxu0 %v368
          %1817 = vmatpush.msra.mxu0 %v364
          %1818 = vmatpush.msra.mxu0 %v360
          %1819 = vmatpush.msra.mxu0 %v356
          %1820 = vmatpush.msra.mxu0 %v352
          %1821 = vmatpush.msra.mxu0 %v348
          %1822 = vmatpush.msra.mxu0 %v344
          %1823 = vmatpush.msra.mxu0 %v340
          %1824 = vmatmul.f32.gmra.mxu0 %v1766
          %v1825 = vpop.f32.mrf.mxu0
          %v1826 = vadd.f32 0.0, %v1825
          %1827 = vdwg.mxu0
          %1828 = vmatpush.msra.mxu0 %v401
          %1829 = vmatpush.msra.mxu0 %v397
          %1830 = vmatpush.msra.mxu0 %v393
          %1831 = vmatpush.msra.mxu0 %v389
          %1832 = vmatpush.msra.mxu0 %v385
          %1833 = vmatpush.msra.mxu0 %v381
          %1834 = vmatpush.msra.mxu0 %v377
          %1835 = vmatpush.msra.mxu0 %v373
          %1836 = vmatpush.msra.mxu0 %v369
          %1837 = vmatpush.msra.mxu0 %v365
          %1838 = vmatpush.msra.mxu0 %v361
          %1839 = vmatpush.msra.mxu0 %v357
          %1840 = vmatpush.msra.mxu0 %v353
          %1841 = vmatpush.msra.mxu0 %v349
          %1842 = vmatpush.msra.mxu0 %v345
          %1843 = vmatpush.msra.mxu0 %v341
          %1844 = vmatmul.f32.gmra.mxu0 %v1766
          %v1845 = vpop.f32.mrf.mxu0
          %v1846 = vadd.f32 0.0, %v1845
          %1847 = vdwg.mxu0
          %v1848 = vadd.f32 %v1760, %v1786
          %v1849 = vadd.f32 %v1761, %v1806
          %v1850 = vadd.f32 %v1762, %v1826
          %v1851 = vadd.f32 %v1763, %v1846
          %v1852 = vxor.u32 %v1848, 2147483648
          %v1853 = vmul.f32 %v1852, 1.442695
          %v1854 = vpow.pop %v1853
          %v1855 = vadd.f32 %v1854, 1.0
          %v1856 = vrcp.pop %v1855
          %v1857 = vmul.f32 %v1855, %v1856
          %v1858 = vsub.f32 1.0, %v1857
          %v1859 = vmul.f32 %v1856, %v1858
          %v1860 = vadd.f32 %v1856, %v1859
          %vm1861 = vweird.f32 %v1855
          %vm1862 = vweird.f32 %v1856
          %vm1863 = vmor %vm1861, %vm1862
          %v1864 = vsel %vm1863, %v1856, %v1860
          %v1865 = vand.u32 2147483647, %v1855
          %vm1866 = vcmp.eq.f32.partialorder %v1865, 8.507059e+37
          %v1867 = vand.u32 %v1855, 2147483648
          %v1868 = vor.u32 1.1754944e-38, %v1867
          %v1869 = vsel %vm1866, %v1868, %v1864
          %v1870 = vmul.f32 1.0, %v1869
          %v1871 = vxor.u32 %v1849, 2147483648
          %v1872 = vmul.f32 %v1871, 1.442695
          %v1873 = vpow.pop %v1872
          %v1874 = vadd.f32 %v1873, 1.0
          %v1875 = vrcp.pop %v1874
          %v1876 = vmul.f32 %v1874, %v1875
          %v1877 = vsub.f32 1.0, %v1876
          %v1878 = vmul.f32 %v1875, %v1877
          %v1879 = vadd.f32 %v1875, %v1878
          %vm1880 = vweird.f32 %v1874
          %vm1881 = vweird.f32 %v1875
          %vm1882 = vmor %vm1880, %vm1881
          %v1883 = vsel %vm1882, %v1875, %v1879
          %v1884 = vand.u32 2147483647, %v1874
          %vm1885 = vcmp.eq.f32.partialorder %v1884, 8.507059e+37
          %v1886 = vand.u32 %v1874, 2147483648
          %v1887 = vor.u32 1.1754944e-38, %v1886
          %v1888 = vsel %vm1885, %v1887, %v1883
          %v1889 = vmul.f32 1.0, %v1888
          %v1890 = vtanh.pop %v1850
          %v1891 = vxor.u32 %v1851, 2147483648
          %v1892 = vmul.f32 %v1891, 1.442695
          %v1893 = vpow.pop %v1892
          %v1894 = vadd.f32 %v1893, 1.0
          %v1895 = vrcp.pop %v1894
          %v1896 = vmul.f32 %v1894, %v1895
          %v1897 = vsub.f32 1.0, %v1896
          %v1898 = vmul.f32 %v1895, %v1897
          %v1899 = vadd.f32 %v1895, %v1898
          %vm1900 = vweird.f32 %v1894
          %vm1901 = vweird.f32 %v1895
          %vm1902 = vmor %vm1900, %vm1901
          %v1903 = vsel %vm1902, %v1895, %v1899
          %v1904 = vand.u32 2147483647, %v1894
          %vm1905 = vcmp.eq.f32.partialorder %v1904, 8.507059e+37
          %v1906 = vand.u32 %v1894, 2147483648
          %v1907 = vor.u32 1.1754944e-38, %v1906
          %v1908 = vsel %vm1905, %v1907, %v1903
          %v1909 = vmul.f32 1.0, %v1908
          %v1910 = vmul.f32 %v1889, %v1767
          %v1911 = vmul.f32 %v1870, %v1890
          %v1912 = vadd.f32 %v1910, %v1911
          %v1913 = vtanh.pop %v1912
          %v1914 = vmul.f32 %v1909, %v1913
          %vm1915 = vcmp.gt.f32.partialorder %v1765, 0.0
          %v1916 = vsel %vm1915, 1, 0
          %1917 = vset.pattern.permute.xlu0 0
          %1918 = vperm.xlu0 %1917, %v1916
          %v1919 = vpop.permute.xlu0 %1918
          %vm1920 = vcmp.eq.s32.totalorder %v1919, 1
          %v1921 = vsel %vm1920, %v1914, %v1766
          %1922 = vst [vmem:[#allocation2] sm:$0xff] %v1921
          %v1923 = vsel %vm1920, %v1912, %v1767
          %1924 = vst [vmem:[#allocation3] sm:$0xff] %v1923
          %v1925 = vsel %vm1920, %v1914, 0.0
          %s1926 = scalar_lea.vmem %s307, 56 [#allocation9]
          %1927 = vst [vmem:[%s1926] sm:$0xff] %v1925
          %s1928 = scalar_lea.vmem %s260, 192 [#allocation4]
          %v1929 = vld [vmem:[%s1928] sm:$0xff]
          %v1930 = vld [vmem:[%s1928 + $0x8] sm:$0xff]
          %v1931 = vld [vmem:[%s1928 + $0x10] sm:$0xff]
          %v1932 = vld [vmem:[%s1928 + $0x18] sm:$0xff]
          %s1933 = scalar_lea.vmem %s316, 48
          %v1934 = vld [vmem:[%s1933] sm:$0xff]
          %v1935 = vld [vmem:[#allocation2] sm:$0xff]
          %v1936 = vld [vmem:[#allocation3] sm:$0xff]
          %1937 = vmatpush.msra.mxu0 %v398
          %1938 = vmatpush.msra.mxu0 %v394
          %1939 = vmatpush.msra.mxu0 %v390
          %1940 = vmatpush.msra.mxu0 %v386
          %1941 = vmatpush.msra.mxu0 %v382
          %1942 = vmatpush.msra.mxu0 %v378
          %1943 = vmatpush.msra.mxu0 %v374
          %1944 = vmatpush.msra.mxu0 %v370
          %1945 = vmatpush.msra.mxu0 %v366
          %1946 = vmatpush.msra.mxu0 %v362
          %1947 = vmatpush.msra.mxu0 %v358
          %1948 = vmatpush.msra.mxu0 %v354
          %1949 = vmatpush.msra.mxu0 %v350
          %1950 = vmatpush.msra.mxu0 %v346
          %1951 = vmatpush.msra.mxu0 %v342
          %1952 = vmatpush.msra.mxu0 %v338
          %1953 = vmatmul.f32.gmra.mxu0 %v1935
          %v1954 = vpop.f32.mrf.mxu0
          %v1955 = vadd.f32 0.0, %v1954
          %1956 = vdwg.mxu0
          %1957 = vmatpush.msra.mxu0 %v399
          %1958 = vmatpush.msra.mxu0 %v395
          %1959 = vmatpush.msra.mxu0 %v391
          %1960 = vmatpush.msra.mxu0 %v387
          %1961 = vmatpush.msra.mxu0 %v383
          %1962 = vmatpush.msra.mxu0 %v379
          %1963 = vmatpush.msra.mxu0 %v375
          %1964 = vmatpush.msra.mxu0 %v371
          %1965 = vmatpush.msra.mxu0 %v367
          %1966 = vmatpush.msra.mxu0 %v363
          %1967 = vmatpush.msra.mxu0 %v359
          %1968 = vmatpush.msra.mxu0 %v355
          %1969 = vmatpush.msra.mxu0 %v351
          %1970 = vmatpush.msra.mxu0 %v347
          %1971 = vmatpush.msra.mxu0 %v343
          %1972 = vmatpush.msra.mxu0 %v339
          %1973 = vmatmul.f32.gmra.mxu0 %v1935
          %v1974 = vpop.f32.mrf.mxu0
          %v1975 = vadd.f32 0.0, %v1974
          %1976 = vdwg.mxu0
          %1977 = vmatpush.msra.mxu0 %v400
          %1978 = vmatpush.msra.mxu0 %v396
          %1979 = vmatpush.msra.mxu0 %v392
          %1980 = vmatpush.msra.mxu0 %v388
          %1981 = vmatpush.msra.mxu0 %v384
          %1982 = vmatpush.msra.mxu0 %v380
          %1983 = vmatpush.msra.mxu0 %v376
          %1984 = vmatpush.msra.mxu0 %v372
          %1985 = vmatpush.msra.mxu0 %v368
          %1986 = vmatpush.msra.mxu0 %v364
          %1987 = vmatpush.msra.mxu0 %v360
          %1988 = vmatpush.msra.mxu0 %v356
          %1989 = vmatpush.msra.mxu0 %v352
          %1990 = vmatpush.msra.mxu0 %v348
          %1991 = vmatpush.msra.mxu0 %v344
          %1992 = vmatpush.msra.mxu0 %v340
          %1993 = vmatmul.f32.gmra.mxu0 %v1935
          %v1994 = vpop.f32.mrf.mxu0
          %v1995 = vadd.f32 0.0, %v1994
          %1996 = vdwg.mxu0
          %1997 = vmatpush.msra.mxu0 %v401
          %1998 = vmatpush.msra.mxu0 %v397
          %1999 = vmatpush.msra.mxu0 %v393
          %2000 = vmatpush.msra.mxu0 %v389
          %2001 = vmatpush.msra.mxu0 %v385
          %2002 = vmatpush.msra.mxu0 %v381
          %2003 = vmatpush.msra.mxu0 %v377
          %2004 = vmatpush.msra.mxu0 %v373
          %2005 = vmatpush.msra.mxu0 %v369
          %2006 = vmatpush.msra.mxu0 %v365
          %2007 = vmatpush.msra.mxu0 %v361
          %2008 = vmatpush.msra.mxu0 %v357
          %2009 = vmatpush.msra.mxu0 %v353
          %2010 = vmatpush.msra.mxu0 %v349
          %2011 = vmatpush.msra.mxu0 %v345
          %2012 = vmatpush.msra.mxu0 %v341
          %2013 = vmatmul.f32.gmra.mxu0 %v1935
          %v2014 = vpop.f32.mrf.mxu0
          %v2015 = vadd.f32 0.0, %v2014
          %2016 = vdwg.mxu0
          %v2017 = vadd.f32 %v1929, %v1955
          %v2018 = vadd.f32 %v1930, %v1975
          %v2019 = vadd.f32 %v1931, %v1995
          %v2020 = vadd.f32 %v1932, %v2015
          %v2021 = vxor.u32 %v2017, 2147483648
          %v2022 = vmul.f32 %v2021, 1.442695
          %v2023 = vpow.pop %v2022
          %v2024 = vadd.f32 %v2023, 1.0
          %v2025 = vrcp.pop %v2024
          %v2026 = vmul.f32 %v2024, %v2025
          %v2027 = vsub.f32 1.0, %v2026
          %v2028 = vmul.f32 %v2025, %v2027
          %v2029 = vadd.f32 %v2025, %v2028
          %vm2030 = vweird.f32 %v2024
          %vm2031 = vweird.f32 %v2025
          %vm2032 = vmor %vm2030, %vm2031
          %v2033 = vsel %vm2032, %v2025, %v2029
          %v2034 = vand.u32 2147483647, %v2024
          %vm2035 = vcmp.eq.f32.partialorder %v2034, 8.507059e+37
          %v2036 = vand.u32 %v2024, 2147483648
          %v2037 = vor.u32 1.1754944e-38, %v2036
          %v2038 = vsel %vm2035, %v2037, %v2033
          %v2039 = vmul.f32 1.0, %v2038
          %v2040 = vxor.u32 %v2018, 2147483648
          %v2041 = vmul.f32 %v2040, 1.442695
          %v2042 = vpow.pop %v2041
          %v2043 = vadd.f32 %v2042, 1.0
          %v2044 = vrcp.pop %v2043
          %v2045 = vmul.f32 %v2043, %v2044
          %v2046 = vsub.f32 1.0, %v2045
          %v2047 = vmul.f32 %v2044, %v2046
          %v2048 = vadd.f32 %v2044, %v2047
          %vm2049 = vweird.f32 %v2043
          %vm2050 = vweird.f32 %v2044
          %vm2051 = vmor %vm2049, %vm2050
          %v2052 = vsel %vm2051, %v2044, %v2048
          %v2053 = vand.u32 2147483647, %v2043
          %vm2054 = vcmp.eq.f32.partialorder %v2053, 8.507059e+37
          %v2055 = vand.u32 %v2043, 2147483648
          %v2056 = vor.u32 1.1754944e-38, %v2055
          %v2057 = vsel %vm2054, %v2056, %v2052
          %v2058 = vmul.f32 1.0, %v2057
          %v2059 = vtanh.pop %v2019
          %v2060 = vxor.u32 %v2020, 2147483648
          %v2061 = vmul.f32 %v2060, 1.442695
          %v2062 = vpow.pop %v2061
          %v2063 = vadd.f32 %v2062, 1.0
          %v2064 = vrcp.pop %v2063
          %v2065 = vmul.f32 %v2063, %v2064
          %v2066 = vsub.f32 1.0, %v2065
          %v2067 = vmul.f32 %v2064, %v2066
          %v2068 = vadd.f32 %v2064, %v2067
          %vm2069 = vweird.f32 %v2063
          %vm2070 = vweird.f32 %v2064
          %vm2071 = vmor %vm2069, %vm2070
          %v2072 = vsel %vm2071, %v2064, %v2068
          %v2073 = vand.u32 2147483647, %v2063
          %vm2074 = vcmp.eq.f32.partialorder %v2073, 8.507059e+37
          %v2075 = vand.u32 %v2063, 2147483648
          %v2076 = vor.u32 1.1754944e-38, %v2075
          %v2077 = vsel %vm2074, %v2076, %v2072
          %v2078 = vmul.f32 1.0, %v2077
          %v2079 = vmul.f32 %v2058, %v1936
          %v2080 = vmul.f32 %v2039, %v2059
          %v2081 = vadd.f32 %v2079, %v2080
          %v2082 = vtanh.pop %v2081
          %v2083 = vmul.f32 %v2078, %v2082
          %vm2084 = vcmp.gt.f32.partialorder %v1934, 0.0
          %v2085 = vsel %vm2084, 1, 0
          %2086 = vset.pattern.permute.xlu0 0
          %2087 = vperm.xlu0 %2086, %v2085
          %v2088 = vpop.permute.xlu0 %2087
          %vm2089 = vcmp.eq.s32.totalorder %v2088, 1
          %v2090 = vsel %vm2089, %v2083, %v1935
          %2091 = vst [vmem:[#allocation2] sm:$0xff] %v2090
          %v2092 = vsel %vm2089, %v2081, %v1936
          %2093 = vst [vmem:[#allocation3] sm:$0xff] %v2092
          %v2094 = vsel %vm2089, %v2083, 0.0
          %s2095 = scalar_lea.vmem %s307, 48 [#allocation9]
          %2096 = vst [vmem:[%s2095] sm:$0xff] %v2094
          %s2097 = scalar_lea.vmem %s260, 160 [#allocation4]
          %v2098 = vld [vmem:[%s2097] sm:$0xff]
          %v2099 = vld [vmem:[%s2097 + $0x8] sm:$0xff]
          %v2100 = vld [vmem:[%s2097 + $0x10] sm:$0xff]
          %v2101 = vld [vmem:[%s2097 + $0x18] sm:$0xff]
          %s2102 = scalar_lea.vmem %s316, 40
          %v2103 = vld [vmem:[%s2102] sm:$0xff]
          %v2104 = vld [vmem:[#allocation2] sm:$0xff]
          %v2105 = vld [vmem:[#allocation3] sm:$0xff]
          %2106 = vmatpush.msra.mxu0 %v398
          %2107 = vmatpush.msra.mxu0 %v394
          %2108 = vmatpush.msra.mxu0 %v390
          %2109 = vmatpush.msra.mxu0 %v386
          %2110 = vmatpush.msra.mxu0 %v382
          %2111 = vmatpush.msra.mxu0 %v378
          %2112 = vmatpush.msra.mxu0 %v374
          %2113 = vmatpush.msra.mxu0 %v370
          %2114 = vmatpush.msra.mxu0 %v366
          %2115 = vmatpush.msra.mxu0 %v362
          %2116 = vmatpush.msra.mxu0 %v358
          %2117 = vmatpush.msra.mxu0 %v354
          %2118 = vmatpush.msra.mxu0 %v350
          %2119 = vmatpush.msra.mxu0 %v346
          %2120 = vmatpush.msra.mxu0 %v342
          %2121 = vmatpush.msra.mxu0 %v338
          %2122 = vmatmul.f32.gmra.mxu0 %v2104
          %v2123 = vpop.f32.mrf.mxu0
          %v2124 = vadd.f32 0.0, %v2123
          %2125 = vdwg.mxu0
          %2126 = vmatpush.msra.mxu0 %v399
          %2127 = vmatpush.msra.mxu0 %v395
          %2128 = vmatpush.msra.mxu0 %v391
          %2129 = vmatpush.msra.mxu0 %v387
          %2130 = vmatpush.msra.mxu0 %v383
          %2131 = vmatpush.msra.mxu0 %v379
          %2132 = vmatpush.msra.mxu0 %v375
          %2133 = vmatpush.msra.mxu0 %v371
          %2134 = vmatpush.msra.mxu0 %v367
          %2135 = vmatpush.msra.mxu0 %v363
          %2136 = vmatpush.msra.mxu0 %v359
          %2137 = vmatpush.msra.mxu0 %v355
          %2138 = vmatpush.msra.mxu0 %v351
          %2139 = vmatpush.msra.mxu0 %v347
          %2140 = vmatpush.msra.mxu0 %v343
          %2141 = vmatpush.msra.mxu0 %v339
          %2142 = vmatmul.f32.gmra.mxu0 %v2104
          %v2143 = vpop.f32.mrf.mxu0
          %v2144 = vadd.f32 0.0, %v2143
          %2145 = vdwg.mxu0
          %2146 = vmatpush.msra.mxu0 %v400
          %2147 = vmatpush.msra.mxu0 %v396
          %2148 = vmatpush.msra.mxu0 %v392
          %2149 = vmatpush.msra.mxu0 %v388
          %2150 = vmatpush.msra.mxu0 %v384
          %2151 = vmatpush.msra.mxu0 %v380
          %2152 = vmatpush.msra.mxu0 %v376
          %2153 = vmatpush.msra.mxu0 %v372
          %2154 = vmatpush.msra.mxu0 %v368
          %2155 = vmatpush.msra.mxu0 %v364
          %2156 = vmatpush.msra.mxu0 %v360
          %2157 = vmatpush.msra.mxu0 %v356
          %2158 = vmatpush.msra.mxu0 %v352
          %2159 = vmatpush.msra.mxu0 %v348
          %2160 = vmatpush.msra.mxu0 %v344
          %2161 = vmatpush.msra.mxu0 %v340
          %2162 = vmatmul.f32.gmra.mxu0 %v2104
          %v2163 = vpop.f32.mrf.mxu0
          %v2164 = vadd.f32 0.0, %v2163
          %2165 = vdwg.mxu0
          %2166 = vmatpush.msra.mxu0 %v401
          %2167 = vmatpush.msra.mxu0 %v397
          %2168 = vmatpush.msra.mxu0 %v393
          %2169 = vmatpush.msra.mxu0 %v389
          %2170 = vmatpush.msra.mxu0 %v385
          %2171 = vmatpush.msra.mxu0 %v381
          %2172 = vmatpush.msra.mxu0 %v377
          %2173 = vmatpush.msra.mxu0 %v373
          %2174 = vmatpush.msra.mxu0 %v369
          %2175 = vmatpush.msra.mxu0 %v365
          %2176 = vmatpush.msra.mxu0 %v361
          %2177 = vmatpush.msra.mxu0 %v357
          %2178 = vmatpush.msra.mxu0 %v353
          %2179 = vmatpush.msra.mxu0 %v349
          %2180 = vmatpush.msra.mxu0 %v345
          %2181 = vmatpush.msra.mxu0 %v341
          %2182 = vmatmul.f32.gmra.mxu0 %v2104
          %v2183 = vpop.f32.mrf.mxu0
          %v2184 = vadd.f32 0.0, %v2183
          %2185 = vdwg.mxu0
          %v2186 = vadd.f32 %v2098, %v2124
          %v2187 = vadd.f32 %v2099, %v2144
          %v2188 = vadd.f32 %v2100, %v2164
          %v2189 = vadd.f32 %v2101, %v2184
          %v2190 = vxor.u32 %v2186, 2147483648
          %v2191 = vmul.f32 %v2190, 1.442695
          %v2192 = vpow.pop %v2191
          %v2193 = vadd.f32 %v2192, 1.0
          %v2194 = vrcp.pop %v2193
          %v2195 = vmul.f32 %v2193, %v2194
          %v2196 = vsub.f32 1.0, %v2195
          %v2197 = vmul.f32 %v2194, %v2196
          %v2198 = vadd.f32 %v2194, %v2197
          %vm2199 = vweird.f32 %v2193
          %vm2200 = vweird.f32 %v2194
          %vm2201 = vmor %vm2199, %vm2200
          %v2202 = vsel %vm2201, %v2194, %v2198
          %v2203 = vand.u32 2147483647, %v2193
          %vm2204 = vcmp.eq.f32.partialorder %v2203, 8.507059e+37
          %v2205 = vand.u32 %v2193, 2147483648
          %v2206 = vor.u32 1.1754944e-38, %v2205
          %v2207 = vsel %vm2204, %v2206, %v2202
          %v2208 = vmul.f32 1.0, %v2207
          %v2209 = vxor.u32 %v2187, 2147483648
          %v2210 = vmul.f32 %v2209, 1.442695
          %v2211 = vpow.pop %v2210
          %v2212 = vadd.f32 %v2211, 1.0
          %v2213 = vrcp.pop %v2212
          %v2214 = vmul.f32 %v2212, %v2213
          %v2215 = vsub.f32 1.0, %v2214
          %v2216 = vmul.f32 %v2213, %v2215
          %v2217 = vadd.f32 %v2213, %v2216
          %vm2218 = vweird.f32 %v2212
          %vm2219 = vweird.f32 %v2213
          %vm2220 = vmor %vm2218, %vm2219
          %v2221 = vsel %vm2220, %v2213, %v2217
          %v2222 = vand.u32 2147483647, %v2212
          %vm2223 = vcmp.eq.f32.partialorder %v2222, 8.507059e+37
          %v2224 = vand.u32 %v2212, 2147483648
          %v2225 = vor.u32 1.1754944e-38, %v2224
          %v2226 = vsel %vm2223, %v2225, %v2221
          %v2227 = vmul.f32 1.0, %v2226
          %v2228 = vtanh.pop %v2188
          %v2229 = vxor.u32 %v2189, 2147483648
          %v2230 = vmul.f32 %v2229, 1.442695
          %v2231 = vpow.pop %v2230
          %v2232 = vadd.f32 %v2231, 1.0
          %v2233 = vrcp.pop %v2232
          %v2234 = vmul.f32 %v2232, %v2233
          %v2235 = vsub.f32 1.0, %v2234
          %v2236 = vmul.f32 %v2233, %v2235
          %v2237 = vadd.f32 %v2233, %v2236
          %vm2238 = vweird.f32 %v2232
          %vm2239 = vweird.f32 %v2233
          %vm2240 = vmor %vm2238, %vm2239
          %v2241 = vsel %vm2240, %v2233, %v2237
          %v2242 = vand.u32 2147483647, %v2232
          %vm2243 = vcmp.eq.f32.partialorder %v2242, 8.507059e+37
          %v2244 = vand.u32 %v2232, 2147483648
          %v2245 = vor.u32 1.1754944e-38, %v2244
          %v2246 = vsel %vm2243, %v2245, %v2241
          %v2247 = vmul.f32 1.0, %v2246
          %v2248 = vmul.f32 %v2227, %v2105
          %v2249 = vmul.f32 %v2208, %v2228
          %v2250 = vadd.f32 %v2248, %v2249
          %v2251 = vtanh.pop %v2250
          %v2252 = vmul.f32 %v2247, %v2251
          %vm2253 = vcmp.gt.f32.partialorder %v2103, 0.0
          %v2254 = vsel %vm2253, 1, 0
          %2255 = vset.pattern.permute.xlu0 0
          %2256 = vperm.xlu0 %2255, %v2254
          %v2257 = vpop.permute.xlu0 %2256
          %vm2258 = vcmp.eq.s32.totalorder %v2257, 1
          %v2259 = vsel %vm2258, %v2252, %v2104
          %2260 = vst [vmem:[#allocation2] sm:$0xff] %v2259
          %v2261 = vsel %vm2258, %v2250, %v2105
          %2262 = vst [vmem:[#allocation3] sm:$0xff] %v2261
          %v2263 = vsel %vm2258, %v2252, 0.0
          %s2264 = scalar_lea.vmem %s307, 40 [#allocation9]
          %2265 = vst [vmem:[%s2264] sm:$0xff] %v2263
          %s2266 = scalar_lea.vmem %s260, 128 [#allocation4]
          %v2267 = vld [vmem:[%s2266] sm:$0xff]
          %v2268 = vld [vmem:[%s2266 + $0x8] sm:$0xff]
          %v2269 = vld [vmem:[%s2266 + $0x10] sm:$0xff]
          %v2270 = vld [vmem:[%s2266 + $0x18] sm:$0xff]
          %s2271 = scalar_lea.vmem %s316, 32
          %v2272 = vld [vmem:[%s2271] sm:$0xff]
          %v2273 = vld [vmem:[#allocation2] sm:$0xff]
          %v2274 = vld [vmem:[#allocation3] sm:$0xff]
          %2275 = vmatpush.msra.mxu0 %v398
          %2276 = vmatpush.msra.mxu0 %v394
          %2277 = vmatpush.msra.mxu0 %v390
          %2278 = vmatpush.msra.mxu0 %v386
          %2279 = vmatpush.msra.mxu0 %v382
          %2280 = vmatpush.msra.mxu0 %v378
          %2281 = vmatpush.msra.mxu0 %v374
          %2282 = vmatpush.msra.mxu0 %v370
          %2283 = vmatpush.msra.mxu0 %v366
          %2284 = vmatpush.msra.mxu0 %v362
          %2285 = vmatpush.msra.mxu0 %v358
          %2286 = vmatpush.msra.mxu0 %v354
          %2287 = vmatpush.msra.mxu0 %v350
          %2288 = vmatpush.msra.mxu0 %v346
          %2289 = vmatpush.msra.mxu0 %v342
          %2290 = vmatpush.msra.mxu0 %v338
          %2291 = vmatmul.f32.gmra.mxu0 %v2273
          %v2292 = vpop.f32.mrf.mxu0
          %v2293 = vadd.f32 0.0, %v2292
          %2294 = vdwg.mxu0
          %2295 = vmatpush.msra.mxu0 %v399
          %2296 = vmatpush.msra.mxu0 %v395
          %2297 = vmatpush.msra.mxu0 %v391
          %2298 = vmatpush.msra.mxu0 %v387
          %2299 = vmatpush.msra.mxu0 %v383
          %2300 = vmatpush.msra.mxu0 %v379
          %2301 = vmatpush.msra.mxu0 %v375
          %2302 = vmatpush.msra.mxu0 %v371
          %2303 = vmatpush.msra.mxu0 %v367
          %2304 = vmatpush.msra.mxu0 %v363
          %2305 = vmatpush.msra.mxu0 %v359
          %2306 = vmatpush.msra.mxu0 %v355
          %2307 = vmatpush.msra.mxu0 %v351
          %2308 = vmatpush.msra.mxu0 %v347
          %2309 = vmatpush.msra.mxu0 %v343
          %2310 = vmatpush.msra.mxu0 %v339
          %2311 = vmatmul.f32.gmra.mxu0 %v2273
          %v2312 = vpop.f32.mrf.mxu0
          %v2313 = vadd.f32 0.0, %v2312
          %2314 = vdwg.mxu0
          %2315 = vmatpush.msra.mxu0 %v400
          %2316 = vmatpush.msra.mxu0 %v396
          %2317 = vmatpush.msra.mxu0 %v392
          %2318 = vmatpush.msra.mxu0 %v388
          %2319 = vmatpush.msra.mxu0 %v384
          %2320 = vmatpush.msra.mxu0 %v380
          %2321 = vmatpush.msra.mxu0 %v376
          %2322 = vmatpush.msra.mxu0 %v372
          %2323 = vmatpush.msra.mxu0 %v368
          %2324 = vmatpush.msra.mxu0 %v364
          %2325 = vmatpush.msra.mxu0 %v360
          %2326 = vmatpush.msra.mxu0 %v356
          %2327 = vmatpush.msra.mxu0 %v352
          %2328 = vmatpush.msra.mxu0 %v348
          %2329 = vmatpush.msra.mxu0 %v344
          %2330 = vmatpush.msra.mxu0 %v340
          %2331 = vmatmul.f32.gmra.mxu0 %v2273
          %v2332 = vpop.f32.mrf.mxu0
          %v2333 = vadd.f32 0.0, %v2332
          %2334 = vdwg.mxu0
          %2335 = vmatpush.msra.mxu0 %v401
          %2336 = vmatpush.msra.mxu0 %v397
          %2337 = vmatpush.msra.mxu0 %v393
          %2338 = vmatpush.msra.mxu0 %v389
          %2339 = vmatpush.msra.mxu0 %v385
          %2340 = vmatpush.msra.mxu0 %v381
          %2341 = vmatpush.msra.mxu0 %v377
          %2342 = vmatpush.msra.mxu0 %v373
          %2343 = vmatpush.msra.mxu0 %v369
          %2344 = vmatpush.msra.mxu0 %v365
          %2345 = vmatpush.msra.mxu0 %v361
          %2346 = vmatpush.msra.mxu0 %v357
          %2347 = vmatpush.msra.mxu0 %v353
          %2348 = vmatpush.msra.mxu0 %v349
          %2349 = vmatpush.msra.mxu0 %v345
          %2350 = vmatpush.msra.mxu0 %v341
          %2351 = vmatmul.f32.gmra.mxu0 %v2273
          %v2352 = vpop.f32.mrf.mxu0
          %v2353 = vadd.f32 0.0, %v2352
          %2354 = vdwg.mxu0
          %v2355 = vadd.f32 %v2267, %v2293
          %v2356 = vadd.f32 %v2268, %v2313
          %v2357 = vadd.f32 %v2269, %v2333
          %v2358 = vadd.f32 %v2270, %v2353
          %v2359 = vxor.u32 %v2355, 2147483648
          %v2360 = vmul.f32 %v2359, 1.442695
          %v2361 = vpow.pop %v2360
          %v2362 = vadd.f32 %v2361, 1.0
          %v2363 = vrcp.pop %v2362
          %v2364 = vmul.f32 %v2362, %v2363
          %v2365 = vsub.f32 1.0, %v2364
          %v2366 = vmul.f32 %v2363, %v2365
          %v2367 = vadd.f32 %v2363, %v2366
          %vm2368 = vweird.f32 %v2362
          %vm2369 = vweird.f32 %v2363
          %vm2370 = vmor %vm2368, %vm2369
          %v2371 = vsel %vm2370, %v2363, %v2367
          %v2372 = vand.u32 2147483647, %v2362
          %vm2373 = vcmp.eq.f32.partialorder %v2372, 8.507059e+37
          %v2374 = vand.u32 %v2362, 2147483648
          %v2375 = vor.u32 1.1754944e-38, %v2374
          %v2376 = vsel %vm2373, %v2375, %v2371
          %v2377 = vmul.f32 1.0, %v2376
          %v2378 = vxor.u32 %v2356, 2147483648
          %v2379 = vmul.f32 %v2378, 1.442695
          %v2380 = vpow.pop %v2379
          %v2381 = vadd.f32 %v2380, 1.0
          %v2382 = vrcp.pop %v2381
          %v2383 = vmul.f32 %v2381, %v2382
          %v2384 = vsub.f32 1.0, %v2383
          %v2385 = vmul.f32 %v2382, %v2384
          %v2386 = vadd.f32 %v2382, %v2385
          %vm2387 = vweird.f32 %v2381
          %vm2388 = vweird.f32 %v2382
          %vm2389 = vmor %vm2387, %vm2388
          %v2390 = vsel %vm2389, %v2382, %v2386
          %v2391 = vand.u32 2147483647, %v2381
          %vm2392 = vcmp.eq.f32.partialorder %v2391, 8.507059e+37
          %v2393 = vand.u32 %v2381, 2147483648
          %v2394 = vor.u32 1.1754944e-38, %v2393
          %v2395 = vsel %vm2392, %v2394, %v2390
          %v2396 = vmul.f32 1.0, %v2395
          %v2397 = vtanh.pop %v2357
          %v2398 = vxor.u32 %v2358, 2147483648
          %v2399 = vmul.f32 %v2398, 1.442695
          %v2400 = vpow.pop %v2399
          %v2401 = vadd.f32 %v2400, 1.0
          %v2402 = vrcp.pop %v2401
          %v2403 = vmul.f32 %v2401, %v2402
          %v2404 = vsub.f32 1.0, %v2403
          %v2405 = vmul.f32 %v2402, %v2404
          %v2406 = vadd.f32 %v2402, %v2405
          %vm2407 = vweird.f32 %v2401
          %vm2408 = vweird.f32 %v2402
          %vm2409 = vmor %vm2407, %vm2408
          %v2410 = vsel %vm2409, %v2402, %v2406
          %v2411 = vand.u32 2147483647, %v2401
          %vm2412 = vcmp.eq.f32.partialorder %v2411, 8.507059e+37
          %v2413 = vand.u32 %v2401, 2147483648
          %v2414 = vor.u32 1.1754944e-38, %v2413
          %v2415 = vsel %vm2412, %v2414, %v2410
          %v2416 = vmul.f32 1.0, %v2415
          %v2417 = vmul.f32 %v2396, %v2274
          %v2418 = vmul.f32 %v2377, %v2397
          %v2419 = vadd.f32 %v2417, %v2418
          %v2420 = vtanh.pop %v2419
          %v2421 = vmul.f32 %v2416, %v2420
          %vm2422 = vcmp.gt.f32.partialorder %v2272, 0.0
          %v2423 = vsel %vm2422, 1, 0
          %2424 = vset.pattern.permute.xlu0 0
          %2425 = vperm.xlu0 %2424, %v2423
          %v2426 = vpop.permute.xlu0 %2425
          %vm2427 = vcmp.eq.s32.totalorder %v2426, 1
          %v2428 = vsel %vm2427, %v2421, %v2273
          %2429 = vst [vmem:[#allocation2] sm:$0xff] %v2428
          %v2430 = vsel %vm2427, %v2419, %v2274
          %2431 = vst [vmem:[#allocation3] sm:$0xff] %v2430
          %v2432 = vsel %vm2427, %v2421, 0.0
          %s2433 = scalar_lea.vmem %s307, 32 [#allocation9]
          %2434 = vst [vmem:[%s2433] sm:$0xff] %v2432
          %s2435 = scalar_lea.vmem %s260, 96 [#allocation4]
          %v2436 = vld [vmem:[%s2435] sm:$0xff]
          %v2437 = vld [vmem:[%s2435 + $0x8] sm:$0xff]
          %v2438 = vld [vmem:[%s2435 + $0x10] sm:$0xff]
          %v2439 = vld [vmem:[%s2435 + $0x18] sm:$0xff]
          %s2440 = scalar_lea.vmem %s316, 24
          %v2441 = vld [vmem:[%s2440] sm:$0xff]
          %v2442 = vld [vmem:[#allocation2] sm:$0xff]
          %v2443 = vld [vmem:[#allocation3] sm:$0xff]
          %2444 = vmatpush.msra.mxu0 %v398
          %2445 = vmatpush.msra.mxu0 %v394
          %2446 = vmatpush.msra.mxu0 %v390
          %2447 = vmatpush.msra.mxu0 %v386
          %2448 = vmatpush.msra.mxu0 %v382
          %2449 = vmatpush.msra.mxu0 %v378
          %2450 = vmatpush.msra.mxu0 %v374
          %2451 = vmatpush.msra.mxu0 %v370
          %2452 = vmatpush.msra.mxu0 %v366
          %2453 = vmatpush.msra.mxu0 %v362
          %2454 = vmatpush.msra.mxu0 %v358
          %2455 = vmatpush.msra.mxu0 %v354
          %2456 = vmatpush.msra.mxu0 %v350
          %2457 = vmatpush.msra.mxu0 %v346
          %2458 = vmatpush.msra.mxu0 %v342
          %2459 = vmatpush.msra.mxu0 %v338
          %2460 = vmatmul.f32.gmra.mxu0 %v2442
          %v2461 = vpop.f32.mrf.mxu0
          %v2462 = vadd.f32 0.0, %v2461
          %2463 = vdwg.mxu0
          %2464 = vmatpush.msra.mxu0 %v399
          %2465 = vmatpush.msra.mxu0 %v395
          %2466 = vmatpush.msra.mxu0 %v391
          %2467 = vmatpush.msra.mxu0 %v387
          %2468 = vmatpush.msra.mxu0 %v383
          %2469 = vmatpush.msra.mxu0 %v379
          %2470 = vmatpush.msra.mxu0 %v375
          %2471 = vmatpush.msra.mxu0 %v371
          %2472 = vmatpush.msra.mxu0 %v367
          %2473 = vmatpush.msra.mxu0 %v363
          %2474 = vmatpush.msra.mxu0 %v359
          %2475 = vmatpush.msra.mxu0 %v355
          %2476 = vmatpush.msra.mxu0 %v351
          %2477 = vmatpush.msra.mxu0 %v347
          %2478 = vmatpush.msra.mxu0 %v343
          %2479 = vmatpush.msra.mxu0 %v339
          %2480 = vmatmul.f32.gmra.mxu0 %v2442
          %v2481 = vpop.f32.mrf.mxu0
          %v2482 = vadd.f32 0.0, %v2481
          %2483 = vdwg.mxu0
          %2484 = vmatpush.msra.mxu0 %v400
          %2485 = vmatpush.msra.mxu0 %v396
          %2486 = vmatpush.msra.mxu0 %v392
          %2487 = vmatpush.msra.mxu0 %v388
          %2488 = vmatpush.msra.mxu0 %v384
          %2489 = vmatpush.msra.mxu0 %v380
          %2490 = vmatpush.msra.mxu0 %v376
          %2491 = vmatpush.msra.mxu0 %v372
          %2492 = vmatpush.msra.mxu0 %v368
          %2493 = vmatpush.msra.mxu0 %v364
          %2494 = vmatpush.msra.mxu0 %v360
          %2495 = vmatpush.msra.mxu0 %v356
          %2496 = vmatpush.msra.mxu0 %v352
          %2497 = vmatpush.msra.mxu0 %v348
          %2498 = vmatpush.msra.mxu0 %v344
          %2499 = vmatpush.msra.mxu0 %v340
          %2500 = vmatmul.f32.gmra.mxu0 %v2442
          %v2501 = vpop.f32.mrf.mxu0
          %v2502 = vadd.f32 0.0, %v2501
          %2503 = vdwg.mxu0
          %2504 = vmatpush.msra.mxu0 %v401
          %2505 = vmatpush.msra.mxu0 %v397
          %2506 = vmatpush.msra.mxu0 %v393
          %2507 = vmatpush.msra.mxu0 %v389
          %2508 = vmatpush.msra.mxu0 %v385
          %2509 = vmatpush.msra.mxu0 %v381
          %2510 = vmatpush.msra.mxu0 %v377
          %2511 = vmatpush.msra.mxu0 %v373
          %2512 = vmatpush.msra.mxu0 %v369
          %2513 = vmatpush.msra.mxu0 %v365
          %2514 = vmatpush.msra.mxu0 %v361
          %2515 = vmatpush.msra.mxu0 %v357
          %2516 = vmatpush.msra.mxu0 %v353
          %2517 = vmatpush.msra.mxu0 %v349
          %2518 = vmatpush.msra.mxu0 %v345
          %2519 = vmatpush.msra.mxu0 %v341
          %2520 = vmatmul.f32.gmra.mxu0 %v2442
          %v2521 = vpop.f32.mrf.mxu0
          %v2522 = vadd.f32 0.0, %v2521
          %2523 = vdwg.mxu0
          %v2524 = vadd.f32 %v2436, %v2462
          %v2525 = vadd.f32 %v2437, %v2482
          %v2526 = vadd.f32 %v2438, %v2502
          %v2527 = vadd.f32 %v2439, %v2522
          %v2528 = vxor.u32 %v2524, 2147483648
          %v2529 = vmul.f32 %v2528, 1.442695
          %v2530 = vpow.pop %v2529
          %v2531 = vadd.f32 %v2530, 1.0
          %v2532 = vrcp.pop %v2531
          %v2533 = vmul.f32 %v2531, %v2532
          %v2534 = vsub.f32 1.0, %v2533
          %v2535 = vmul.f32 %v2532, %v2534
          %v2536 = vadd.f32 %v2532, %v2535
          %vm2537 = vweird.f32 %v2531
          %vm2538 = vweird.f32 %v2532
          %vm2539 = vmor %vm2537, %vm2538
          %v2540 = vsel %vm2539, %v2532, %v2536
          %v2541 = vand.u32 2147483647, %v2531
          %vm2542 = vcmp.eq.f32.partialorder %v2541, 8.507059e+37
          %v2543 = vand.u32 %v2531, 2147483648
          %v2544 = vor.u32 1.1754944e-38, %v2543
          %v2545 = vsel %vm2542, %v2544, %v2540
          %v2546 = vmul.f32 1.0, %v2545
          %v2547 = vxor.u32 %v2525, 2147483648
          %v2548 = vmul.f32 %v2547, 1.442695
          %v2549 = vpow.pop %v2548
          %v2550 = vadd.f32 %v2549, 1.0
          %v2551 = vrcp.pop %v2550
          %v2552 = vmul.f32 %v2550, %v2551
          %v2553 = vsub.f32 1.0, %v2552
          %v2554 = vmul.f32 %v2551, %v2553
          %v2555 = vadd.f32 %v2551, %v2554
          %vm2556 = vweird.f32 %v2550
          %vm2557 = vweird.f32 %v2551
          %vm2558 = vmor %vm2556, %vm2557
          %v2559 = vsel %vm2558, %v2551, %v2555
          %v2560 = vand.u32 2147483647, %v2550
          %vm2561 = vcmp.eq.f32.partialorder %v2560, 8.507059e+37
          %v2562 = vand.u32 %v2550, 2147483648
          %v2563 = vor.u32 1.1754944e-38, %v2562
          %v2564 = vsel %vm2561, %v2563, %v2559
          %v2565 = vmul.f32 1.0, %v2564
          %v2566 = vtanh.pop %v2526
          %v2567 = vxor.u32 %v2527, 2147483648
          %v2568 = vmul.f32 %v2567, 1.442695
          %v2569 = vpow.pop %v2568
          %v2570 = vadd.f32 %v2569, 1.0
          %v2571 = vrcp.pop %v2570
          %v2572 = vmul.f32 %v2570, %v2571
          %v2573 = vsub.f32 1.0, %v2572
          %v2574 = vmul.f32 %v2571, %v2573
          %v2575 = vadd.f32 %v2571, %v2574
          %vm2576 = vweird.f32 %v2570
          %vm2577 = vweird.f32 %v2571
          %vm2578 = vmor %vm2576, %vm2577
          %v2579 = vsel %vm2578, %v2571, %v2575
          %v2580 = vand.u32 2147483647, %v2570
          %vm2581 = vcmp.eq.f32.partialorder %v2580, 8.507059e+37
          %v2582 = vand.u32 %v2570, 2147483648
          %v2583 = vor.u32 1.1754944e-38, %v2582
          %v2584 = vsel %vm2581, %v2583, %v2579
          %v2585 = vmul.f32 1.0, %v2584
          %v2586 = vmul.f32 %v2565, %v2443
          %v2587 = vmul.f32 %v2546, %v2566
          %v2588 = vadd.f32 %v2586, %v2587
          %v2589 = vtanh.pop %v2588
          %v2590 = vmul.f32 %v2585, %v2589
          %vm2591 = vcmp.gt.f32.partialorder %v2441, 0.0
          %v2592 = vsel %vm2591, 1, 0
          %2593 = vset.pattern.permute.xlu0 0
          %2594 = vperm.xlu0 %2593, %v2592
          %v2595 = vpop.permute.xlu0 %2594
          %vm2596 = vcmp.eq.s32.totalorder %v2595, 1
          %v2597 = vsel %vm2596, %v2590, %v2442
          %2598 = vst [vmem:[#allocation2] sm:$0xff] %v2597
          %v2599 = vsel %vm2596, %v2588, %v2443
          %2600 = vst [vmem:[#allocation3] sm:$0xff] %v2599
          %v2601 = vsel %vm2596, %v2590, 0.0
          %s2602 = scalar_lea.vmem %s307, 24 [#allocation9]
          %2603 = vst [vmem:[%s2602] sm:$0xff] %v2601
          %s2604 = scalar_lea.vmem %s260, 64 [#allocation4]
          %v2605 = vld [vmem:[%s2604] sm:$0xff]
          %v2606 = vld [vmem:[%s2604 + $0x8] sm:$0xff]
          %v2607 = vld [vmem:[%s2604 + $0x10] sm:$0xff]
          %v2608 = vld [vmem:[%s2604 + $0x18] sm:$0xff]
          %s2609 = scalar_lea.vmem %s316, 16
          %v2610 = vld [vmem:[%s2609] sm:$0xff]
          %v2611 = vld [vmem:[#allocation2] sm:$0xff]
          %v2612 = vld [vmem:[#allocation3] sm:$0xff]
          %2613 = vmatpush.msra.mxu0 %v398
          %2614 = vmatpush.msra.mxu0 %v394
          %2615 = vmatpush.msra.mxu0 %v390
          %2616 = vmatpush.msra.mxu0 %v386
          %2617 = vmatpush.msra.mxu0 %v382
          %2618 = vmatpush.msra.mxu0 %v378
          %2619 = vmatpush.msra.mxu0 %v374
          %2620 = vmatpush.msra.mxu0 %v370
          %2621 = vmatpush.msra.mxu0 %v366
          %2622 = vmatpush.msra.mxu0 %v362
          %2623 = vmatpush.msra.mxu0 %v358
          %2624 = vmatpush.msra.mxu0 %v354
          %2625 = vmatpush.msra.mxu0 %v350
          %2626 = vmatpush.msra.mxu0 %v346
          %2627 = vmatpush.msra.mxu0 %v342
          %2628 = vmatpush.msra.mxu0 %v338
          %2629 = vmatmul.f32.gmra.mxu0 %v2611
          %v2630 = vpop.f32.mrf.mxu0
          %v2631 = vadd.f32 0.0, %v2630
          %2632 = vdwg.mxu0
          %2633 = vmatpush.msra.mxu0 %v399
          %2634 = vmatpush.msra.mxu0 %v395
          %2635 = vmatpush.msra.mxu0 %v391
          %2636 = vmatpush.msra.mxu0 %v387
          %2637 = vmatpush.msra.mxu0 %v383
          %2638 = vmatpush.msra.mxu0 %v379
          %2639 = vmatpush.msra.mxu0 %v375
          %2640 = vmatpush.msra.mxu0 %v371
          %2641 = vmatpush.msra.mxu0 %v367
          %2642 = vmatpush.msra.mxu0 %v363
          %2643 = vmatpush.msra.mxu0 %v359
          %2644 = vmatpush.msra.mxu0 %v355
          %2645 = vmatpush.msra.mxu0 %v351
          %2646 = vmatpush.msra.mxu0 %v347
          %2647 = vmatpush.msra.mxu0 %v343
          %2648 = vmatpush.msra.mxu0 %v339
          %2649 = vmatmul.f32.gmra.mxu0 %v2611
          %v2650 = vpop.f32.mrf.mxu0
          %v2651 = vadd.f32 0.0, %v2650
          %2652 = vdwg.mxu0
          %2653 = vmatpush.msra.mxu0 %v400
          %2654 = vmatpush.msra.mxu0 %v396
          %2655 = vmatpush.msra.mxu0 %v392
          %2656 = vmatpush.msra.mxu0 %v388
          %2657 = vmatpush.msra.mxu0 %v384
          %2658 = vmatpush.msra.mxu0 %v380
          %2659 = vmatpush.msra.mxu0 %v376
          %2660 = vmatpush.msra.mxu0 %v372
          %2661 = vmatpush.msra.mxu0 %v368
          %2662 = vmatpush.msra.mxu0 %v364
          %2663 = vmatpush.msra.mxu0 %v360
          %2664 = vmatpush.msra.mxu0 %v356
          %2665 = vmatpush.msra.mxu0 %v352
          %2666 = vmatpush.msra.mxu0 %v348
          %2667 = vmatpush.msra.mxu0 %v344
          %2668 = vmatpush.msra.mxu0 %v340
          %2669 = vmatmul.f32.gmra.mxu0 %v2611
          %v2670 = vpop.f32.mrf.mxu0
          %v2671 = vadd.f32 0.0, %v2670
          %2672 = vdwg.mxu0
          %2673 = vmatpush.msra.mxu0 %v401
          %2674 = vmatpush.msra.mxu0 %v397
          %2675 = vmatpush.msra.mxu0 %v393
          %2676 = vmatpush.msra.mxu0 %v389
          %2677 = vmatpush.msra.mxu0 %v385
          %2678 = vmatpush.msra.mxu0 %v381
          %2679 = vmatpush.msra.mxu0 %v377
          %2680 = vmatpush.msra.mxu0 %v373
          %2681 = vmatpush.msra.mxu0 %v369
          %2682 = vmatpush.msra.mxu0 %v365
          %2683 = vmatpush.msra.mxu0 %v361
          %2684 = vmatpush.msra.mxu0 %v357
          %2685 = vmatpush.msra.mxu0 %v353
          %2686 = vmatpush.msra.mxu0 %v349
          %2687 = vmatpush.msra.mxu0 %v345
          %2688 = vmatpush.msra.mxu0 %v341
          %2689 = vmatmul.f32.gmra.mxu0 %v2611
          %v2690 = vpop.f32.mrf.mxu0
          %v2691 = vadd.f32 0.0, %v2690
          %2692 = vdwg.mxu0
          %v2693 = vadd.f32 %v2605, %v2631
          %v2694 = vadd.f32 %v2606, %v2651
          %v2695 = vadd.f32 %v2607, %v2671
          %v2696 = vadd.f32 %v2608, %v2691
          %v2697 = vxor.u32 %v2693, 2147483648
          %v2698 = vmul.f32 %v2697, 1.442695
          %v2699 = vpow.pop %v2698
          %v2700 = vadd.f32 %v2699, 1.0
          %v2701 = vrcp.pop %v2700
          %v2702 = vmul.f32 %v2700, %v2701
          %v2703 = vsub.f32 1.0, %v2702
          %v2704 = vmul.f32 %v2701, %v2703
          %v2705 = vadd.f32 %v2701, %v2704
          %vm2706 = vweird.f32 %v2700
          %vm2707 = vweird.f32 %v2701
          %vm2708 = vmor %vm2706, %vm2707
          %v2709 = vsel %vm2708, %v2701, %v2705
          %v2710 = vand.u32 2147483647, %v2700
          %vm2711 = vcmp.eq.f32.partialorder %v2710, 8.507059e+37
          %v2712 = vand.u32 %v2700, 2147483648
          %v2713 = vor.u32 1.1754944e-38, %v2712
          %v2714 = vsel %vm2711, %v2713, %v2709
          %v2715 = vmul.f32 1.0, %v2714
          %v2716 = vxor.u32 %v2694, 2147483648
          %v2717 = vmul.f32 %v2716, 1.442695
          %v2718 = vpow.pop %v2717
          %v2719 = vadd.f32 %v2718, 1.0
          %v2720 = vrcp.pop %v2719
          %v2721 = vmul.f32 %v2719, %v2720
          %v2722 = vsub.f32 1.0, %v2721
          %v2723 = vmul.f32 %v2720, %v2722
          %v2724 = vadd.f32 %v2720, %v2723
          %vm2725 = vweird.f32 %v2719
          %vm2726 = vweird.f32 %v2720
          %vm2727 = vmor %vm2725, %vm2726
          %v2728 = vsel %vm2727, %v2720, %v2724
          %v2729 = vand.u32 2147483647, %v2719
          %vm2730 = vcmp.eq.f32.partialorder %v2729, 8.507059e+37
          %v2731 = vand.u32 %v2719, 2147483648
          %v2732 = vor.u32 1.1754944e-38, %v2731
          %v2733 = vsel %vm2730, %v2732, %v2728
          %v2734 = vmul.f32 1.0, %v2733
          %v2735 = vtanh.pop %v2695
          %v2736 = vxor.u32 %v2696, 2147483648
          %v2737 = vmul.f32 %v2736, 1.442695
          %v2738 = vpow.pop %v2737
          %v2739 = vadd.f32 %v2738, 1.0
          %v2740 = vrcp.pop %v2739
          %v2741 = vmul.f32 %v2739, %v2740
          %v2742 = vsub.f32 1.0, %v2741
          %v2743 = vmul.f32 %v2740, %v2742
          %v2744 = vadd.f32 %v2740, %v2743
          %vm2745 = vweird.f32 %v2739
          %vm2746 = vweird.f32 %v2740
          %vm2747 = vmor %vm2745, %vm2746
          %v2748 = vsel %vm2747, %v2740, %v2744
          %v2749 = vand.u32 2147483647, %v2739
          %vm2750 = vcmp.eq.f32.partialorder %v2749, 8.507059e+37
          %v2751 = vand.u32 %v2739, 2147483648
          %v2752 = vor.u32 1.1754944e-38, %v2751
          %v2753 = vsel %vm2750, %v2752, %v2748
          %v2754 = vmul.f32 1.0, %v2753
          %v2755 = vmul.f32 %v2734, %v2612
          %v2756 = vmul.f32 %v2715, %v2735
          %v2757 = vadd.f32 %v2755, %v2756
          %v2758 = vtanh.pop %v2757
          %v2759 = vmul.f32 %v2754, %v2758
          %vm2760 = vcmp.gt.f32.partialorder %v2610, 0.0
          %v2761 = vsel %vm2760, 1, 0
          %2762 = vset.pattern.permute.xlu0 0
          %2763 = vperm.xlu0 %2762, %v2761
          %v2764 = vpop.permute.xlu0 %2763
          %vm2765 = vcmp.eq.s32.totalorder %v2764, 1
          %v2766 = vsel %vm2765, %v2759, %v2611
          %2767 = vst [vmem:[#allocation2] sm:$0xff] %v2766
          %v2768 = vsel %vm2765, %v2757, %v2612
          %2769 = vst [vmem:[#allocation3] sm:$0xff] %v2768
          %v2770 = vsel %vm2765, %v2759, 0.0
          %s2771 = scalar_lea.vmem %s307, 16 [#allocation9]
          %2772 = vst [vmem:[%s2771] sm:$0xff] %v2770
          %s2773 = scalar_lea.vmem %s260, 32 [#allocation4]
          %v2774 = vld [vmem:[%s2773] sm:$0xff]
          %v2775 = vld [vmem:[%s2773 + $0x8] sm:$0xff]
          %v2776 = vld [vmem:[%s2773 + $0x10] sm:$0xff]
          %v2777 = vld [vmem:[%s2773 + $0x18] sm:$0xff]
          %s2778 = scalar_lea.vmem %s316, 8
          %v2779 = vld [vmem:[%s2778] sm:$0xff]
          %v2780 = vld [vmem:[#allocation2] sm:$0xff]
          %v2781 = vld [vmem:[#allocation3] sm:$0xff]
          %2782 = vmatpush.msra.mxu0 %v398
          %2783 = vmatpush.msra.mxu0 %v394
          %2784 = vmatpush.msra.mxu0 %v390
          %2785 = vmatpush.msra.mxu0 %v386
          %2786 = vmatpush.msra.mxu0 %v382
          %2787 = vmatpush.msra.mxu0 %v378
          %2788 = vmatpush.msra.mxu0 %v374
          %2789 = vmatpush.msra.mxu0 %v370
          %2790 = vmatpush.msra.mxu0 %v366
          %2791 = vmatpush.msra.mxu0 %v362
          %2792 = vmatpush.msra.mxu0 %v358
          %2793 = vmatpush.msra.mxu0 %v354
          %2794 = vmatpush.msra.mxu0 %v350
          %2795 = vmatpush.msra.mxu0 %v346
          %2796 = vmatpush.msra.mxu0 %v342
          %2797 = vmatpush.msra.mxu0 %v338
          %2798 = vmatmul.f32.gmra.mxu0 %v2780
          %v2799 = vpop.f32.mrf.mxu0
          %v2800 = vadd.f32 0.0, %v2799
          %2801 = vdwg.mxu0
          %2802 = vmatpush.msra.mxu0 %v399
          %2803 = vmatpush.msra.mxu0 %v395
          %2804 = vmatpush.msra.mxu0 %v391
          %2805 = vmatpush.msra.mxu0 %v387
          %2806 = vmatpush.msra.mxu0 %v383
          %2807 = vmatpush.msra.mxu0 %v379
          %2808 = vmatpush.msra.mxu0 %v375
          %2809 = vmatpush.msra.mxu0 %v371
          %2810 = vmatpush.msra.mxu0 %v367
          %2811 = vmatpush.msra.mxu0 %v363
          %2812 = vmatpush.msra.mxu0 %v359
          %2813 = vmatpush.msra.mxu0 %v355
          %2814 = vmatpush.msra.mxu0 %v351
          %2815 = vmatpush.msra.mxu0 %v347
          %2816 = vmatpush.msra.mxu0 %v343
          %2817 = vmatpush.msra.mxu0 %v339
          %2818 = vmatmul.f32.gmra.mxu0 %v2780
          %v2819 = vpop.f32.mrf.mxu0
          %v2820 = vadd.f32 0.0, %v2819
          %2821 = vdwg.mxu0
          %2822 = vmatpush.msra.mxu0 %v400
          %2823 = vmatpush.msra.mxu0 %v396
          %2824 = vmatpush.msra.mxu0 %v392
          %2825 = vmatpush.msra.mxu0 %v388
          %2826 = vmatpush.msra.mxu0 %v384
          %2827 = vmatpush.msra.mxu0 %v380
          %2828 = vmatpush.msra.mxu0 %v376
          %2829 = vmatpush.msra.mxu0 %v372
          %2830 = vmatpush.msra.mxu0 %v368
          %2831 = vmatpush.msra.mxu0 %v364
          %2832 = vmatpush.msra.mxu0 %v360
          %2833 = vmatpush.msra.mxu0 %v356
          %2834 = vmatpush.msra.mxu0 %v352
          %2835 = vmatpush.msra.mxu0 %v348
          %2836 = vmatpush.msra.mxu0 %v344
          %2837 = vmatpush.msra.mxu0 %v340
          %2838 = vmatmul.f32.gmra.mxu0 %v2780
          %v2839 = vpop.f32.mrf.mxu0
          %v2840 = vadd.f32 0.0, %v2839
          %2841 = vdwg.mxu0
          %2842 = vmatpush.msra.mxu0 %v401
          %2843 = vmatpush.msra.mxu0 %v397
          %2844 = vmatpush.msra.mxu0 %v393
          %2845 = vmatpush.msra.mxu0 %v389
          %2846 = vmatpush.msra.mxu0 %v385
          %2847 = vmatpush.msra.mxu0 %v381
          %2848 = vmatpush.msra.mxu0 %v377
          %2849 = vmatpush.msra.mxu0 %v373
          %2850 = vmatpush.msra.mxu0 %v369
          %2851 = vmatpush.msra.mxu0 %v365
          %2852 = vmatpush.msra.mxu0 %v361
          %2853 = vmatpush.msra.mxu0 %v357
          %2854 = vmatpush.msra.mxu0 %v353
          %2855 = vmatpush.msra.mxu0 %v349
          %2856 = vmatpush.msra.mxu0 %v345
          %2857 = vmatpush.msra.mxu0 %v341
          %2858 = vmatmul.f32.gmra.mxu0 %v2780
          %v2859 = vpop.f32.mrf.mxu0
          %v2860 = vadd.f32 0.0, %v2859
          %2861 = vdwg.mxu0
          %v2862 = vadd.f32 %v2774, %v2800
          %v2863 = vadd.f32 %v2775, %v2820
          %v2864 = vadd.f32 %v2776, %v2840
          %v2865 = vadd.f32 %v2777, %v2860
          %v2866 = vxor.u32 %v2862, 2147483648
          %v2867 = vmul.f32 %v2866, 1.442695
          %v2868 = vpow.pop %v2867
          %v2869 = vadd.f32 %v2868, 1.0
          %v2870 = vrcp.pop %v2869
          %v2871 = vmul.f32 %v2869, %v2870
          %v2872 = vsub.f32 1.0, %v2871
          %v2873 = vmul.f32 %v2870, %v2872
          %v2874 = vadd.f32 %v2870, %v2873
          %vm2875 = vweird.f32 %v2869
          %vm2876 = vweird.f32 %v2870
          %vm2877 = vmor %vm2875, %vm2876
          %v2878 = vsel %vm2877, %v2870, %v2874
          %v2879 = vand.u32 2147483647, %v2869
          %vm2880 = vcmp.eq.f32.partialorder %v2879, 8.507059e+37
          %v2881 = vand.u32 %v2869, 2147483648
          %v2882 = vor.u32 1.1754944e-38, %v2881
          %v2883 = vsel %vm2880, %v2882, %v2878
          %v2884 = vmul.f32 1.0, %v2883
          %v2885 = vxor.u32 %v2863, 2147483648
          %v2886 = vmul.f32 %v2885, 1.442695
          %v2887 = vpow.pop %v2886
          %v2888 = vadd.f32 %v2887, 1.0
          %v2889 = vrcp.pop %v2888
          %v2890 = vmul.f32 %v2888, %v2889
          %v2891 = vsub.f32 1.0, %v2890
          %v2892 = vmul.f32 %v2889, %v2891
          %v2893 = vadd.f32 %v2889, %v2892
          %vm2894 = vweird.f32 %v2888
          %vm2895 = vweird.f32 %v2889
          %vm2896 = vmor %vm2894, %vm2895
          %v2897 = vsel %vm2896, %v2889, %v2893
          %v2898 = vand.u32 2147483647, %v2888
          %vm2899 = vcmp.eq.f32.partialorder %v2898, 8.507059e+37
          %v2900 = vand.u32 %v2888, 2147483648
          %v2901 = vor.u32 1.1754944e-38, %v2900
          %v2902 = vsel %vm2899, %v2901, %v2897
          %v2903 = vmul.f32 1.0, %v2902
          %v2904 = vtanh.pop %v2864
          %v2905 = vxor.u32 %v2865, 2147483648
          %v2906 = vmul.f32 %v2905, 1.442695
          %v2907 = vpow.pop %v2906
          %v2908 = vadd.f32 %v2907, 1.0
          %v2909 = vrcp.pop %v2908
          %v2910 = vmul.f32 %v2908, %v2909
          %v2911 = vsub.f32 1.0, %v2910
          %v2912 = vmul.f32 %v2909, %v2911
          %v2913 = vadd.f32 %v2909, %v2912
          %vm2914 = vweird.f32 %v2908
          %vm2915 = vweird.f32 %v2909
          %vm2916 = vmor %vm2914, %vm2915
          %v2917 = vsel %vm2916, %v2909, %v2913
          %v2918 = vand.u32 2147483647, %v2908
          %vm2919 = vcmp.eq.f32.partialorder %v2918, 8.507059e+37
          %v2920 = vand.u32 %v2908, 2147483648
          %v2921 = vor.u32 1.1754944e-38, %v2920
          %v2922 = vsel %vm2919, %v2921, %v2917
          %v2923 = vmul.f32 1.0, %v2922
          %v2924 = vmul.f32 %v2903, %v2781
          %v2925 = vmul.f32 %v2884, %v2904
          %v2926 = vadd.f32 %v2924, %v2925
          %v2927 = vtanh.pop %v2926
          %v2928 = vmul.f32 %v2923, %v2927
          %vm2929 = vcmp.gt.f32.partialorder %v2779, 0.0
          %v2930 = vsel %vm2929, 1, 0
          %2931 = vset.pattern.permute.xlu0 0
          %2932 = vperm.xlu0 %2931, %v2930
          %v2933 = vpop.permute.xlu0 %2932
          %vm2934 = vcmp.eq.s32.totalorder %v2933, 1
          %v2935 = vsel %vm2934, %v2928, %v2780
          %2936 = vst [vmem:[#allocation2] sm:$0xff] %v2935
          %v2937 = vsel %vm2934, %v2926, %v2781
          %2938 = vst [vmem:[#allocation3] sm:$0xff] %v2937
          %v2939 = vsel %vm2934, %v2928, 0.0
          %s2940 = scalar_lea.vmem %s307, 8 [#allocation9]
          %2941 = vst [vmem:[%s2940] sm:$0xff] %v2939
          %v2942 = vld [vmem:[%s260] sm:$0xff]
          %v2943 = vld [vmem:[%s260 + $0x8] sm:$0xff]
          %v2944 = vld [vmem:[%s260 + $0x10] sm:$0xff]
          %v2945 = vld [vmem:[%s260 + $0x18] sm:$0xff]
          %v2946 = vld [vmem:[%s316] sm:$0xff]
          %v2947 = vld [vmem:[#allocation2] sm:$0xff]
          %v2948 = vld [vmem:[#allocation3] sm:$0xff]
          %2949 = vmatpush.msra.mxu0 %v398
          %2950 = vmatpush.msra.mxu0 %v394
          %2951 = vmatpush.msra.mxu0 %v390
          %2952 = vmatpush.msra.mxu0 %v386
          %2953 = vmatpush.msra.mxu0 %v382
          %2954 = vmatpush.msra.mxu0 %v378
          %2955 = vmatpush.msra.mxu0 %v374
          %2956 = vmatpush.msra.mxu0 %v370
          %2957 = vmatpush.msra.mxu0 %v366
          %2958 = vmatpush.msra.mxu0 %v362
          %2959 = vmatpush.msra.mxu0 %v358
          %2960 = vmatpush.msra.mxu0 %v354
          %2961 = vmatpush.msra.mxu0 %v350
          %2962 = vmatpush.msra.mxu0 %v346
          %2963 = vmatpush.msra.mxu0 %v342
          %2964 = vmatpush.msra.mxu0 %v338
          %2965 = vmatmul.f32.gmra.mxu0 %v2947
          %v2966 = vpop.f32.mrf.mxu0
          %v2967 = vadd.f32 0.0, %v2966
          %2968 = vdwg.mxu0
          %2969 = vmatpush.msra.mxu0 %v399
          %2970 = vmatpush.msra.mxu0 %v395
          %2971 = vmatpush.msra.mxu0 %v391
          %2972 = vmatpush.msra.mxu0 %v387
          %2973 = vmatpush.msra.mxu0 %v383
          %2974 = vmatpush.msra.mxu0 %v379
          %2975 = vmatpush.msra.mxu0 %v375
          %2976 = vmatpush.msra.mxu0 %v371
          %2977 = vmatpush.msra.mxu0 %v367
          %2978 = vmatpush.msra.mxu0 %v363
          %2979 = vmatpush.msra.mxu0 %v359
          %2980 = vmatpush.msra.mxu0 %v355
          %2981 = vmatpush.msra.mxu0 %v351
          %2982 = vmatpush.msra.mxu0 %v347
          %2983 = vmatpush.msra.mxu0 %v343
          %2984 = vmatpush.msra.mxu0 %v339
          %2985 = vmatmul.f32.gmra.mxu0 %v2947
          %v2986 = vpop.f32.mrf.mxu0
          %v2987 = vadd.f32 0.0, %v2986
          %2988 = vdwg.mxu0
          %2989 = vmatpush.msra.mxu0 %v400
          %2990 = vmatpush.msra.mxu0 %v396
          %2991 = vmatpush.msra.mxu0 %v392
          %2992 = vmatpush.msra.mxu0 %v388
          %2993 = vmatpush.msra.mxu0 %v384
          %2994 = vmatpush.msra.mxu0 %v380
          %2995 = vmatpush.msra.mxu0 %v376
          %2996 = vmatpush.msra.mxu0 %v372
          %2997 = vmatpush.msra.mxu0 %v368
          %2998 = vmatpush.msra.mxu0 %v364
          %2999 = vmatpush.msra.mxu0 %v360
          %3000 = vmatpush.msra.mxu0 %v356
          %3001 = vmatpush.msra.mxu0 %v352
          %3002 = vmatpush.msra.mxu0 %v348
          %3003 = vmatpush.msra.mxu0 %v344
          %3004 = vmatpush.msra.mxu0 %v340
          %3005 = vmatmul.f32.gmra.mxu0 %v2947
          %v3006 = vpop.f32.mrf.mxu0
          %v3007 = vadd.f32 0.0, %v3006
          %3008 = vdwg.mxu0
          %3009 = vmatpush.msra.mxu0 %v401
          %3010 = vmatpush.msra.mxu0 %v397
          %3011 = vmatpush.msra.mxu0 %v393
          %3012 = vmatpush.msra.mxu0 %v389
          %3013 = vmatpush.msra.mxu0 %v385
          %3014 = vmatpush.msra.mxu0 %v381
          %3015 = vmatpush.msra.mxu0 %v377
          %3016 = vmatpush.msra.mxu0 %v373
          %3017 = vmatpush.msra.mxu0 %v369
          %3018 = vmatpush.msra.mxu0 %v365
          %3019 = vmatpush.msra.mxu0 %v361
          %3020 = vmatpush.msra.mxu0 %v357
          %3021 = vmatpush.msra.mxu0 %v353
          %3022 = vmatpush.msra.mxu0 %v349
          %3023 = vmatpush.msra.mxu0 %v345
          %3024 = vmatpush.msra.mxu0 %v341
          %3025 = vmatmul.f32.gmra.mxu0 %v2947
          %v3026 = vpop.f32.mrf.mxu0
          %v3027 = vadd.f32 0.0, %v3026
          %3028 = vdwg.mxu0
          %v3029 = vadd.f32 %v2942, %v2967
          %v3030 = vadd.f32 %v2943, %v2987
          %v3031 = vadd.f32 %v2944, %v3007
          %v3032 = vadd.f32 %v2945, %v3027
          %v3033 = vxor.u32 %v3029, 2147483648
          %v3034 = vmul.f32 %v3033, 1.442695
          %v3035 = vpow.pop %v3034
          %v3036 = vadd.f32 %v3035, 1.0
          %v3037 = vrcp.pop %v3036
          %v3038 = vmul.f32 %v3036, %v3037
          %v3039 = vsub.f32 1.0, %v3038
          %v3040 = vmul.f32 %v3037, %v3039
          %v3041 = vadd.f32 %v3037, %v3040
          %vm3042 = vweird.f32 %v3036
          %vm3043 = vweird.f32 %v3037
          %vm3044 = vmor %vm3042, %vm3043
          %v3045 = vsel %vm3044, %v3037, %v3041
          %v3046 = vand.u32 2147483647, %v3036
          %vm3047 = vcmp.eq.f32.partialorder %v3046, 8.507059e+37
          %v3048 = vand.u32 %v3036, 2147483648
          %v3049 = vor.u32 1.1754944e-38, %v3048
          %v3050 = vsel %vm3047, %v3049, %v3045
          %v3051 = vmul.f32 1.0, %v3050
          %v3052 = vxor.u32 %v3030, 2147483648
          %v3053 = vmul.f32 %v3052, 1.442695
          %v3054 = vpow.pop %v3053
          %v3055 = vadd.f32 %v3054, 1.0
          %v3056 = vrcp.pop %v3055
          %v3057 = vmul.f32 %v3055, %v3056
          %v3058 = vsub.f32 1.0, %v3057
          %v3059 = vmul.f32 %v3056, %v3058
          %v3060 = vadd.f32 %v3056, %v3059
          %vm3061 = vweird.f32 %v3055
          %vm3062 = vweird.f32 %v3056
          %vm3063 = vmor %vm3061, %vm3062
          %v3064 = vsel %vm3063, %v3056, %v3060
          %v3065 = vand.u32 2147483647, %v3055
          %vm3066 = vcmp.eq.f32.partialorder %v3065, 8.507059e+37
          %v3067 = vand.u32 %v3055, 2147483648
          %v3068 = vor.u32 1.1754944e-38, %v3067
          %v3069 = vsel %vm3066, %v3068, %v3064
          %v3070 = vmul.f32 1.0, %v3069
          %v3071 = vtanh.pop %v3031
          %v3072 = vxor.u32 %v3032, 2147483648
          %v3073 = vmul.f32 %v3072, 1.442695
          %v3074 = vpow.pop %v3073
          %v3075 = vadd.f32 %v3074, 1.0
          %v3076 = vrcp.pop %v3075
          %v3077 = vmul.f32 %v3075, %v3076
          %v3078 = vsub.f32 1.0, %v3077
          %v3079 = vmul.f32 %v3076, %v3078
          %v3080 = vadd.f32 %v3076, %v3079
          %vm3081 = vweird.f32 %v3075
          %vm3082 = vweird.f32 %v3076
          %vm3083 = vmor %vm3081, %vm3082
          %v3084 = vsel %vm3083, %v3076, %v3080
          %v3085 = vand.u32 2147483647, %v3075
          %vm3086 = vcmp.eq.f32.partialorder %v3085, 8.507059e+37
          %v3087 = vand.u32 %v3075, 2147483648
          %v3088 = vor.u32 1.1754944e-38, %v3087
          %v3089 = vsel %vm3086, %v3088, %v3084
          %v3090 = vmul.f32 1.0, %v3089
          %v3091 = vmul.f32 %v3070, %v2948
          %v3092 = vmul.f32 %v3051, %v3071
          %v3093 = vadd.f32 %v3091, %v3092
          %v3094 = vtanh.pop %v3093
          %v3095 = vmul.f32 %v3090, %v3094
          %vm3096 = vcmp.gt.f32.partialorder %v2946, 0.0
          %v3097 = vsel %vm3096, 1, 0
          %3098 = vset.pattern.permute.xlu0 0
          %3099 = vperm.xlu0 %3098, %v3097
          %v3100 = vpop.permute.xlu0 %3099
          %vm3101 = vcmp.eq.s32.totalorder %v3100, 1
          %v3102 = vsel %vm3101, %v3095, %v2947
          %3103 = vst [vmem:[#allocation2] sm:$0xff] %v3102
          %v3104 = vsel %vm3101, %v3093, %v2948
          %3105 = vst [vmem:[#allocation3] sm:$0xff] %v3104
          %v3106 = vsel %vm3101, %v3095, 0.0
          %3107 = vst [vmem:[%s307] sm:$0xff] %v3106
        $region52: #{tpu_custom_call.1} parent=31 // pred_fallthru
          _
        %s3108 = sand.u32 %s149, 1
        %s3109 = scalar_lea.sflag [#allocation6], %s3108
        %s3110 = sand.u32 %s149, 1
        %s3111 = smul.addr %s3110, 64
        %s3112 = scalar_lea.vmem [#allocation9], %s3111
        // Predicated region
        $region53: #{tpu_custom_call.1} parent=31 // pred_check
          %p3113 = pneg %p159
        $region54: #{tpu_custom_call.1} parent=31 // pred_check_branch
          %3115 = sbr.rel (%p3113) target = $region56
        $region55: #{tpu_custom_call.1} parent=31 // pred_region
          %s3116 = smul.u32 %s28, 2
          %s3117 = ssub.s32 0, %s3116
          %s3118 = smul.u32 %s27, %s3117
          %s3119 = sadd.s32 %s28, %s3118
          %s3120 = smul.u32 8, %s3119
          %3122 = vsyncadd %s3109, 0
          %s3123 = smul.addr %s3120, 2
          %s3124 = sadd.s32 %s27, %s3123
          %s3125 = smul.addr %s3124, 8
          %s3126 = scalar_lea.hbm %s3, %s3125
          %s3127 = sshll.u32 %s3112, 4
          %s3128 = int_to_ptr.vmem [resolvable:$true] %s3127
          %s3129 = sshll.u32 %s3126, 4
          %s3130 = int_to_ptr.hbm [resolvable:$true] %s3129
          %3135 = dma.vmem_to_hbm [thread:$0]  %s3128, 1024, %s3130, %s3109, 128, 256, 8
        $region56: #{tpu_custom_call.1} parent=31 // pred_fallthru
          _
      $region32: #{tpu_custom_call.1} parent=5 // pred_fallthru
        _
      %p3136 = scmp.le.s32.totalorder 2, %s18
      // Predicated region
      $region57: #{tpu_custom_call.1} parent=5 // pred_check
        %p3137 = pneg %p3136
      $region58: #{tpu_custom_call.1} parent=5 // pred_check_branch
        %3139 = sbr.rel (%p3137) target = $region60
      $region59: #{tpu_custom_call.1} parent=5 // pred_region
        %s3140 = ssub.s32 %s18, 2
        // Predicated region
        $region61: #{tpu_custom_call.1} parent=59 // pred_check
          %p3141 = pneg %p165
        $region62: #{tpu_custom_call.1} parent=59 // pred_check_branch
          %3143 = sbr.rel (%p3141) target = $region64
        $region63: #{tpu_custom_call.1} parent=59 // pred_region
          %s3144 = sand.u32 %s150, 1
          %s3145 = scalar_lea.sflag [#allocation6], %s3144
          %s3146 = sand.u32 %s150, 1
          %s3147 = smul.addr %s3146, 64
          %s3148 = scalar_lea.vmem [#allocation9], %s3147
          %3150 = dma.done %s3145, 1024
        $region64: #{tpu_custom_call.1} parent=59 // pred_fallthru
          _
      $region60: #{tpu_custom_call.1} parent=5 // pred_fallthru
        _
    $region6: #{tpu_custom_call.1} parent=1 // loop_footer
      %s22 = sadd.s32 1, %s18
    $region7: #{tpu_custom_call.1} parent=1 // loop_footer_branch
      %17 = sbr.rel target = $region3
    $region8: #{tpu_custom_call.1} parent=1 // loop_exit
      _
    %3151 = vsyncpa [#allocation5], 1
    %s3152 = scalar_lea.sflag [#allocation5], 1
    %3153 = vsyncpa %s3152, 1
    %3154 = vsyncpa [#allocation8], 1
    %s3155 = scalar_lea.sflag [#allocation8], 1
    %3156 = vsyncpa %s3155, 1
    %3157 = vsyncpa [#allocation6], 1
    %s3158 = scalar_lea.sflag [#allocation6], 1
    %3159 = vsyncpa %s3158, 1

</llo_original>
